<compile_context>
chip_gen: v6e
topology: v6e:2x2x1
jax: 0.10.0
libtpu: 0.0.40
codegen_flags: <defaults>
</compile_context>

<pallas_src>
import functools

import jax
import jax.numpy as jnp
from jax import lax
from jax.experimental import pallas as pl
from jax.experimental.pallas import tpu as pltpu


# --------------------------- host-side helpers ----------------------------- #

def _interp_matrix(out_size, in_size):
    """(out_size, in_size) bilinear interpolation matrix, align_corners=False."""
    scale = in_size / out_size
    src = (jnp.arange(out_size, dtype=jnp.float32) + 0.5) * scale - 0.5
    src = jnp.clip(src, 0.0, float(in_size - 1))
    lo = jnp.floor(src).astype(jnp.int32)
    hi = jnp.minimum(lo + 1, in_size - 1)
    w = src - lo.astype(jnp.float32)
    return (jax.nn.one_hot(lo, in_size, dtype=jnp.float32) * (1.0 - w)[:, None]
            + jax.nn.one_hot(hi, in_size, dtype=jnp.float32) * w[:, None])


def _fold_weights(w_hwio, scale, dot_dtype):
    """(3,3,Cin,Cout) HWIO weight * per-out-channel scale -> (9, Cout, Cin)."""
    kh, kw, cin, cout = w_hwio.shape
    w = w_hwio.reshape(kh * kw, cin, cout) * scale[None, None, :]
    return jnp.transpose(w, (0, 2, 1)).astype(dot_dtype)


def _selection_matrix(col_idx, num_cols):
    """One-hot (num_cols, len(col_idx)) matrix so that x @ S selects columns."""
    return jnp.transpose(jax.nn.one_hot(col_idx, num_cols, dtype=jnp.float32))


# ------------------------------ fused kernel -------------------------------- #

def down_block_forward(params, x_nchw, img_nchw, *, dot_dtype=jnp.bfloat16):
    B, cin, H, W = x_nchw.shape
    Bi, cimg, Hi, Wi = img_nchw.shape
    assert B == Bi
    cout = params["w1"].shape[-1]
    assert (H - 4) % 2 == 0 and (W - 4) % 2 == 0, "pooled spatial must be integral"

    # Static spatial bookkeeping (flattened row-major layout, row stride = W/Wr).
    # Each conv is computed over M flat positions; only columns inside the valid
    # (Hv, Wv) window are meaningful, trailing "wrap" columns are finite garbage
    # that never feeds a valid output (verified index ranges fit exactly).
    Hp, Wp = (H - 4) // 2, (W - 4) // 2        # final spatial size
    Hr, Wr = Hp + 4, Wp + 4                    # bilinear-resize target
    m1 = (H - 3) * W + (W - 2)                 # conv1 covers valid (H-2, W-2)
    m2 = (H - 5) * W + (W - 4)                 # conv2 covers valid (H-4, W-4)
    mq = (H - 6) * W + (W - 6) + 1             # 2x2-max window base positions
    mi1 = (Hr - 3) * Wr + (Wr - 2)             # img conv1 covers valid (Hr-2, Wr-2)
    mi2 = (Hr - 5) * Wr + (Wr - 4)             # img conv2 covers valid (Hr-4, Wr-4)
    taps_x = tuple(dy * W + dx for dy in range(3) for dx in range(3))
    taps_i = tuple(dy * Wr + dx for dy in range(3) for dx in range(3))

    # Kernel operands: NCHW inputs just reshaped (free), BN scale folded into
    # bf16 weights, biases kept f32 for the f32 epilogue.
    x_flat = x_nchw.reshape(B, cin, H * W).astype(jnp.float32)
    img_flat = img_nchw.reshape(B, cimg, Hi * Wi).astype(jnp.float32)
    w1 = _fold_weights(params["w1"], params["scale1"], dot_dtype)
    b1 = params["shift1"].reshape(cout, 1).astype(jnp.float32)
    w2 = _fold_weights(params["w2"], params["scale2"], dot_dtype)
    b2 = params["shift2"].reshape(cout, 1).astype(jnp.float32)
    iw1 = _fold_weights(params["iw1"], params["iscale1"], dot_dtype)
    ib1 = params["ishift1"].reshape(cout, 1).astype(jnp.float32)
    iw2 = _fold_weights(params["iw2"], params["iscale2"], dot_dtype)
    ib2 = params["ishift2"].reshape(cout, 1).astype(jnp.float32)

    # Bilinear resize as a single (Hi*Wi, Hr*Wr) matrix (separable kernel outer
    # product), applied in-kernel as one MXU matmul.
    ry = _interp_matrix(Hr, Hi)
    rx = _interp_matrix(Wr, Wi)
    t_resize = jnp.einsum("iy,jx->yxij", ry, rx).reshape(Hi * Wi, Hr * Wr)
    t_resize = t_resize.astype(dot_dtype)

    # One-hot column-selection matrices (f32 => exact selection on the MXU).
    k = jnp.arange(Hp * Wp)
    sp = _selection_matrix((k // Wp) * (2 * W) + (k % Wp) * 2, mq)   # (mq, Hp*Wp)
    si = _selection_matrix((k // Wp) * Wr + (k % Wp), mi2)           # (mi2, Hp*Wp)

    def conv_relu(v, w_ref, b_ref, taps, m):
        # v: (c_in, n) f32 flat activation. 9 unrolled taps, bf16 MXU operands,
        # f32 accumulation, f32 bias + ReLU epilogue. Returns (cout, m) f32.
        acc = None
        for t, s in enumerate(taps):
            tap = v[:, s:s + m].astype(dot_dtype)
            d = jnp.dot(w_ref[t], tap, preferred_element_type=jnp.float32)
            acc = d if acc is None else acc + d
        return jnp.maximum(acc + b_ref[...], 0.0)

    def kernel(x_ref, img_ref, w1_ref, b1_ref, w2_ref, b2_ref,
               iw1_ref, ib1_ref, iw2_ref, ib2_ref, t_ref, sp_ref, si_ref,
               o_ref):
        # ---- feature branch: conv(BN,ReLU) -> conv(bias,ReLU) -> maxpool 2x2 ----
        a = conv_relu(x_ref[0], w1_ref, b1_ref, taps_x, m1)
        a = conv_relu(a, w2_ref, b2_ref, taps_x, m2)
        mc = jnp.maximum(jnp.maximum(a[:, 0:mq], a[:, 1:1 + mq]),
                         jnp.maximum(a[:, W:W + mq], a[:, W + 1:W + 1 + mq]))
        pooled = jnp.dot(mc, sp_ref[...], preferred_element_type=jnp.float32)
        # ---- image branch: bilinear resize -> conv(BN,ReLU) -> conv(bias,ReLU) ----
        r = jnp.dot(img_ref[0].astype(dot_dtype), t_ref[...],
                    preferred_element_type=jnp.float32)
        a = conv_relu(r, iw1_ref, ib1_ref, taps_i, mi1)
        a = conv_relu(a, iw2_ref, ib2_ref, taps_i, mi2)
        ix = jnp.dot(a, si_ref[...], preferred_element_type=jnp.float32)
        # ---- fused channel concat; layout is already NCHW (C rows, H*W lanes) ----
        o_ref[0, 0:cout, :] = pooled
        o_ref[0, cout:2 * cout, :] = ix

    const3 = lambda b: (0, 0, 0)
    const2 = lambda b: (0, 0)
    out = pl.pallas_call(
        kernel,
        out_shape=jax.ShapeDtypeStruct((B, 2 * cout, Hp * Wp), jnp.float32),
        grid=(B,),
        in_specs=[
            pl.BlockSpec((1, cin, H * W), lambda b: (b, 0, 0)),
            pl.BlockSpec((1, cimg, Hi * Wi), lambda b: (b, 0, 0)),
            pl.BlockSpec((9, cout, cin), const3),
            pl.BlockSpec((cout, 1), const2),
            pl.BlockSpec((9, cout, cout), const3),
            pl.BlockSpec((cout, 1), const2),
            pl.BlockSpec((9, cout, cimg), const3),
            pl.BlockSpec((cout, 1), const2),
            pl.BlockSpec((9, cout, cout), const3),
            pl.BlockSpec((cout, 1), const2),
            pl.BlockSpec((Hi * Wi, Hr * Wr), const2),
            pl.BlockSpec((mq, Hp * Wp), const2),
            pl.BlockSpec((mi2, Hp * Wp), const2),
        ],
        out_specs=pl.BlockSpec((1, 2 * cout, Hp * Wp), lambda b: (b, 0, 0)),
        compiler_params=pltpu.CompilerParams(dimension_semantics=("parallel",)),
    )(x_flat, img_flat, w1, b1, w2, b2, iw1, ib1, iw2, ib2, t_resize, sp, si)

    return out.reshape(B, 2 * cout, Hp, Wp)


# ------------------------------ parameters ---------------------------------- #

def init_params(key, in_dims, out_dims, eps=1e-5):
    ks = jax.random.split(key, 16)
    nrm = lambda k, shape, s=0.1: s * jax.random.normal(k, shape, jnp.float32)
    p = {}

    # convs[0]: Conv2d(in, out, 3, bias=False) + BN + ReLU   (BN folded)
    p["w1"] = nrm(ks[0], (3, 3, in_dims, out_dims))
    g1, b1 = 1.0 + nrm(ks[1], (out_dims,)), nrm(ks[2], (out_dims,))
    m1 = nrm(ks[3], (out_dims,))
    v1 = 1.0 + 0.1 * jnp.abs(jax.random.normal(ks[4], (out_dims,), jnp.float32))
    p["scale1"] = g1 / jnp.sqrt(v1 + eps)
    p["shift1"] = b1 - m1 * p["scale1"]

    # convs[1]: Conv2d(out, out, 3, bias=True) + ReLU (no norm)
    p["w2"] = nrm(ks[5], (3, 3, out_dims, out_dims))
    p["scale2"] = jnp.ones((out_dims,), jnp.float32)
    p["shift2"] = nrm(ks[6], (out_dims,))

    # img_convs[0]: Conv2d(3, out, 3, bias=False) + BN + ReLU
    p["iw1"] = nrm(ks[7], (3, 3, 3, out_dims))
    ig, ib = 1.0 + nrm(ks[8], (out_dims,)), nrm(ks[9], (out_dims,))
    im = nrm(ks[10], (out_dims,))
    iv = 1.0 + 0.1 * jnp.abs(jax.random.normal(ks[11], (out_dims,), jnp.float32))
    p["iscale1"] = ig / jnp.sqrt(iv + eps)
    p["ishift1"] = ib - im * p["iscale1"]

    # img_convs[1]: Conv2d(out, out, 3, bias=True) + ReLU (no norm)
    p["iw2"] = nrm(ks[12], (3, 3, out_dims, out_dims))
    p["iscale2"] = jnp.ones((out_dims,), jnp.float32)
    p["ishift2"] = nrm(ks[13], (out_dims,))
    return p


# ------------------------- pure-JAX reference (check) ----------------------- #

def bilinear_resize_nhwc(img, out_h, out_w):
    B, Hi, Wi, C = img.shape

    def coords(out_size, in_size):
        scale = in_size / out_size
        src = (jnp.arange(out_size, dtype=jnp.float32) + 0.5) * scale - 0.5
        src = jnp.clip(src, 0.0, float(in_size - 1))
        lo = jnp.floor(src).astype(jnp.int32)
        hi = jnp.minimum(lo + 1, in_size - 1)
        w = src - lo.astype(jnp.float32)
        return lo, hi, w

    y0, y1, wy = coords(out_h, Hi)
    x0, x1, wx = coords(out_w, Wi)
    wy = wy[None, :, None, None]
    rows = img[:, y0] * (1.0 - wy) + img[:, y1] * wy
    wx = wx[None, None, :, None]
    return rows[:, :, x0] * (1.0 - wx) + rows[:, :, x1] * wx


def reference_forward(params, x_nchw, img_nchw):
    x = jnp.transpose(x_nchw, (0, 2, 3, 1)).astype(jnp.float32)
    img = jnp.transpose(img_nchw, (0, 2, 3, 1)).astype(jnp.float32)

    def conv3x3(v, w, scale, shift):
        y = lax.conv_general_dilated(
            v, w, window_strides=(1, 1), padding="VALID",
            dimension_numbers=("NHWC", "HWIO", "NHWC"),
            precision=lax.Precision.HIGHEST)
        return jnp.maximum(y * scale + shift, 0.0)

    h = conv3x3(x, params["w1"], params["scale1"], params["shift1"])
    h = conv3x3(h, params["w2"], params["scale2"], params["shift2"])
    B, Hh, Wh, C = h.shape
    h = h.reshape(B, Hh // 2, 2, Wh // 2, 2, C).max(axis=(2, 4))

    Hp, Wp = h.shape[1], h.shape[2]
    ix = bilinear_resize_nhwc(img, Hp + 4, Wp + 4)
    ix = conv3x3(ix, params["iw1"], params["iscale1"], params["ishift1"])
    ix = conv3x3(ix, params["iw2"], params["iscale2"], params["ishift2"])
    out = jnp.concatenate([h, ix], axis=-1)
    return jnp.transpose(out, (0, 3, 1, 2))


# --------------------------------- main -------------------------------------- #

if __name__ == "__main__":
    key = jax.random.PRNGKey(0)
    kx, kimg, kp = jax.random.split(key, 3)

    in_dims, out_dims = 4, 8
    x = jax.random.normal(kx, (2, in_dims, 16, 16), jnp.float32)   # NCHW features
    img = jax.random.normal(kimg, (2, 3, 32, 32), jnp.float32)     # NCHW RGB image

    params = init_params(kp, in_dims, out_dims)

    fwd = jax.jit(functools.partial(down_block_forward, params))
    out = fwd(x, img)
    jax.block_until_ready(out)

    # x: 16 ->(3x3 valid) 14 ->(3x3 valid) 12 ->(pool) 6 ; img: 32 -> 10 -> 8 -> 6
    assert out.shape == (2, 2 * out_dims, 6, 6), out.shape
    assert out.dtype == jnp.float32

    ref = reference_forward(params, x, img)
    err = float(jnp.max(jnp.abs(out - ref)))
    assert err < 3e-2, f"max abs error vs f32 reference: {err}"

    print("KERNEL_OK")
</pallas_src>

<mosaic_0001>
module attributes {stable_mosaic.version = 11 : i64} {
  func.func @kernel(%arg0: i32, %arg1: memref<1x4x256xf32, #tpu.memory_space<vmem>>, %arg2: memref<1x3x1024xf32, #tpu.memory_space<vmem>>, %arg3: memref<9x8x4xbf16, #tpu.memory_space<vmem>>, %arg4: memref<8x1xf32, #tpu.memory_space<vmem>>, %arg5: memref<9x8x8xbf16, #tpu.memory_space<vmem>>, %arg6: memref<8x1xf32, #tpu.memory_space<vmem>>, %arg7: memref<9x8x3xbf16, #tpu.memory_space<vmem>>, %arg8: memref<8x1xf32, #tpu.memory_space<vmem>>, %arg9: memref<9x8x8xbf16, #tpu.memory_space<vmem>>, %arg10: memref<8x1xf32, #tpu.memory_space<vmem>>, %arg11: memref<1024x100xbf16, #tpu.memory_space<vmem>>, %arg12: memref<171x36xf32, #tpu.memory_space<vmem>>, %arg13: memref<56x36xf32, #tpu.memory_space<vmem>>, %arg14: memref<1x16x36xf32, #tpu.memory_space<vmem>>) attributes {dimension_semantics = [#tpu.dimension_semantics<parallel>], iteration_bounds = array<i64: 2>, scalar_prefetch = 0 : i64, scratch_operands = 0 : i64, tpu.core_type = #tpu.core_type<tc>, window_params = [{transform_indices = @transform_0, window_bounds = array<i64: 1, 4, 256>}, {transform_indices = @transform_1, window_bounds = array<i64: 1, 3, 1024>}, {pipeline_mode = #tpu.pipeline_mode<synchronous>, transform_indices = @transform_2, window_bounds = array<i64: 9, 8, 4>}, {pipeline_mode = #tpu.pipeline_mode<synchronous>, transform_indices = @transform_3, window_bounds = array<i64: 8, 1>}, {pipeline_mode = #tpu.pipeline_mode<synchronous>, transform_indices = @transform_4, window_bounds = array<i64: 9, 8, 8>}, {pipeline_mode = #tpu.pipeline_mode<synchronous>, transform_indices = @transform_5, window_bounds = array<i64: 8, 1>}, {pipeline_mode = #tpu.pipeline_mode<synchronous>, transform_indices = @transform_6, window_bounds = array<i64: 9, 8, 3>}, {pipeline_mode = #tpu.pipeline_mode<synchronous>, transform_indices = @transform_7, window_bounds = array<i64: 8, 1>}, {pipeline_mode = #tpu.pipeline_mode<synchronous>, transform_indices = @transform_8, window_bounds = array<i64: 9, 8, 8>}, {pipeline_mode = #tpu.pipeline_mode<synchronous>, transform_indices = @transform_9, window_bounds = array<i64: 8, 1>}, {pipeline_mode = #tpu.pipeline_mode<synchronous>, transform_indices = @transform_10, window_bounds = array<i64: 1024, 100>}, {pipeline_mode = #tpu.pipeline_mode<synchronous>, transform_indices = @transform_11, window_bounds = array<i64: 171, 36>}, {pipeline_mode = #tpu.pipeline_mode<synchronous>, transform_indices = @transform_12, window_bounds = array<i64: 56, 36>}, {transform_indices = @transform_13, window_bounds = array<i64: 1, 16, 36>}]} {
    %c0 = arith.constant 0 : index
    %c0_0 = arith.constant 0 : index
    %c0_1 = arith.constant 0 : index
    %0 = vector.load %arg1[%c0, %c0_0, %c0_1] : memref<1x4x256xf32, #tpu.memory_space<vmem>>, vector<1x4x256xf32>
    %1 = vector.shape_cast %0 : vector<1x4x256xf32> to vector<4x256xf32>
    %2 = vector.extract_strided_slice %1 {offsets = [0, 0], sizes = [4, 222], strides = [1, 1]} : vector<4x256xf32> to vector<4x222xf32>
    %3 = arith.truncf %2 : vector<4x222xf32> to vector<4x222xbf16>
    %c0_2 = arith.constant 0 : index
    %c0_3 = arith.constant 0 : index
    %c0_4 = arith.constant 0 : index
    %4 = vector.load %arg3[%c0_2, %c0_3, %c0_4] : memref<9x8x4xbf16, #tpu.memory_space<vmem>>, vector<1x8x4xbf16>
    %5 = vector.shape_cast %4 : vector<1x8x4xbf16> to vector<8x4xbf16>
    %cst = arith.constant dense<0.000000e+00> : vector<8x222xf32>
    %6 = tpu.matmul %5, %3, %cst {dimension_numbers = #tpu.dot_dimension_numbers<[1], [0], [0], [1], [0, 0, 1, 1], [], []>} : vector<8x4xbf16>, vector<4x222xbf16>, vector<8x222xf32> -> vector<8x222xf32>
    %7 = vector.extract_strided_slice %1 {offsets = [0, 1], sizes = [4, 222], strides = [1, 1]} : vector<4x256xf32> to vector<4x222xf32>
    %8 = arith.truncf %7 : vector<4x222xf32> to vector<4x222xbf16>
    %c1 = arith.constant 1 : index
    %c0_5 = arith.constant 0 : index
    %c0_6 = arith.constant 0 : index
    %9 = vector.load %arg3[%c1, %c0_5, %c0_6] : memref<9x8x4xbf16, #tpu.memory_space<vmem>>, vector<1x8x4xbf16>
    %10 = vector.shape_cast %9 : vector<1x8x4xbf16> to vector<8x4xbf16>
    %cst_7 = arith.constant dense<0.000000e+00> : vector<8x222xf32>
    %11 = tpu.matmul %10, %8, %cst_7 {dimension_numbers = #tpu.dot_dimension_numbers<[1], [0], [0], [1], [0, 0, 1, 1], [], []>} : vector<8x4xbf16>, vector<4x222xbf16>, vector<8x222xf32> -> vector<8x222xf32>
    %12 = arith.addf %6, %11 : vector<8x222xf32>
    %13 = vector.extract_strided_slice %1 {offsets = [0, 2], sizes = [4, 222], strides = [1, 1]} : vector<4x256xf32> to vector<4x222xf32>
    %14 = arith.truncf %13 : vector<4x222xf32> to vector<4x222xbf16>
    %c2 = arith.constant 2 : index
    %c0_8 = arith.constant 0 : index
    %c0_9 = arith.constant 0 : index
    %15 = vector.load %arg3[%c2, %c0_8, %c0_9] : memref<9x8x4xbf16, #tpu.memory_space<vmem>>, vector<1x8x4xbf16>
    %16 = vector.shape_cast %15 : vector<1x8x4xbf16> to vector<8x4xbf16>
    %cst_10 = arith.constant dense<0.000000e+00> : vector<8x222xf32>
    %17 = tpu.matmul %16, %14, %cst_10 {dimension_numbers = #tpu.dot_dimension_numbers<[1], [0], [0], [1], [0, 0, 1, 1], [], []>} : vector<8x4xbf16>, vector<4x222xbf16>, vector<8x222xf32> -> vector<8x222xf32>
    %18 = arith.addf %12, %17 : vector<8x222xf32>
    %19 = vector.extract_strided_slice %1 {offsets = [0, 16], sizes = [4, 222], strides = [1, 1]} : vector<4x256xf32> to vector<4x222xf32>
    %20 = arith.truncf %19 : vector<4x222xf32> to vector<4x222xbf16>
    %c3 = arith.constant 3 : index
    %c0_11 = arith.constant 0 : index
    %c0_12 = arith.constant 0 : index
    %21 = vector.load %arg3[%c3, %c0_11, %c0_12] : memref<9x8x4xbf16, #tpu.memory_space<vmem>>, vector<1x8x4xbf16>
    %22 = vector.shape_cast %21 : vector<1x8x4xbf16> to vector<8x4xbf16>
    %cst_13 = arith.constant dense<0.000000e+00> : vector<8x222xf32>
    %23 = tpu.matmul %22, %20, %cst_13 {dimension_numbers = #tpu.dot_dimension_numbers<[1], [0], [0], [1], [0, 0, 1, 1], [], []>} : vector<8x4xbf16>, vector<4x222xbf16>, vector<8x222xf32> -> vector<8x222xf32>
    %24 = arith.addf %18, %23 : vector<8x222xf32>
    %25 = vector.extract_strided_slice %1 {offsets = [0, 17], sizes = [4, 222], strides = [1, 1]} : vector<4x256xf32> to vector<4x222xf32>
    %26 = arith.truncf %25 : vector<4x222xf32> to vector<4x222xbf16>
    %c4 = arith.constant 4 : index
    %c0_14 = arith.constant 0 : index
    %c0_15 = arith.constant 0 : index
    %27 = vector.load %arg3[%c4, %c0_14, %c0_15] : memref<9x8x4xbf16, #tpu.memory_space<vmem>>, vector<1x8x4xbf16>
    %28 = vector.shape_cast %27 : vector<1x8x4xbf16> to vector<8x4xbf16>
    %cst_16 = arith.constant dense<0.000000e+00> : vector<8x222xf32>
    %29 = tpu.matmul %28, %26, %cst_16 {dimension_numbers = #tpu.dot_dimension_numbers<[1], [0], [0], [1], [0, 0, 1, 1], [], []>} : vector<8x4xbf16>, vector<4x222xbf16>, vector<8x222xf32> -> vector<8x222xf32>
    %30 = arith.addf %24, %29 : vector<8x222xf32>
    %31 = vector.extract_strided_slice %1 {offsets = [0, 18], sizes = [4, 222], strides = [1, 1]} : vector<4x256xf32> to vector<4x222xf32>
    %32 = arith.truncf %31 : vector<4x222xf32> to vector<4x222xbf16>
    %c5 = arith.constant 5 : index
    %c0_17 = arith.constant 0 : index
    %c0_18 = arith.constant 0 : index
    %33 = vector.load %arg3[%c5, %c0_17, %c0_18] : memref<9x8x4xbf16, #tpu.memory_space<vmem>>, vector<1x8x4xbf16>
    %34 = vector.shape_cast %33 : vector<1x8x4xbf16> to vector<8x4xbf16>
    %cst_19 = arith.constant dense<0.000000e+00> : vector<8x222xf32>
    %35 = tpu.matmul %34, %32, %cst_19 {dimension_numbers = #tpu.dot_dimension_numbers<[1], [0], [0], [1], [0, 0, 1, 1], [], []>} : vector<8x4xbf16>, vector<4x222xbf16>, vector<8x222xf32> -> vector<8x222xf32>
    %36 = arith.addf %30, %35 : vector<8x222xf32>
    %37 = vector.extract_strided_slice %1 {offsets = [0, 32], sizes = [4, 222], strides = [1, 1]} : vector<4x256xf32> to vector<4x222xf32>
    %38 = arith.truncf %37 : vector<4x222xf32> to vector<4x222xbf16>
    %c6 = arith.constant 6 : index
    %c0_20 = arith.constant 0 : index
    %c0_21 = arith.constant 0 : index
    %39 = vector.load %arg3[%c6, %c0_20, %c0_21] : memref<9x8x4xbf16, #tpu.memory_space<vmem>>, vector<1x8x4xbf16>
    %40 = vector.shape_cast %39 : vector<1x8x4xbf16> to vector<8x4xbf16>
    %cst_22 = arith.constant dense<0.000000e+00> : vector<8x222xf32>
    %41 = tpu.matmul %40, %38, %cst_22 {dimension_numbers = #tpu.dot_dimension_numbers<[1], [0], [0], [1], [0, 0, 1, 1], [], []>} : vector<8x4xbf16>, vector<4x222xbf16>, vector<8x222xf32> -> vector<8x222xf32>
    %42 = arith.addf %36, %41 : vector<8x222xf32>
    %43 = vector.extract_strided_slice %1 {offsets = [0, 33], sizes = [4, 222], strides = [1, 1]} : vector<4x256xf32> to vector<4x222xf32>
    %44 = arith.truncf %43 : vector<4x222xf32> to vector<4x222xbf16>
    %c7 = arith.constant 7 : index
    %c0_23 = arith.constant 0 : index
    %c0_24 = arith.constant 0 : index
    %45 = vector.load %arg3[%c7, %c0_23, %c0_24] : memref<9x8x4xbf16, #tpu.memory_space<vmem>>, vector<1x8x4xbf16>
    %46 = vector.shape_cast %45 : vector<1x8x4xbf16> to vector<8x4xbf16>
    %cst_25 = arith.constant dense<0.000000e+00> : vector<8x222xf32>
    %47 = tpu.matmul %46, %44, %cst_25 {dimension_numbers = #tpu.dot_dimension_numbers<[1], [0], [0], [1], [0, 0, 1, 1], [], []>} : vector<8x4xbf16>, vector<4x222xbf16>, vector<8x222xf32> -> vector<8x222xf32>
    %48 = arith.addf %42, %47 : vector<8x222xf32>
    %49 = vector.extract_strided_slice %1 {offsets = [0, 34], sizes = [4, 222], strides = [1, 1]} : vector<4x256xf32> to vector<4x222xf32>
    %50 = arith.truncf %49 : vector<4x222xf32> to vector<4x222xbf16>
    %c8 = arith.constant 8 : index
    %c0_26 = arith.constant 0 : index
    %c0_27 = arith.constant 0 : index
    %51 = vector.load %arg3[%c8, %c0_26, %c0_27] : memref<9x8x4xbf16, #tpu.memory_space<vmem>>, vector<1x8x4xbf16>
    %52 = vector.shape_cast %51 : vector<1x8x4xbf16> to vector<8x4xbf16>
    %cst_28 = arith.constant dense<0.000000e+00> : vector<8x222xf32>
    %53 = tpu.matmul %52, %50, %cst_28 {dimension_numbers = #tpu.dot_dimension_numbers<[1], [0], [0], [1], [0, 0, 1, 1], [], []>} : vector<8x4xbf16>, vector<4x222xbf16>, vector<8x222xf32> -> vector<8x222xf32>
    %54 = arith.addf %48, %53 : vector<8x222xf32>
    %c0_29 = arith.constant 0 : index
    %c0_30 = arith.constant 0 : index
    %55 = vector.load %arg4[%c0_29, %c0_30] : memref<8x1xf32, #tpu.memory_space<vmem>>, vector<8x1xf32>
    %56 = vector.broadcast %55 : vector<8x1xf32> to vector<8x222xf32>
    %57 = arith.addf %54, %56 : vector<8x222xf32>
    %cst_31 = arith.constant 0.000000e+00 : f32
    %58 = vector.broadcast %cst_31 : f32 to vector<8x222xf32>
    %59 = arith.maximumf %57, %58 : vector<8x222xf32>
    %60 = vector.extract_strided_slice %59 {offsets = [0, 0], sizes = [8, 188], strides = [1, 1]} : vector<8x222xf32> to vector<8x188xf32>
    %61 = arith.truncf %60 : vector<8x188xf32> to vector<8x188xbf16>
    %c0_32 = arith.constant 0 : index
    %c0_33 = arith.constant 0 : index
    %c0_34 = arith.constant 0 : index
    %62 = vector.load %arg5[%c0_32, %c0_33, %c0_34] : memref<9x8x8xbf16, #tpu.memory_space<vmem>>, vector<1x8x8xbf16>
    %63 = vector.shape_cast %62 : vector<1x8x8xbf16> to vector<8x8xbf16>
    %cst_35 = arith.constant dense<0.000000e+00> : vector<8x188xf32>
    %64 = tpu.matmul %63, %61, %cst_35 {dimension_numbers = #tpu.dot_dimension_numbers<[1], [0], [0], [1], [0, 0, 1, 1], [], []>} : vector<8x8xbf16>, vector<8x188xbf16>, vector<8x188xf32> -> vector<8x188xf32>
    %65 = vector.extract_strided_slice %59 {offsets = [0, 1], sizes = [8, 188], strides = [1, 1]} : vector<8x222xf32> to vector<8x188xf32>
    %66 = arith.truncf %65 : vector<8x188xf32> to vector<8x188xbf16>
    %c1_36 = arith.constant 1 : index
    %c0_37 = arith.constant 0 : index
    %c0_38 = arith.constant 0 : index
    %67 = vector.load %arg5[%c1_36, %c0_37, %c0_38] : memref<9x8x8xbf16, #tpu.memory_space<vmem>>, vector<1x8x8xbf16>
    %68 = vector.shape_cast %67 : vector<1x8x8xbf16> to vector<8x8xbf16>
    %cst_39 = arith.constant dense<0.000000e+00> : vector<8x188xf32>
    %69 = tpu.matmul %68, %66, %cst_39 {dimension_numbers = #tpu.dot_dimension_numbers<[1], [0], [0], [1], [0, 0, 1, 1], [], []>} : vector<8x8xbf16>, vector<8x188xbf16>, vector<8x188xf32> -> vector<8x188xf32>
    %70 = arith.addf %64, %69 : vector<8x188xf32>
    %71 = vector.extract_strided_slice %59 {offsets = [0, 2], sizes = [8, 188], strides = [1, 1]} : vector<8x222xf32> to vector<8x188xf32>
    %72 = arith.truncf %71 : vector<8x188xf32> to vector<8x188xbf16>
    %c2_40 = arith.constant 2 : index
    %c0_41 = arith.constant 0 : index
    %c0_42 = arith.constant 0 : index
    %73 = vector.load %arg5[%c2_40, %c0_41, %c0_42] : memref<9x8x8xbf16, #tpu.memory_space<vmem>>, vector<1x8x8xbf16>
    %74 = vector.shape_cast %73 : vector<1x8x8xbf16> to vector<8x8xbf16>
    %cst_43 = arith.constant dense<0.000000e+00> : vector<8x188xf32>
    %75 = tpu.matmul %74, %72, %cst_43 {dimension_numbers = #tpu.dot_dimension_numbers<[1], [0], [0], [1], [0, 0, 1, 1], [], []>} : vector<8x8xbf16>, vector<8x188xbf16>, vector<8x188xf32> -> vector<8x188xf32>
    %76 = arith.addf %70, %75 : vector<8x188xf32>
    %77 = vector.extract_strided_slice %59 {offsets = [0, 16], sizes = [8, 188], strides = [1, 1]} : vector<8x222xf32> to vector<8x188xf32>
    %78 = arith.truncf %77 : vector<8x188xf32> to vector<8x188xbf16>
    %c3_44 = arith.constant 3 : index
    %c0_45 = arith.constant 0 : index
    %c0_46 = arith.constant 0 : index
    %79 = vector.load %arg5[%c3_44, %c0_45, %c0_46] : memref<9x8x8xbf16, #tpu.memory_space<vmem>>, vector<1x8x8xbf16>
    %80 = vector.shape_cast %79 : vector<1x8x8xbf16> to vector<8x8xbf16>
    %cst_47 = arith.constant dense<0.000000e+00> : vector<8x188xf32>
    %81 = tpu.matmul %80, %78, %cst_47 {dimension_numbers = #tpu.dot_dimension_numbers<[1], [0], [0], [1], [0, 0, 1, 1], [], []>} : vector<8x8xbf16>, vector<8x188xbf16>, vector<8x188xf32> -> vector<8x188xf32>
    %82 = arith.addf %76, %81 : vector<8x188xf32>
    %83 = vector.extract_strided_slice %59 {offsets = [0, 17], sizes = [8, 188], strides = [1, 1]} : vector<8x222xf32> to vector<8x188xf32>
    %84 = arith.truncf %83 : vector<8x188xf32> to vector<8x188xbf16>
    %c4_48 = arith.constant 4 : index
    %c0_49 = arith.constant 0 : index
    %c0_50 = arith.constant 0 : index
    %85 = vector.load %arg5[%c4_48, %c0_49, %c0_50] : memref<9x8x8xbf16, #tpu.memory_space<vmem>>, vector<1x8x8xbf16>
    %86 = vector.shape_cast %85 : vector<1x8x8xbf16> to vector<8x8xbf16>
    %cst_51 = arith.constant dense<0.000000e+00> : vector<8x188xf32>
    %87 = tpu.matmul %86, %84, %cst_51 {dimension_numbers = #tpu.dot_dimension_numbers<[1], [0], [0], [1], [0, 0, 1, 1], [], []>} : vector<8x8xbf16>, vector<8x188xbf16>, vector<8x188xf32> -> vector<8x188xf32>
    %88 = arith.addf %82, %87 : vector<8x188xf32>
    %89 = vector.extract_strided_slice %59 {offsets = [0, 18], sizes = [8, 188], strides = [1, 1]} : vector<8x222xf32> to vector<8x188xf32>
    %90 = arith.truncf %89 : vector<8x188xf32> to vector<8x188xbf16>
    %c5_52 = arith.constant 5 : index
    %c0_53 = arith.constant 0 : index
    %c0_54 = arith.constant 0 : index
    %91 = vector.load %arg5[%c5_52, %c0_53, %c0_54] : memref<9x8x8xbf16, #tpu.memory_space<vmem>>, vector<1x8x8xbf16>
    %92 = vector.shape_cast %91 : vector<1x8x8xbf16> to vector<8x8xbf16>
    %cst_55 = arith.constant dense<0.000000e+00> : vector<8x188xf32>
    %93 = tpu.matmul %92, %90, %cst_55 {dimension_numbers = #tpu.dot_dimension_numbers<[1], [0], [0], [1], [0, 0, 1, 1], [], []>} : vector<8x8xbf16>, vector<8x188xbf16>, vector<8x188xf32> -> vector<8x188xf32>
    %94 = arith.addf %88, %93 : vector<8x188xf32>
    %95 = vector.extract_strided_slice %59 {offsets = [0, 32], sizes = [8, 188], strides = [1, 1]} : vector<8x222xf32> to vector<8x188xf32>
    %96 = arith.truncf %95 : vector<8x188xf32> to vector<8x188xbf16>
    %c6_56 = arith.constant 6 : index
    %c0_57 = arith.constant 0 : index
    %c0_58 = arith.constant 0 : index
    %97 = vector.load %arg5[%c6_56, %c0_57, %c0_58] : memref<9x8x8xbf16, #tpu.memory_space<vmem>>, vector<1x8x8xbf16>
    %98 = vector.shape_cast %97 : vector<1x8x8xbf16> to vector<8x8xbf16>
    %cst_59 = arith.constant dense<0.000000e+00> : vector<8x188xf32>
    %99 = tpu.matmul %98, %96, %cst_59 {dimension_numbers = #tpu.dot_dimension_numbers<[1], [0], [0], [1], [0, 0, 1, 1], [], []>} : vector<8x8xbf16>, vector<8x188xbf16>, vector<8x188xf32> -> vector<8x188xf32>
    %100 = arith.addf %94, %99 : vector<8x188xf32>
    %101 = vector.extract_strided_slice %59 {offsets = [0, 33], sizes = [8, 188], strides = [1, 1]} : vector<8x222xf32> to vector<8x188xf32>
    %102 = arith.truncf %101 : vector<8x188xf32> to vector<8x188xbf16>
    %c7_60 = arith.constant 7 : index
    %c0_61 = arith.constant 0 : index
    %c0_62 = arith.constant 0 : index
    %103 = vector.load %arg5[%c7_60, %c0_61, %c0_62] : memref<9x8x8xbf16, #tpu.memory_space<vmem>>, vector<1x8x8xbf16>
    %104 = vector.shape_cast %103 : vector<1x8x8xbf16> to vector<8x8xbf16>
    %cst_63 = arith.constant dense<0.000000e+00> : vector<8x188xf32>
    %105 = tpu.matmul %104, %102, %cst_63 {dimension_numbers = #tpu.dot_dimension_numbers<[1], [0], [0], [1], [0, 0, 1, 1], [], []>} : vector<8x8xbf16>, vector<8x188xbf16>, vector<8x188xf32> -> vector<8x188xf32>
    %106 = arith.addf %100, %105 : vector<8x188xf32>
    %107 = vector.extract_strided_slice %59 {offsets = [0, 34], sizes = [8, 188], strides = [1, 1]} : vector<8x222xf32> to vector<8x188xf32>
    %108 = arith.truncf %107 : vector<8x188xf32> to vector<8x188xbf16>
    %c8_64 = arith.constant 8 : index
    %c0_65 = arith.constant 0 : index
    %c0_66 = arith.constant 0 : index
    %109 = vector.load %arg5[%c8_64, %c0_65, %c0_66] : memref<9x8x8xbf16, #tpu.memory_space<vmem>>, vector<1x8x8xbf16>
    %110 = vector.shape_cast %109 : vector<1x8x8xbf16> to vector<8x8xbf16>
    %cst_67 = arith.constant dense<0.000000e+00> : vector<8x188xf32>
    %111 = tpu.matmul %110, %108, %cst_67 {dimension_numbers = #tpu.dot_dimension_numbers<[1], [0], [0], [1], [0, 0, 1, 1], [], []>} : vector<8x8xbf16>, vector<8x188xbf16>, vector<8x188xf32> -> vector<8x188xf32>
    %112 = arith.addf %106, %111 : vector<8x188xf32>
    %c0_68 = arith.constant 0 : index
    %c0_69 = arith.constant 0 : index
    %113 = vector.load %arg6[%c0_68, %c0_69] : memref<8x1xf32, #tpu.memory_space<vmem>>, vector<8x1xf32>
    %114 = vector.broadcast %113 : vector<8x1xf32> to vector<8x188xf32>
    %115 = arith.addf %112, %114 : vector<8x188xf32>
    %cst_70 = arith.constant 0.000000e+00 : f32
    %116 = vector.broadcast %cst_70 : f32 to vector<8x188xf32>
    %117 = arith.maximumf %115, %116 : vector<8x188xf32>
    %118 = vector.extract_strided_slice %117 {offsets = [0, 0], sizes = [8, 171], strides = [1, 1]} : vector<8x188xf32> to vector<8x171xf32>
    %119 = vector.extract_strided_slice %117 {offsets = [0, 1], sizes = [8, 171], strides = [1, 1]} : vector<8x188xf32> to vector<8x171xf32>
    %120 = arith.maximumf %118, %119 : vector<8x171xf32>
    %121 = vector.extract_strided_slice %117 {offsets = [0, 16], sizes = [8, 171], strides = [1, 1]} : vector<8x188xf32> to vector<8x171xf32>
    %122 = vector.extract_strided_slice %117 {offsets = [0, 17], sizes = [8, 171], strides = [1, 1]} : vector<8x188xf32> to vector<8x171xf32>
    %123 = arith.maximumf %121, %122 : vector<8x171xf32>
    %124 = arith.maximumf %120, %123 : vector<8x171xf32>
    %c0_71 = arith.constant 0 : index
    %c0_72 = arith.constant 0 : index
    %125 = vector.load %arg12[%c0_71, %c0_72] : memref<171x36xf32, #tpu.memory_space<vmem>>, vector<171x36xf32>
    %cst_73 = arith.constant dense<0.000000e+00> : vector<8x36xf32>
    %126 = tpu.matmul %124, %125, %cst_73 {dimension_numbers = #tpu.dot_dimension_numbers<[1], [0], [0], [1], [0, 0, 1, 1], [], []>} : vector<8x171xf32>, vector<171x36xf32>, vector<8x36xf32> -> vector<8x36xf32>
    %c0_74 = arith.constant 0 : index
    %c0_75 = arith.constant 0 : index
    %c0_76 = arith.constant 0 : index
    %127 = vector.load %arg2[%c0_74, %c0_75, %c0_76] : memref<1x3x1024xf32, #tpu.memory_space<vmem>>, vector<1x3x1024xf32>
    %128 = vector.shape_cast %127 : vector<1x3x1024xf32> to vector<3x1024xf32>
    %129 = arith.truncf %128 : vector<3x1024xf32> to vector<3x1024xbf16>
    %c0_77 = arith.constant 0 : index
    %c0_78 = arith.constant 0 : index
    %130 = vector.load %arg11[%c0_77, %c0_78] : memref<1024x100xbf16, #tpu.memory_space<vmem>>, vector<1024x100xbf16>
    %cst_79 = arith.constant dense<0.000000e+00> : vector<3x100xf32>
    %131 = tpu.matmul %129, %130, %cst_79 {dimension_numbers = #tpu.dot_dimension_numbers<[1], [0], [0], [1], [0, 0, 1, 1], [], []>} : vector<3x1024xbf16>, vector<1024x100xbf16>, vector<3x100xf32> -> vector<3x100xf32>
    %132 = vector.extract_strided_slice %131 {offsets = [0, 0], sizes = [3, 78], strides = [1, 1]} : vector<3x100xf32> to vector<3x78xf32>
    %133 = arith.truncf %132 : vector<3x78xf32> to vector<3x78xbf16>
    %c0_80 = arith.constant 0 : index
    %c0_81 = arith.constant 0 : index
    %c0_82 = arith.constant 0 : index
    %134 = vector.load %arg7[%c0_80, %c0_81, %c0_82] : memref<9x8x3xbf16, #tpu.memory_space<vmem>>, vector<1x8x3xbf16>
    %135 = vector.shape_cast %134 : vector<1x8x3xbf16> to vector<8x3xbf16>
    %cst_83 = arith.constant dense<0.000000e+00> : vector<8x78xf32>
    %136 = tpu.matmul %135, %133, %cst_83 {dimension_numbers = #tpu.dot_dimension_numbers<[1], [0], [0], [1], [0, 0, 1, 1], [], []>} : vector<8x3xbf16>, vector<3x78xbf16>, vector<8x78xf32> -> vector<8x78xf32>
    %137 = vector.extract_strided_slice %131 {offsets = [0, 1], sizes = [3, 78], strides = [1, 1]} : vector<3x100xf32> to vector<3x78xf32>
    %138 = arith.truncf %137 : vector<3x78xf32> to vector<3x78xbf16>
    %c1_84 = arith.constant 1 : index
    %c0_85 = arith.constant 0 : index
    %c0_86 = arith.constant 0 : index
    %139 = vector.load %arg7[%c1_84, %c0_85, %c0_86] : memref<9x8x3xbf16, #tpu.memory_space<vmem>>, vector<1x8x3xbf16>
    %140 = vector.shape_cast %139 : vector<1x8x3xbf16> to vector<8x3xbf16>
    %cst_87 = arith.constant dense<0.000000e+00> : vector<8x78xf32>
    %141 = tpu.matmul %140, %138, %cst_87 {dimension_numbers = #tpu.dot_dimension_numbers<[1], [0], [0], [1], [0, 0, 1, 1], [], []>} : vector<8x3xbf16>, vector<3x78xbf16>, vector<8x78xf32> -> vector<8x78xf32>
    %142 = arith.addf %136, %141 : vector<8x78xf32>
    %143 = vector.extract_strided_slice %131 {offsets = [0, 2], sizes = [3, 78], strides = [1, 1]} : vector<3x100xf32> to vector<3x78xf32>
    %144 = arith.truncf %143 : vector<3x78xf32> to vector<3x78xbf16>
    %c2_88 = arith.constant 2 : index
    %c0_89 = arith.constant 0 : index
    %c0_90 = arith.constant 0 : index
    %145 = vector.load %arg7[%c2_88, %c0_89, %c0_90] : memref<9x8x3xbf16, #tpu.memory_space<vmem>>, vector<1x8x3xbf16>
    %146 = vector.shape_cast %145 : vector<1x8x3xbf16> to vector<8x3xbf16>
    %cst_91 = arith.constant dense<0.000000e+00> : vector<8x78xf32>
    %147 = tpu.matmul %146, %144, %cst_91 {dimension_numbers = #tpu.dot_dimension_numbers<[1], [0], [0], [1], [0, 0, 1, 1], [], []>} : vector<8x3xbf16>, vector<3x78xbf16>, vector<8x78xf32> -> vector<8x78xf32>
    %148 = arith.addf %142, %147 : vector<8x78xf32>
    %149 = vector.extract_strided_slice %131 {offsets = [0, 10], sizes = [3, 78], strides = [1, 1]} : vector<3x100xf32> to vector<3x78xf32>
    %150 = arith.truncf %149 : vector<3x78xf32> to vector<3x78xbf16>
    %c3_92 = arith.constant 3 : index
    %c0_93 = arith.constant 0 : index
    %c0_94 = arith.constant 0 : index
    %151 = vector.load %arg7[%c3_92, %c0_93, %c0_94] : memref<9x8x3xbf16, #tpu.memory_space<vmem>>, vector<1x8x3xbf16>
    %152 = vector.shape_cast %151 : vector<1x8x3xbf16> to vector<8x3xbf16>
    %cst_95 = arith.constant dense<0.000000e+00> : vector<8x78xf32>
    %153 = tpu.matmul %152, %150, %cst_95 {dimension_numbers = #tpu.dot_dimension_numbers<[1], [0], [0], [1], [0, 0, 1, 1], [], []>} : vector<8x3xbf16>, vector<3x78xbf16>, vector<8x78xf32> -> vector<8x78xf32>
    %154 = arith.addf %148, %153 : vector<8x78xf32>
    %155 = vector.extract_strided_slice %131 {offsets = [0, 11], sizes = [3, 78], strides = [1, 1]} : vector<3x100xf32> to vector<3x78xf32>
    %156 = arith.truncf %155 : vector<3x78xf32> to vector<3x78xbf16>
    %c4_96 = arith.constant 4 : index
    %c0_97 = arith.constant 0 : index
    %c0_98 = arith.constant 0 : index
    %157 = vector.load %arg7[%c4_96, %c0_97, %c0_98] : memref<9x8x3xbf16, #tpu.memory_space<vmem>>, vector<1x8x3xbf16>
    %158 = vector.shape_cast %157 : vector<1x8x3xbf16> to vector<8x3xbf16>
    %cst_99 = arith.constant dense<0.000000e+00> : vector<8x78xf32>
    %159 = tpu.matmul %158, %156, %cst_99 {dimension_numbers = #tpu.dot_dimension_numbers<[1], [0], [0], [1], [0, 0, 1, 1], [], []>} : vector<8x3xbf16>, vector<3x78xbf16>, vector<8x78xf32> -> vector<8x78xf32>
    %160 = arith.addf %154, %159 : vector<8x78xf32>
    %161 = vector.extract_strided_slice %131 {offsets = [0, 12], sizes = [3, 78], strides = [1, 1]} : vector<3x100xf32> to vector<3x78xf32>
    %162 = arith.truncf %161 : vector<3x78xf32> to vector<3x78xbf16>
    %c5_100 = arith.constant 5 : index
    %c0_101 = arith.constant 0 : index
    %c0_102 = arith.constant 0 : index
    %163 = vector.load %arg7[%c5_100, %c0_101, %c0_102] : memref<9x8x3xbf16, #tpu.memory_space<vmem>>, vector<1x8x3xbf16>
    %164 = vector.shape_cast %163 : vector<1x8x3xbf16> to vector<8x3xbf16>
    %cst_103 = arith.constant dense<0.000000e+00> : vector<8x78xf32>
    %165 = tpu.matmul %164, %162, %cst_103 {dimension_numbers = #tpu.dot_dimension_numbers<[1], [0], [0], [1], [0, 0, 1, 1], [], []>} : vector<8x3xbf16>, vector<3x78xbf16>, vector<8x78xf32> -> vector<8x78xf32>
    %166 = arith.addf %160, %165 : vector<8x78xf32>
    %167 = vector.extract_strided_slice %131 {offsets = [0, 20], sizes = [3, 78], strides = [1, 1]} : vector<3x100xf32> to vector<3x78xf32>
    %168 = arith.truncf %167 : vector<3x78xf32> to vector<3x78xbf16>
    %c6_104 = arith.constant 6 : index
    %c0_105 = arith.constant 0 : index
    %c0_106 = arith.constant 0 : index
    %169 = vector.load %arg7[%c6_104, %c0_105, %c0_106] : memref<9x8x3xbf16, #tpu.memory_space<vmem>>, vector<1x8x3xbf16>
    %170 = vector.shape_cast %169 : vector<1x8x3xbf16> to vector<8x3xbf16>
    %cst_107 = arith.constant dense<0.000000e+00> : vector<8x78xf32>
    %171 = tpu.matmul %170, %168, %cst_107 {dimension_numbers = #tpu.dot_dimension_numbers<[1], [0], [0], [1], [0, 0, 1, 1], [], []>} : vector<8x3xbf16>, vector<3x78xbf16>, vector<8x78xf32> -> vector<8x78xf32>
    %172 = arith.addf %166, %171 : vector<8x78xf32>
    %173 = vector.extract_strided_slice %131 {offsets = [0, 21], sizes = [3, 78], strides = [1, 1]} : vector<3x100xf32> to vector<3x78xf32>
    %174 = arith.truncf %173 : vector<3x78xf32> to vector<3x78xbf16>
    %c7_108 = arith.constant 7 : index
    %c0_109 = arith.constant 0 : index
    %c0_110 = arith.constant 0 : index
    %175 = vector.load %arg7[%c7_108, %c0_109, %c0_110] : memref<9x8x3xbf16, #tpu.memory_space<vmem>>, vector<1x8x3xbf16>
    %176 = vector.shape_cast %175 : vector<1x8x3xbf16> to vector<8x3xbf16>
    %cst_111 = arith.constant dense<0.000000e+00> : vector<8x78xf32>
    %177 = tpu.matmul %176, %174, %cst_111 {dimension_numbers = #tpu.dot_dimension_numbers<[1], [0], [0], [1], [0, 0, 1, 1], [], []>} : vector<8x3xbf16>, vector<3x78xbf16>, vector<8x78xf32> -> vector<8x78xf32>
    %178 = arith.addf %172, %177 : vector<8x78xf32>
    %179 = vector.extract_strided_slice %131 {offsets = [0, 22], sizes = [3, 78], strides = [1, 1]} : vector<3x100xf32> to vector<3x78xf32>
    %180 = arith.truncf %179 : vector<3x78xf32> to vector<3x78xbf16>
    %c8_112 = arith.constant 8 : index
    %c0_113 = arith.constant 0 : index
    %c0_114 = arith.constant 0 : index
    %181 = vector.load %arg7[%c8_112, %c0_113, %c0_114] : memref<9x8x3xbf16, #tpu.memory_space<vmem>>, vector<1x8x3xbf16>
    %182 = vector.shape_cast %181 : vector<1x8x3xbf16> to vector<8x3xbf16>
    %cst_115 = arith.constant dense<0.000000e+00> : vector<8x78xf32>
    %183 = tpu.matmul %182, %180, %cst_115 {dimension_numbers = #tpu.dot_dimension_numbers<[1], [0], [0], [1], [0, 0, 1, 1], [], []>} : vector<8x3xbf16>, vector<3x78xbf16>, vector<8x78xf32> -> vector<8x78xf32>
    %184 = arith.addf %178, %183 : vector<8x78xf32>
    %c0_116 = arith.constant 0 : index
    %c0_117 = arith.constant 0 : index
    %185 = vector.load %arg8[%c0_116, %c0_117] : memref<8x1xf32, #tpu.memory_space<vmem>>, vector<8x1xf32>
    %186 = vector.broadcast %185 : vector<8x1xf32> to vector<8x78xf32>
    %187 = arith.addf %184, %186 : vector<8x78xf32>
    %cst_118 = arith.constant 0.000000e+00 : f32
    %188 = vector.broadcast %cst_118 : f32 to vector<8x78xf32>
    %189 = arith.maximumf %187, %188 : vector<8x78xf32>
    %190 = vector.extract_strided_slice %189 {offsets = [0, 0], sizes = [8, 56], strides = [1, 1]} : vector<8x78xf32> to vector<8x56xf32>
    %191 = arith.truncf %190 : vector<8x56xf32> to vector<8x56xbf16>
    %c0_119 = arith.constant 0 : index
    %c0_120 = arith.constant 0 : index
    %c0_121 = arith.constant 0 : index
    %192 = vector.load %arg9[%c0_119, %c0_120, %c0_121] : memref<9x8x8xbf16, #tpu.memory_space<vmem>>, vector<1x8x8xbf16>
    %193 = vector.shape_cast %192 : vector<1x8x8xbf16> to vector<8x8xbf16>
    %cst_122 = arith.constant dense<0.000000e+00> : vector<8x56xf32>
    %194 = tpu.matmul %193, %191, %cst_122 {dimension_numbers = #tpu.dot_dimension_numbers<[1], [0], [0], [1], [0, 0, 1, 1], [], []>} : vector<8x8xbf16>, vector<8x56xbf16>, vector<8x56xf32> -> vector<8x56xf32>
    %195 = vector.extract_strided_slice %189 {offsets = [0, 1], sizes = [8, 56], strides = [1, 1]} : vector<8x78xf32> to vector<8x56xf32>
    %196 = arith.truncf %195 : vector<8x56xf32> to vector<8x56xbf16>
    %c1_123 = arith.constant 1 : index
    %c0_124 = arith.constant 0 : index
    %c0_125 = arith.constant 0 : index
    %197 = vector.load %arg9[%c1_123, %c0_124, %c0_125] : memref<9x8x8xbf16, #tpu.memory_space<vmem>>, vector<1x8x8xbf16>
    %198 = vector.shape_cast %197 : vector<1x8x8xbf16> to vector<8x8xbf16>
    %cst_126 = arith.constant dense<0.000000e+00> : vector<8x56xf32>
    %199 = tpu.matmul %198, %196, %cst_126 {dimension_numbers = #tpu.dot_dimension_numbers<[1], [0], [0], [1], [0, 0, 1, 1], [], []>} : vector<8x8xbf16>, vector<8x56xbf16>, vector<8x56xf32> -> vector<8x56xf32>
    %200 = arith.addf %194, %199 : vector<8x56xf32>
    %201 = vector.extract_strided_slice %189 {offsets = [0, 2], sizes = [8, 56], strides = [1, 1]} : vector<8x78xf32> to vector<8x56xf32>
    %202 = arith.truncf %201 : vector<8x56xf32> to vector<8x56xbf16>
    %c2_127 = arith.constant 2 : index
    %c0_128 = arith.constant 0 : index
    %c0_129 = arith.constant 0 : index
    %203 = vector.load %arg9[%c2_127, %c0_128, %c0_129] : memref<9x8x8xbf16, #tpu.memory_space<vmem>>, vector<1x8x8xbf16>
    %204 = vector.shape_cast %203 : vector<1x8x8xbf16> to vector<8x8xbf16>
    %cst_130 = arith.constant dense<0.000000e+00> : vector<8x56xf32>
    %205 = tpu.matmul %204, %202, %cst_130 {dimension_numbers = #tpu.dot_dimension_numbers<[1], [0], [0], [1], [0, 0, 1, 1], [], []>} : vector<8x8xbf16>, vector<8x56xbf16>, vector<8x56xf32> -> vector<8x56xf32>
    %206 = arith.addf %200, %205 : vector<8x56xf32>
    %207 = vector.extract_strided_slice %189 {offsets = [0, 10], sizes = [8, 56], strides = [1, 1]} : vector<8x78xf32> to vector<8x56xf32>
    %208 = arith.truncf %207 : vector<8x56xf32> to vector<8x56xbf16>
    %c3_131 = arith.constant 3 : index
    %c0_132 = arith.constant 0 : index
    %c0_133 = arith.constant 0 : index
    %209 = vector.load %arg9[%c3_131, %c0_132, %c0_133] : memref<9x8x8xbf16, #tpu.memory_space<vmem>>, vector<1x8x8xbf16>
    %210 = vector.shape_cast %209 : vector<1x8x8xbf16> to vector<8x8xbf16>
    %cst_134 = arith.constant dense<0.000000e+00> : vector<8x56xf32>
    %211 = tpu.matmul %210, %208, %cst_134 {dimension_numbers = #tpu.dot_dimension_numbers<[1], [0], [0], [1], [0, 0, 1, 1], [], []>} : vector<8x8xbf16>, vector<8x56xbf16>, vector<8x56xf32> -> vector<8x56xf32>
    %212 = arith.addf %206, %211 : vector<8x56xf32>
    %213 = vector.extract_strided_slice %189 {offsets = [0, 11], sizes = [8, 56], strides = [1, 1]} : vector<8x78xf32> to vector<8x56xf32>
    %214 = arith.truncf %213 : vector<8x56xf32> to vector<8x56xbf16>
    %c4_135 = arith.constant 4 : index
    %c0_136 = arith.constant 0 : index
    %c0_137 = arith.constant 0 : index
    %215 = vector.load %arg9[%c4_135, %c0_136, %c0_137] : memref<9x8x8xbf16, #tpu.memory_space<vmem>>, vector<1x8x8xbf16>
    %216 = vector.shape_cast %215 : vector<1x8x8xbf16> to vector<8x8xbf16>
    %cst_138 = arith.constant dense<0.000000e+00> : vector<8x56xf32>
    %217 = tpu.matmul %216, %214, %cst_138 {dimension_numbers = #tpu.dot_dimension_numbers<[1], [0], [0], [1], [0, 0, 1, 1], [], []>} : vector<8x8xbf16>, vector<8x56xbf16>, vector<8x56xf32> -> vector<8x56xf32>
    %218 = arith.addf %212, %217 : vector<8x56xf32>
    %219 = vector.extract_strided_slice %189 {offsets = [0, 12], sizes = [8, 56], strides = [1, 1]} : vector<8x78xf32> to vector<8x56xf32>
    %220 = arith.truncf %219 : vector<8x56xf32> to vector<8x56xbf16>
    %c5_139 = arith.constant 5 : index
    %c0_140 = arith.constant 0 : index
    %c0_141 = arith.constant 0 : index
    %221 = vector.load %arg9[%c5_139, %c0_140, %c0_141] : memref<9x8x8xbf16, #tpu.memory_space<vmem>>, vector<1x8x8xbf16>
    %222 = vector.shape_cast %221 : vector<1x8x8xbf16> to vector<8x8xbf16>
    %cst_142 = arith.constant dense<0.000000e+00> : vector<8x56xf32>
    %223 = tpu.matmul %222, %220, %cst_142 {dimension_numbers = #tpu.dot_dimension_numbers<[1], [0], [0], [1], [0, 0, 1, 1], [], []>} : vector<8x8xbf16>, vector<8x56xbf16>, vector<8x56xf32> -> vector<8x56xf32>
    %224 = arith.addf %218, %223 : vector<8x56xf32>
    %225 = vector.extract_strided_slice %189 {offsets = [0, 20], sizes = [8, 56], strides = [1, 1]} : vector<8x78xf32> to vector<8x56xf32>
    %226 = arith.truncf %225 : vector<8x56xf32> to vector<8x56xbf16>
    %c6_143 = arith.constant 6 : index
    %c0_144 = arith.constant 0 : index
    %c0_145 = arith.constant 0 : index
    %227 = vector.load %arg9[%c6_143, %c0_144, %c0_145] : memref<9x8x8xbf16, #tpu.memory_space<vmem>>, vector<1x8x8xbf16>
    %228 = vector.shape_cast %227 : vector<1x8x8xbf16> to vector<8x8xbf16>
    %cst_146 = arith.constant dense<0.000000e+00> : vector<8x56xf32>
    %229 = tpu.matmul %228, %226, %cst_146 {dimension_numbers = #tpu.dot_dimension_numbers<[1], [0], [0], [1], [0, 0, 1, 1], [], []>} : vector<8x8xbf16>, vector<8x56xbf16>, vector<8x56xf32> -> vector<8x56xf32>
    %230 = arith.addf %224, %229 : vector<8x56xf32>
    %231 = vector.extract_strided_slice %189 {offsets = [0, 21], sizes = [8, 56], strides = [1, 1]} : vector<8x78xf32> to vector<8x56xf32>
    %232 = arith.truncf %231 : vector<8x56xf32> to vector<8x56xbf16>
    %c7_147 = arith.constant 7 : index
    %c0_148 = arith.constant 0 : index
    %c0_149 = arith.constant 0 : index
    %233 = vector.load %arg9[%c7_147, %c0_148, %c0_149] : memref<9x8x8xbf16, #tpu.memory_space<vmem>>, vector<1x8x8xbf16>
    %234 = vector.shape_cast %233 : vector<1x8x8xbf16> to vector<8x8xbf16>
    %cst_150 = arith.constant dense<0.000000e+00> : vector<8x56xf32>
    %235 = tpu.matmul %234, %232, %cst_150 {dimension_numbers = #tpu.dot_dimension_numbers<[1], [0], [0], [1], [0, 0, 1, 1], [], []>} : vector<8x8xbf16>, vector<8x56xbf16>, vector<8x56xf32> -> vector<8x56xf32>
    %236 = arith.addf %230, %235 : vector<8x56xf32>
    %237 = vector.extract_strided_slice %189 {offsets = [0, 22], sizes = [8, 56], strides = [1, 1]} : vector<8x78xf32> to vector<8x56xf32>
    %238 = arith.truncf %237 : vector<8x56xf32> to vector<8x56xbf16>
    %c8_151 = arith.constant 8 : index
    %c0_152 = arith.constant 0 : index
    %c0_153 = arith.constant 0 : index
    %239 = vector.load %arg9[%c8_151, %c0_152, %c0_153] : memref<9x8x8xbf16, #tpu.memory_space<vmem>>, vector<1x8x8xbf16>
    %240 = vector.shape_cast %239 : vector<1x8x8xbf16> to vector<8x8xbf16>
    %cst_154 = arith.constant dense<0.000000e+00> : vector<8x56xf32>
    %241 = tpu.matmul %240, %238, %cst_154 {dimension_numbers = #tpu.dot_dimension_numbers<[1], [0], [0], [1], [0, 0, 1, 1], [], []>} : vector<8x8xbf16>, vector<8x56xbf16>, vector<8x56xf32> -> vector<8x56xf32>
    %242 = arith.addf %236, %241 : vector<8x56xf32>
    %c0_155 = arith.constant 0 : index
    %c0_156 = arith.constant 0 : index
    %243 = vector.load %arg10[%c0_155, %c0_156] : memref<8x1xf32, #tpu.memory_space<vmem>>, vector<8x1xf32>
    %244 = vector.broadcast %243 : vector<8x1xf32> to vector<8x56xf32>
    %245 = arith.addf %242, %244 : vector<8x56xf32>
    %cst_157 = arith.constant 0.000000e+00 : f32
    %246 = vector.broadcast %cst_157 : f32 to vector<8x56xf32>
    %247 = arith.maximumf %245, %246 : vector<8x56xf32>
    %c0_158 = arith.constant 0 : index
    %c0_159 = arith.constant 0 : index
    %248 = vector.load %arg13[%c0_158, %c0_159] : memref<56x36xf32, #tpu.memory_space<vmem>>, vector<56x36xf32>
    %cst_160 = arith.constant dense<0.000000e+00> : vector<8x36xf32>
    %249 = tpu.matmul %247, %248, %cst_160 {dimension_numbers = #tpu.dot_dimension_numbers<[1], [0], [0], [1], [0, 0, 1, 1], [], []>} : vector<8x56xf32>, vector<56x36xf32>, vector<8x36xf32> -> vector<8x36xf32>
    %c0_161 = arith.constant 0 : index
    %c0_162 = arith.constant 0 : index
    %c0_163 = arith.constant 0 : index
    %250 = vector.load %arg14[%c0_161, %c0_162, %c0_163] : memref<1x16x36xf32, #tpu.memory_space<vmem>>, vector<1x8x36xf32>
    %251 = vector.shape_cast %250 : vector<1x8x36xf32> to vector<8x36xf32>
    %252 = vector.shape_cast %126 : vector<8x36xf32> to vector<1x8x36xf32>
    tpu.vector_store %arg14[%c0_161, %c0_162, %c0_163], %252 {strides = array<i32>} : memref<1x16x36xf32, #tpu.memory_space<vmem>>, vector<1x8x36xf32>,
    %c0_164 = arith.constant 0 : index
    %c8_165 = arith.constant 8 : index
    %c0_166 = arith.constant 0 : index
    %253 = vector.load %arg14[%c0_164, %c8_165, %c0_166] : memref<1x16x36xf32, #tpu.memory_space<vmem>>, vector<1x8x36xf32>
    %254 = vector.shape_cast %253 : vector<1x8x36xf32> to vector<8x36xf32>
    %255 = vector.shape_cast %249 : vector<8x36xf32> to vector<1x8x36xf32>
    tpu.vector_store %arg14[%c0_164, %c8_165, %c0_166], %255 {strides = array<i32>} : memref<1x16x36xf32, #tpu.memory_space<vmem>>, vector<1x8x36xf32>,
    return
  }
  func.func @transform_0(%arg0: i32) -> (i32, i32, i32) {
    %c0_i32 = arith.constant 0 : i32
    %c0_i32_0 = arith.constant 0 : i32
    %c0_i32_1 = arith.constant 0 : i32
    return %arg0, %c0_i32, %c0_i32_0 : i32, i32, i32
  }
  func.func @transform_1(%arg0: i32) -> (i32, i32, i32) {
    %c0_i32 = arith.constant 0 : i32
    %c0_i32_0 = arith.constant 0 : i32
    %c0_i32_1 = arith.constant 0 : i32
    return %arg0, %c0_i32, %c0_i32_0 : i32, i32, i32
  }
  func.func @transform_2(%arg0: i32) -> (i32, i32, i32) {
    %c0_i32 = arith.constant 0 : i32
    %c0_i32_0 = arith.constant 0 : i32
    %c0_i32_1 = arith.constant 0 : i32
    %c0_i32_2 = arith.constant 0 : i32
    return %c0_i32, %c0_i32_0, %c0_i32_1 : i32, i32, i32
  }
  func.func @transform_3(%arg0: i32) -> (i32, i32) {
    %c0_i32 = arith.constant 0 : i32
    %c0_i32_0 = arith.constant 0 : i32
    %c0_i32_1 = arith.constant 0 : i32
    return %c0_i32, %c0_i32_0 : i32, i32
  }
  func.func @transform_4(%arg0: i32) -> (i32, i32, i32) {
    %c0_i32 = arith.constant 0 : i32
    %c0_i32_0 = arith.constant 0 : i32
    %c0_i32_1 = arith.constant 0 : i32
    %c0_i32_2 = arith.constant 0 : i32
    return %c0_i32, %c0_i32_0, %c0_i32_1 : i32, i32, i32
  }
  func.func @transform_5(%arg0: i32) -> (i32, i32) {
    %c0_i32 = arith.constant 0 : i32
    %c0_i32_0 = arith.constant 0 : i32
    %c0_i32_1 = arith.constant 0 : i32
    return %c0_i32, %c0_i32_0 : i32, i32
  }
  func.func @transform_6(%arg0: i32) -> (i32, i32, i32) {
    %c0_i32 = arith.constant 0 : i32
    %c0_i32_0 = arith.constant 0 : i32
    %c0_i32_1 = arith.constant 0 : i32
    %c0_i32_2 = arith.constant 0 : i32
    return %c0_i32, %c0_i32_0, %c0_i32_1 : i32, i32, i32
  }
  func.func @transform_7(%arg0: i32) -> (i32, i32) {
    %c0_i32 = arith.constant 0 : i32
    %c0_i32_0 = arith.constant 0 : i32
    %c0_i32_1 = arith.constant 0 : i32
    return %c0_i32, %c0_i32_0 : i32, i32
  }
  func.func @transform_8(%arg0: i32) -> (i32, i32, i32) {
    %c0_i32 = arith.constant 0 : i32
    %c0_i32_0 = arith.constant 0 : i32
    %c0_i32_1 = arith.constant 0 : i32
    %c0_i32_2 = arith.constant 0 : i32
    return %c0_i32, %c0_i32_0, %c0_i32_1 : i32, i32, i32
  }
  func.func @transform_9(%arg0: i32) -> (i32, i32) {
    %c0_i32 = arith.constant 0 : i32
    %c0_i32_0 = arith.constant 0 : i32
    %c0_i32_1 = arith.constant 0 : i32
    return %c0_i32, %c0_i32_0 : i32, i32
  }
  func.func @transform_10(%arg0: i32) -> (i32, i32) {
    %c0_i32 = arith.constant 0 : i32
    %c0_i32_0 = arith.constant 0 : i32
    %c0_i32_1 = arith.constant 0 : i32
    return %c0_i32, %c0_i32_0 : i32, i32
  }
  func.func @transform_11(%arg0: i32) -> (i32, i32) {
    %c0_i32 = arith.constant 0 : i32
    %c0_i32_0 = arith.constant 0 : i32
    %c0_i32_1 = arith.constant 0 : i32
    return %c0_i32, %c0_i32_0 : i32, i32
  }
  func.func @transform_12(%arg0: i32) -> (i32, i32) {
    %c0_i32 = arith.constant 0 : i32
    %c0_i32_0 = arith.constant 0 : i32
    %c0_i32_1 = arith.constant 0 : i32
    return %c0_i32, %c0_i32_0 : i32, i32
  }
  func.func @transform_13(%arg0: i32) -> (i32, i32, i32) {
    %c0_i32 = arith.constant 0 : i32
    %c0_i32_0 = arith.constant 0 : i32
    %c0_i32_1 = arith.constant 0 : i32
    return %arg0, %c0_i32, %c0_i32_0 : i32, i32, i32
  }
}

</mosaic_0001>

<llo_original>
// kernel: down_block_forward.1
$region0: #{down_block_forward.1}
  #allocation0 [shape = 'u32[]', space=smem, size = 0x4, offset = 0x4, fixed_abs, tag = 'smem constant byte address 0x4 - core index']
  #allocation1 [shape = 'u32[144,128]{1,0:T(1,128)}', space=vmem, size = 0x12000, scoped, tag = 'internal scratch']
  %s0 = inlined_call_operand.vmem [shape: f32[2,4,256], index: 0, kind: input, shape index: {}]
  %s1 = inlined_call_operand.vmem [shape: f32[2,3,1024], index: 1, kind: input, shape index: {}]
  %s2 = inlined_call_operand.vmem [shape: bf16[9,8,4], index: 2, kind: input, shape index: {}]
  %s3 = inlined_call_operand.vmem [shape: f32[8,1], index: 3, kind: input, shape index: {}]
  %s4 = inlined_call_operand.vmem [shape: bf16[9,8,8], index: 4, kind: input, shape index: {}]
  %s5 = inlined_call_operand.vmem [shape: f32[8,1], index: 5, kind: input, shape index: {}]
  %s6 = inlined_call_operand.vmem [shape: bf16[9,8,3], index: 6, kind: input, shape index: {}]
  %s7 = inlined_call_operand.vmem [shape: f32[8,1], index: 7, kind: input, shape index: {}]
  %s8 = inlined_call_operand.vmem [shape: bf16[9,8,8], index: 8, kind: input, shape index: {}]
  %s9 = inlined_call_operand.vmem [shape: f32[8,1], index: 9, kind: input, shape index: {}]
  %s10 = inlined_call_operand.vmem [shape: bf16[1024,100], index: 10, kind: input, shape index: {}]
  %s11 = inlined_call_operand.vmem [shape: f32[171,36], index: 11, kind: input, shape index: {}]
  %s12 = inlined_call_operand.vmem [shape: f32[56,36], index: 12, kind: input, shape index: {}]
  %s13 = inlined_call_operand.vmem [shape: f32[2,16,36], index: 13, kind: output, shape index: {}]
  %s14 = sld [smem:[#allocation0]]
  $region85: #{down_block_forward.1} parent=0
    _
  %s16 = ssub.s32 1, %s14
  %s17 = scalar_select 0, %s16, %s14
  loop: start=0, step=1, limit=4
  $region2: #{down_block_forward.1} parent=0 // loop_pre_header
    _
  $region3: #{down_block_forward.1} parent=0 // loop_header
    %s19 = sphi 0, %s23
    %p20 = scmp.ge.s32.totalorder %s19, 4
    %s29 = sphi 0, %s31
    %s32 = sphi 0, %s29
    %s33 = sphi 0, %s32
    %s49 = sphi 0, %s33
    %s55 = sphi 0, %s57
    %s58 = sphi 0, %s55
    %s59 = sphi 0, %s58
    %s75 = sphi 0, %s59
    %s79 = sphi 0, %s79
    %s81 = sphi 0, %s79
    %s82 = sphi 0, %s81
    %s96 = sphi 0, %s82
    %s100 = sphi 0, %s100
    %s102 = sphi 0, %s100
    %s103 = sphi 0, %s102
    %s117 = sphi 0, %s103
    %s121 = sphi 0, %s121
    %s123 = sphi 0, %s121
    %s124 = sphi 0, %s123
    %s138 = sphi 0, %s124
    %s142 = sphi 0, %s142
    %s144 = sphi 0, %s142
    %s145 = sphi 0, %s144
    %s159 = sphi 0, %s145
    %s163 = sphi 0, %s163
    %s165 = sphi 0, %s163
    %s166 = sphi 0, %s165
    %s180 = sphi 0, %s166
    %s184 = sphi 0, %s184
    %s186 = sphi 0, %s184
    %s187 = sphi 0, %s186
    %s201 = sphi 0, %s187
    %s205 = sphi 0, %s205
    %s207 = sphi 0, %s205
    %s208 = sphi 0, %s207
    %s222 = sphi 0, %s208
    %s226 = sphi 0, %s226
    %s228 = sphi 0, %s226
    %s229 = sphi 0, %s228
    %s243 = sphi 0, %s229
    %s247 = sphi 0, %s247
    %s249 = sphi 0, %s247
    %s250 = sphi 0, %s249
    %s264 = sphi 0, %s250
    %s268 = sphi 0, %s268
    %s270 = sphi 0, %s268
    %s271 = sphi 0, %s270
    %s285 = sphi 0, %s271
    %s289 = sphi 0, %s289
    %s291 = sphi 0, %s289
    %s292 = sphi 0, %s291
    %s306 = sphi 0, %s292
    %s312 = sphi 0, %s314
    %s315 = sphi 0, %s312
    %s316 = sphi 0, %s315
    %s332 = sphi 0, %s316
  $region4: #{down_block_forward.1} parent=0 // loop_header_branch
    %22 = sbr.rel (%p20) target = $region8
  $region5: #{down_block_forward.1} parent=0 // loop_body
    %s24 = ssub.s32 %s19, 1
    %s25 = ssub.s32 %s19, 2
    %s26 = sadd.s32 %s19, 1
    %s27 = ssub.s32 %s19, %s26
    %p28 = scmp.eq.s32.totalorder %s27, 0
    %s30 = sadd.s32 %s29, 1
    %s31 = scalar_select %p28, %s29, %s30
    %p34 = pneg %p28
    %p35 = scmp.eq.s32.totalorder %s19, 1
    %p36 = por %p34, %p35
    %p37 = scmp.ne.s32.totalorder %s29, %s32
    %p38 = scmp.eq.s32.totalorder %s19, 0
    %p39 = por %p37, %p38
    %p40 = scmp.ne.s32.totalorder %s29, %s32
    %p41 = scmp.eq.s32.totalorder %s24, 1
    %p42 = por %p40, %p41
    %p43 = scmp.ne.s32.totalorder %s32, %s33
    %p44 = scmp.eq.s32.totalorder %s24, 0
    %p45 = por %p43, %p44
    %p46 = scmp.ne.s32.totalorder %s32, %s33
    %p47 = scmp.eq.s32.totalorder %s25, 1
    %p48 = por %p46, %p47
    %p50 = scmp.ne.s32.totalorder %s33, %s49
    %p51 = scmp.eq.s32.totalorder %s25, 0
    %p52 = por %p50, %p51
    %s53 = ssub.s32 %s19, %s26
    %p54 = scmp.eq.s32.totalorder %s53, 0
    %s56 = sadd.s32 %s55, 1
    %s57 = scalar_select %p54, %s55, %s56
    %p60 = pneg %p54
    %p61 = scmp.eq.s32.totalorder %s19, 1
    %p62 = por %p60, %p61
    %p63 = scmp.ne.s32.totalorder %s55, %s58
    %p64 = scmp.eq.s32.totalorder %s19, 0
    %p65 = por %p63, %p64
    %p66 = scmp.ne.s32.totalorder %s55, %s58
    %p67 = scmp.eq.s32.totalorder %s24, 1
    %p68 = por %p66, %p67
    %p69 = scmp.ne.s32.totalorder %s58, %s59
    %p70 = scmp.eq.s32.totalorder %s24, 0
    %p71 = por %p69, %p70
    %p72 = scmp.ne.s32.totalorder %s58, %s59
    %p73 = scmp.eq.s32.totalorder %s25, 1
    %p74 = por %p72, %p73
    %p76 = scmp.ne.s32.totalorder %s59, %s75
    %p77 = scmp.eq.s32.totalorder %s25, 0
    %p78 = por %p76, %p77
    %s80 = sadd.s32 %s79, 1
    %p83 = scmp.eq.s32.totalorder %s19, 1
    %p84 = scmp.ne.s32.totalorder %s79, %s81
    %p85 = scmp.eq.s32.totalorder %s19, 0
    %p86 = por %p84, %p85
    %p87 = scmp.ne.s32.totalorder %s79, %s81
    %p88 = scmp.eq.s32.totalorder %s24, 1
    %p89 = por %p87, %p88
    %p90 = scmp.ne.s32.totalorder %s81, %s82
    %p91 = scmp.eq.s32.totalorder %s24, 0
    %p92 = por %p90, %p91
    %p93 = scmp.ne.s32.totalorder %s81, %s82
    %p94 = scmp.eq.s32.totalorder %s25, 1
    %p95 = por %p93, %p94
    %p97 = scmp.ne.s32.totalorder %s82, %s96
    %p98 = scmp.eq.s32.totalorder %s25, 0
    %p99 = por %p97, %p98
    %s101 = sadd.s32 %s100, 1
    %p104 = scmp.eq.s32.totalorder %s19, 1
    %p105 = scmp.ne.s32.totalorder %s100, %s102
    %p106 = scmp.eq.s32.totalorder %s19, 0
    %p107 = por %p105, %p106
    %p108 = scmp.ne.s32.totalorder %s100, %s102
    %p109 = scmp.eq.s32.totalorder %s24, 1
    %p110 = por %p108, %p109
    %p111 = scmp.ne.s32.totalorder %s102, %s103
    %p112 = scmp.eq.s32.totalorder %s24, 0
    %p113 = por %p111, %p112
    %p114 = scmp.ne.s32.totalorder %s102, %s103
    %p115 = scmp.eq.s32.totalorder %s25, 1
    %p116 = por %p114, %p115
    %p118 = scmp.ne.s32.totalorder %s103, %s117
    %p119 = scmp.eq.s32.totalorder %s25, 0
    %p120 = por %p118, %p119
    %s122 = sadd.s32 %s121, 1
    %p125 = scmp.eq.s32.totalorder %s19, 1
    %p126 = scmp.ne.s32.totalorder %s121, %s123
    %p127 = scmp.eq.s32.totalorder %s19, 0
    %p128 = por %p126, %p127
    %p129 = scmp.ne.s32.totalorder %s121, %s123
    %p130 = scmp.eq.s32.totalorder %s24, 1
    %p131 = por %p129, %p130
    %p132 = scmp.ne.s32.totalorder %s123, %s124
    %p133 = scmp.eq.s32.totalorder %s24, 0
    %p134 = por %p132, %p133
    %p135 = scmp.ne.s32.totalorder %s123, %s124
    %p136 = scmp.eq.s32.totalorder %s25, 1
    %p137 = por %p135, %p136
    %p139 = scmp.ne.s32.totalorder %s124, %s138
    %p140 = scmp.eq.s32.totalorder %s25, 0
    %p141 = por %p139, %p140
    %s143 = sadd.s32 %s142, 1
    %p146 = scmp.eq.s32.totalorder %s19, 1
    %p147 = scmp.ne.s32.totalorder %s142, %s144
    %p148 = scmp.eq.s32.totalorder %s19, 0
    %p149 = por %p147, %p148
    %p150 = scmp.ne.s32.totalorder %s142, %s144
    %p151 = scmp.eq.s32.totalorder %s24, 1
    %p152 = por %p150, %p151
    %p153 = scmp.ne.s32.totalorder %s144, %s145
    %p154 = scmp.eq.s32.totalorder %s24, 0
    %p155 = por %p153, %p154
    %p156 = scmp.ne.s32.totalorder %s144, %s145
    %p157 = scmp.eq.s32.totalorder %s25, 1
    %p158 = por %p156, %p157
    %p160 = scmp.ne.s32.totalorder %s145, %s159
    %p161 = scmp.eq.s32.totalorder %s25, 0
    %p162 = por %p160, %p161
    %s164 = sadd.s32 %s163, 1
    %p167 = scmp.eq.s32.totalorder %s19, 1
    %p168 = scmp.ne.s32.totalorder %s163, %s165
    %p169 = scmp.eq.s32.totalorder %s19, 0
    %p170 = por %p168, %p169
    %p171 = scmp.ne.s32.totalorder %s163, %s165
    %p172 = scmp.eq.s32.totalorder %s24, 1
    %p173 = por %p171, %p172
    %p174 = scmp.ne.s32.totalorder %s165, %s166
    %p175 = scmp.eq.s32.totalorder %s24, 0
    %p176 = por %p174, %p175
    %p177 = scmp.ne.s32.totalorder %s165, %s166
    %p178 = scmp.eq.s32.totalorder %s25, 1
    %p179 = por %p177, %p178
    %p181 = scmp.ne.s32.totalorder %s166, %s180
    %p182 = scmp.eq.s32.totalorder %s25, 0
    %p183 = por %p181, %p182
    %s185 = sadd.s32 %s184, 1
    %p188 = scmp.eq.s32.totalorder %s19, 1
    %p189 = scmp.ne.s32.totalorder %s184, %s186
    %p190 = scmp.eq.s32.totalorder %s19, 0
    %p191 = por %p189, %p190
    %p192 = scmp.ne.s32.totalorder %s184, %s186
    %p193 = scmp.eq.s32.totalorder %s24, 1
    %p194 = por %p192, %p193
    %p195 = scmp.ne.s32.totalorder %s186, %s187
    %p196 = scmp.eq.s32.totalorder %s24, 0
    %p197 = por %p195, %p196
    %p198 = scmp.ne.s32.totalorder %s186, %s187
    %p199 = scmp.eq.s32.totalorder %s25, 1
    %p200 = por %p198, %p199
    %p202 = scmp.ne.s32.totalorder %s187, %s201
    %p203 = scmp.eq.s32.totalorder %s25, 0
    %p204 = por %p202, %p203
    %s206 = sadd.s32 %s205, 1
    %p209 = scmp.eq.s32.totalorder %s19, 1
    %p210 = scmp.ne.s32.totalorder %s205, %s207
    %p211 = scmp.eq.s32.totalorder %s19, 0
    %p212 = por %p210, %p211
    %p213 = scmp.ne.s32.totalorder %s205, %s207
    %p214 = scmp.eq.s32.totalorder %s24, 1
    %p215 = por %p213, %p214
    %p216 = scmp.ne.s32.totalorder %s207, %s208
    %p217 = scmp.eq.s32.totalorder %s24, 0
    %p218 = por %p216, %p217
    %p219 = scmp.ne.s32.totalorder %s207, %s208
    %p220 = scmp.eq.s32.totalorder %s25, 1
    %p221 = por %p219, %p220
    %p223 = scmp.ne.s32.totalorder %s208, %s222
    %p224 = scmp.eq.s32.totalorder %s25, 0
    %p225 = por %p223, %p224
    %s227 = sadd.s32 %s226, 1
    %p230 = scmp.eq.s32.totalorder %s19, 1
    %p231 = scmp.ne.s32.totalorder %s226, %s228
    %p232 = scmp.eq.s32.totalorder %s19, 0
    %p233 = por %p231, %p232
    %p234 = scmp.ne.s32.totalorder %s226, %s228
    %p235 = scmp.eq.s32.totalorder %s24, 1
    %p236 = por %p234, %p235
    %p237 = scmp.ne.s32.totalorder %s228, %s229
    %p238 = scmp.eq.s32.totalorder %s24, 0
    %p239 = por %p237, %p238
    %p240 = scmp.ne.s32.totalorder %s228, %s229
    %p241 = scmp.eq.s32.totalorder %s25, 1
    %p242 = por %p240, %p241
    %p244 = scmp.ne.s32.totalorder %s229, %s243
    %p245 = scmp.eq.s32.totalorder %s25, 0
    %p246 = por %p244, %p245
    %s248 = sadd.s32 %s247, 1
    %p251 = scmp.eq.s32.totalorder %s19, 1
    %p252 = scmp.ne.s32.totalorder %s247, %s249
    %p253 = scmp.eq.s32.totalorder %s19, 0
    %p254 = por %p252, %p253
    %p255 = scmp.ne.s32.totalorder %s247, %s249
    %p256 = scmp.eq.s32.totalorder %s24, 1
    %p257 = por %p255, %p256
    %p258 = scmp.ne.s32.totalorder %s249, %s250
    %p259 = scmp.eq.s32.totalorder %s24, 0
    %p260 = por %p258, %p259
    %p261 = scmp.ne.s32.totalorder %s249, %s250
    %p262 = scmp.eq.s32.totalorder %s25, 1
    %p263 = por %p261, %p262
    %p265 = scmp.ne.s32.totalorder %s250, %s264
    %p266 = scmp.eq.s32.totalorder %s25, 0
    %p267 = por %p265, %p266
    %s269 = sadd.s32 %s268, 1
    %p272 = scmp.eq.s32.totalorder %s19, 1
    %p273 = scmp.ne.s32.totalorder %s268, %s270
    %p274 = scmp.eq.s32.totalorder %s19, 0
    %p275 = por %p273, %p274
    %p276 = scmp.ne.s32.totalorder %s268, %s270
    %p277 = scmp.eq.s32.totalorder %s24, 1
    %p278 = por %p276, %p277
    %p279 = scmp.ne.s32.totalorder %s270, %s271
    %p280 = scmp.eq.s32.totalorder %s24, 0
    %p281 = por %p279, %p280
    %p282 = scmp.ne.s32.totalorder %s270, %s271
    %p283 = scmp.eq.s32.totalorder %s25, 1
    %p284 = por %p282, %p283
    %p286 = scmp.ne.s32.totalorder %s271, %s285
    %p287 = scmp.eq.s32.totalorder %s25, 0
    %p288 = por %p286, %p287
    %s290 = sadd.s32 %s289, 1
    %p293 = scmp.eq.s32.totalorder %s19, 1
    %p294 = scmp.ne.s32.totalorder %s289, %s291
    %p295 = scmp.eq.s32.totalorder %s19, 0
    %p296 = por %p294, %p295
    %p297 = scmp.ne.s32.totalorder %s289, %s291
    %p298 = scmp.eq.s32.totalorder %s24, 1
    %p299 = por %p297, %p298
    %p300 = scmp.ne.s32.totalorder %s291, %s292
    %p301 = scmp.eq.s32.totalorder %s24, 0
    %p302 = por %p300, %p301
    %p303 = scmp.ne.s32.totalorder %s291, %s292
    %p304 = scmp.eq.s32.totalorder %s25, 1
    %p305 = por %p303, %p304
    %p307 = scmp.ne.s32.totalorder %s292, %s306
    %p308 = scmp.eq.s32.totalorder %s25, 0
    %p309 = por %p307, %p308
    %s310 = ssub.s32 %s19, %s26
    %p311 = scmp.eq.s32.totalorder %s310, 0
    %s313 = sadd.s32 %s312, 1
    %s314 = scalar_select %p311, %s312, %s313
    %p317 = pneg %p311
    %p318 = scmp.eq.s32.totalorder %s19, 1
    %p319 = por %p317, %p318
    %p320 = scmp.ne.s32.totalorder %s312, %s315
    %p321 = scmp.eq.s32.totalorder %s19, 0
    %p322 = por %p320, %p321
    %p323 = scmp.ne.s32.totalorder %s312, %s315
    %p324 = scmp.eq.s32.totalorder %s24, 1
    %p325 = por %p323, %p324
    %p326 = scmp.ne.s32.totalorder %s315, %s316
    %p327 = scmp.eq.s32.totalorder %s24, 0
    %p328 = por %p326, %p327
    %p329 = scmp.ne.s32.totalorder %s315, %s316
    %p330 = scmp.eq.s32.totalorder %s25, 1
    %p331 = por %p329, %p330
    %p333 = scmp.ne.s32.totalorder %s316, %s332
    %p334 = scmp.eq.s32.totalorder %s25, 0
    %p335 = por %p333, %p334
    %p336 = scmp.le.s32.totalorder 1, %s19
    %p337 = scmp.lt.s32.totalorder %s19, 3
    %p338 = pnand %p336, %p337
    %p339 = pneg %p338
    // Predicated region
    $region9: #{down_block_forward.1} parent=5 // pred_check
      _
    $region10: #{down_block_forward.1} parent=5 // pred_check_branch
      %341 = sbr.rel (%p338) target = $region12
    $region11: #{down_block_forward.1} parent=5 // pred_region
      %s342 = ssub.s32 %s19, 1
      // Predicated region
      $region13: #{down_block_forward.1} parent=11 // pred_check
        %p343 = pneg %p92
      $region14: #{down_block_forward.1} parent=11 // pred_check_branch
        %345 = sbr.rel (%p343) target = $region16
      $region15: #{down_block_forward.1} parent=11 // pred_region
        _
      $region16: #{down_block_forward.1} parent=11 // pred_fallthru
        _
      // Predicated region
      $region17: #{down_block_forward.1} parent=11 // pred_check
        %p346 = pneg %p113
      $region18: #{down_block_forward.1} parent=11 // pred_check_branch
        %348 = sbr.rel (%p346) target = $region20
      $region19: #{down_block_forward.1} parent=11 // pred_region
        _
      $region20: #{down_block_forward.1} parent=11 // pred_fallthru
        _
      // Predicated region
      $region21: #{down_block_forward.1} parent=11 // pred_check
        %p349 = pneg %p134
      $region22: #{down_block_forward.1} parent=11 // pred_check_branch
        %351 = sbr.rel (%p349) target = $region24
      $region23: #{down_block_forward.1} parent=11 // pred_region
        _
      $region24: #{down_block_forward.1} parent=11 // pred_fallthru
        _
      // Predicated region
      $region25: #{down_block_forward.1} parent=11 // pred_check
        %p352 = pneg %p155
      $region26: #{down_block_forward.1} parent=11 // pred_check_branch
        %354 = sbr.rel (%p352) target = $region28
      $region27: #{down_block_forward.1} parent=11 // pred_region
        _
      $region28: #{down_block_forward.1} parent=11 // pred_fallthru
        _
      // Predicated region
      $region29: #{down_block_forward.1} parent=11 // pred_check
        %p355 = pneg %p176
      $region30: #{down_block_forward.1} parent=11 // pred_check_branch
        %357 = sbr.rel (%p355) target = $region32
      $region31: #{down_block_forward.1} parent=11 // pred_region
        _
      $region32: #{down_block_forward.1} parent=11 // pred_fallthru
        _
      // Predicated region
      $region33: #{down_block_forward.1} parent=11 // pred_check
        %p358 = pneg %p197
      $region34: #{down_block_forward.1} parent=11 // pred_check_branch
        %360 = sbr.rel (%p358) target = $region36
      $region35: #{down_block_forward.1} parent=11 // pred_region
        _
      $region36: #{down_block_forward.1} parent=11 // pred_fallthru
        _
      // Predicated region
      $region37: #{down_block_forward.1} parent=11 // pred_check
        %p361 = pneg %p218
      $region38: #{down_block_forward.1} parent=11 // pred_check_branch
        %363 = sbr.rel (%p361) target = $region40
      $region39: #{down_block_forward.1} parent=11 // pred_region
        _
      $region40: #{down_block_forward.1} parent=11 // pred_fallthru
        _
      // Predicated region
      $region41: #{down_block_forward.1} parent=11 // pred_check
        %p364 = pneg %p239
      $region42: #{down_block_forward.1} parent=11 // pred_check_branch
        %366 = sbr.rel (%p364) target = $region44
      $region43: #{down_block_forward.1} parent=11 // pred_region
        _
      $region44: #{down_block_forward.1} parent=11 // pred_fallthru
        _
      // Predicated region
      $region45: #{down_block_forward.1} parent=11 // pred_check
        %p367 = pneg %p260
      $region46: #{down_block_forward.1} parent=11 // pred_check_branch
        %369 = sbr.rel (%p367) target = $region48
      $region47: #{down_block_forward.1} parent=11 // pred_region
        _
      $region48: #{down_block_forward.1} parent=11 // pred_fallthru
        _
      // Predicated region
      $region49: #{down_block_forward.1} parent=11 // pred_check
        %p370 = pneg %p281
      $region50: #{down_block_forward.1} parent=11 // pred_check_branch
        %372 = sbr.rel (%p370) target = $region52
      $region51: #{down_block_forward.1} parent=11 // pred_region
        _
      $region52: #{down_block_forward.1} parent=11 // pred_fallthru
        _
      // Predicated region
      $region53: #{down_block_forward.1} parent=11 // pred_check
        %p373 = pneg %p302
      $region54: #{down_block_forward.1} parent=11 // pred_check_branch
        %375 = sbr.rel (%p373) target = $region56
      $region55: #{down_block_forward.1} parent=11 // pred_region
        _
      $region56: #{down_block_forward.1} parent=11 // pred_fallthru
        _
    $region12: #{down_block_forward.1} parent=5 // pred_fallthru
      _
    %p376 = scmp.lt.s32.totalorder %s19, 2
    // Predicated region
    $region57: #{down_block_forward.1} parent=5 // pred_check
      %p377 = pneg %p376
    $region58: #{down_block_forward.1} parent=5 // pred_check_branch
      %379 = sbr.rel (%p377) target = $region60
    $region59: #{down_block_forward.1} parent=5 // pred_region
      // Predicated region
      $region61: #{down_block_forward.1} parent=59 // pred_check
        %p380 = pneg %p39
      $region62: #{down_block_forward.1} parent=59 // pred_check_branch
        %382 = sbr.rel (%p380) target = $region64
      $region63: #{down_block_forward.1} parent=59 // pred_region
        %p383 = scmp.lt.s32.totalorder %s19, 1
        %s384 = scalar_select %p383, %s19, 1
        %s385 = smul.addr %s384, 2
        %s386 = smul.addr %s385, 4
        %s387 = scalar_lea.vmem %s0, %s386
      $region64: #{down_block_forward.1} parent=59 // pred_fallthru
        _
      // Predicated region
      $region65: #{down_block_forward.1} parent=59 // pred_check
        %p388 = pneg %p65
      $region66: #{down_block_forward.1} parent=59 // pred_check_branch
        %390 = sbr.rel (%p388) target = $region68
      $region67: #{down_block_forward.1} parent=59 // pred_region
        %p391 = scmp.lt.s32.totalorder %s19, 1
        %s392 = scalar_select %p391, %s19, 1
        %s393 = smul.addr %s392, 8
        %s394 = smul.addr %s393, 4
        %s395 = scalar_lea.vmem %s1, %s394
      $region68: #{down_block_forward.1} parent=59 // pred_fallthru
        _
    $region60: #{down_block_forward.1} parent=5 // pred_fallthru
      _
    %p396 = scmp.le.s32.totalorder 1, %s19
    %p397 = scmp.lt.s32.totalorder %s19, 3
    %p398 = pnand %p396, %p397
    %p399 = pneg %p398
    // Predicated region
    $region69: #{down_block_forward.1} parent=5 // pred_check
      _
    $region70: #{down_block_forward.1} parent=5 // pred_check_branch
      %401 = sbr.rel (%p398) target = $region72
    $region71: #{down_block_forward.1} parent=5 // pred_region
      %s402 = ssub.s32 %s19, 1
      %p403 = scmp.lt.s32.totalorder %s24, 1
      %s404 = scalar_select %p403, %s24, 1
      %s405 = smul.addr %s404, 2
      %s406 = smul.addr %s405, 4
      %s407 = scalar_lea.vmem %s0, %s406
      %p408 = pneg %p45
      %p409 = pneg %p42
      %p410 = scmp.lt.s32.totalorder %s24, 1
      %s411 = scalar_select %p410, %s24, 1
      %s412 = smul.addr %s411, 8
      %s413 = smul.addr %s412, 4
      %s414 = scalar_lea.vmem %s1, %s413
      %p415 = pneg %p71
      %p416 = pneg %p68
      %p417 = pneg %p92
      %p418 = pneg %p89
      %p419 = pneg %p113
      %p420 = pneg %p110
      %p421 = pneg %p134
      %p422 = pneg %p131
      %p423 = pneg %p155
      %p424 = pneg %p152
      %p425 = pneg %p176
      %p426 = pneg %p173
      %p427 = pneg %p197
      %p428 = pneg %p194
      %p429 = pneg %p218
      %p430 = pneg %p215
      %p431 = pneg %p239
      %p432 = pneg %p236
      %p433 = pneg %p260
      %p434 = pneg %p257
      %p435 = pneg %p281
      %p436 = pneg %p278
      %p437 = pneg %p302
      %p438 = pneg %p299
      %p439 = pneg %p328
      %p440 = pneg %p325
      %p441 = scmp.lt.s32.totalorder %s24, 1
      %s442 = scalar_select %p441, %s24, 1
      %s443 = smul.addr %s442, 2
      %s444 = smul.addr %s443, 8
      %s445 = scalar_lea.vmem %s13, %s444
      %p446 = scmp.lt.s32.totalorder %s24, 1
      %s447 = scalar_select %p446, %s24, 1
      %s448 = smul.addr %s447, 2
      %s449 = smul.addr %s448, 4
      %s450 = scalar_lea.vmem %s0, %s449
      %p451 = scmp.lt.s32.totalorder %s24, 1
      %s452 = scalar_select %p451, %s24, 1
      %s453 = smul.addr %s452, 8
      %s454 = smul.addr %s453, 4
      %s455 = scalar_lea.vmem %s1, %s454
      %p456 = scmp.lt.s32.totalorder %s24, 1
      %s457 = scalar_select %p456, %s24, 1
      %s458 = smul.addr %s457, 2
      %s459 = smul.addr %s458, 8
      %s460 = scalar_lea.vmem %s13, %s459
      %v462 = vld [vmem:[%s450] sm:$0xff]
      %v464 = vcombine.high %v462, %v462
      %v466 = vpack.c.bf16 %v462, %v462
      %v467 = vpack.c.bf16 %v464, %v464
      %v468 = vld [vmem:[%s2] sm:$0xf]
      %s469 = scalar_lea.vmem %s2, 4
      %v470 = vld [vmem:[%s469] sm:$0xf]
      %473 = vrot.lane.b32.xlu0 %v466, 127
      %v474 = vpop.permute.xlu0 %473
      %475 = vrot.lane.b32.xlu0 %v467, 127
      %v476 = vpop.permute.xlu0 %475
      %vm477 = vcmask 1039360
      %v478 = vsel %vm477, %v474, %v476
      %vm479 = vcmask 31744
      %v481 = vsel %vm479, %v470, 0
      %vm483 = vcmask 1041408
      %v485 = vsel %vm483, %v478, 0
      %v488 = vsel %vm483, %v476, 0
      %490 = vmatprep.subr.bf16.mxu0 0
      %491 = vmatpush1.bf16.msra.mxu0 0
      %492 = vmatprep.subr.bf16.mxu0 0
      %493 = vmatpush1.bf16.msra.mxu0 0
      %494 = vmatprep.subr.bf16.mxu0 0
      %495 = vmatpush1.bf16.msra.mxu0 0
      %496 = vmatprep.subr.bf16.mxu0 0
      %497 = vmatpush1.bf16.msra.mxu0 0
      %498 = vmatprep.subr.bf16.mxu0 0
      %499 = vmatpush1.bf16.msra.mxu0 0
      %500 = vmatprep.subr.bf16.mxu0 0
      %501 = vmatpush1.bf16.msra.mxu0 0
      %502 = vmatprep.subr.bf16.mxu0 0
      %503 = vmatpush1.bf16.msra.mxu0 0
      %504 = vmatprep.subr.bf16.mxu0 %v488
      %505 = vmatpush1.bf16.msra.mxu0 %v485
      %506 = vmatprep.subr.bf16.mxu0 0
      %507 = vmatpush2.bf16.msra.mxu0 0
      %508 = vmatprep.subr.bf16.mxu0 0
      %509 = vmatpush2.bf16.msra.mxu0 0
      %510 = vmatprep.subr.bf16.mxu0 0
      %511 = vmatpush2.bf16.msra.mxu0 0
      %512 = vmatprep.subr.bf16.mxu0 0
      %513 = vmatpush2.bf16.msra.mxu0 0
      %514 = vmatprep.subr.bf16.mxu0 0
      %515 = vmatpush2.bf16.msra.mxu0 0
      %516 = vmatprep.subr.bf16.mxu0 0
      %517 = vmatpush2.bf16.msra.mxu0 0
      %518 = vmatprep.subr.bf16.mxu0 0
      %519 = vmatpush2.bf16.msra.mxu0 0
      %520 = vmatprep.subr.bf16.mxu0 0
      %521 = vmatpush2.bf16.msra.mxu0 0
      %522 = vmatprep.mubr.bf16.mxu0 0
      %523 = vmatmul.mubr.bf16.gmra.mxu0 %v481
      %v524 = vpop.f32.mrf.mxu0
      %v525 = vadd.f32 0.0, %v524
      %v526 = vpop.f32.mrf.mxu0
      %v527 = vadd.f32 0.0, %v526
      %v528 = vpop.f32.mrf.mxu0
      %v529 = vpop.f32.mrf.mxu0
      %530 = vdwg.mxu0
      %v532 = vsel %vm479, %v468, 0
      %v535 = vsel %vm483, %v466, 0
      %v538 = vsel %vm483, %v467, 0
      %540 = vmatprep.subr.bf16.mxu0 0
      %541 = vmatpush1.bf16.msra.mxu0 0
      %542 = vmatprep.subr.bf16.mxu0 0
      %543 = vmatpush1.bf16.msra.mxu0 0
      %544 = vmatprep.subr.bf16.mxu0 0
      %545 = vmatpush1.bf16.msra.mxu0 0
      %546 = vmatprep.subr.bf16.mxu0 0
      %547 = vmatpush1.bf16.msra.mxu0 0
      %548 = vmatprep.subr.bf16.mxu0 0
      %549 = vmatpush1.bf16.msra.mxu0 0
      %550 = vmatprep.subr.bf16.mxu0 0
      %551 = vmatpush1.bf16.msra.mxu0 0
      %552 = vmatprep.subr.bf16.mxu0 0
      %553 = vmatpush1.bf16.msra.mxu0 0
      %554 = vmatprep.subr.bf16.mxu0 %v538
      %555 = vmatpush1.bf16.msra.mxu0 %v535
      %556 = vmatprep.subr.bf16.mxu0 0
      %557 = vmatpush2.bf16.msra.mxu0 0
      %558 = vmatprep.subr.bf16.mxu0 0
      %559 = vmatpush2.bf16.msra.mxu0 0
      %560 = vmatprep.subr.bf16.mxu0 0
      %561 = vmatpush2.bf16.msra.mxu0 0
      %562 = vmatprep.subr.bf16.mxu0 0
      %563 = vmatpush2.bf16.msra.mxu0 0
      %564 = vmatprep.subr.bf16.mxu0 0
      %565 = vmatpush2.bf16.msra.mxu0 0
      %566 = vmatprep.subr.bf16.mxu0 0
      %567 = vmatpush2.bf16.msra.mxu0 0
      %568 = vmatprep.subr.bf16.mxu0 0
      %569 = vmatpush2.bf16.msra.mxu0 0
      %570 = vmatprep.subr.bf16.mxu0 0
      %571 = vmatpush2.bf16.msra.mxu0 0
      %572 = vmatprep.mubr.bf16.mxu0 0
      %573 = vmatmul.mubr.bf16.gmra.mxu0 %v532
      %v574 = vpop.f32.mrf.mxu0
      %v575 = vadd.f32 %v525, %v574
      %v576 = vpop.f32.mrf.mxu0
      %v577 = vadd.f32 %v527, %v576
      %v578 = vpop.f32.mrf.mxu0
      %v579 = vpop.f32.mrf.mxu0
      %580 = vdwg.mxu0
      %s581 = scalar_lea.vmem %s2, 8
      %v582 = vld [vmem:[%s581] sm:$0xf]
      %583 = vrot.lane.b32.xlu0 %v466, 126
      %v584 = vpop.permute.xlu0 %583
      %585 = vrot.lane.b32.xlu0 %v467, 126
      %v586 = vpop.permute.xlu0 %585
      %vm587 = vcmask 1031168
      %v588 = vsel %vm587, %v584, %v586
      %v590 = vsel %vm479, %v582, 0
      %v593 = vsel %vm483, %v588, 0
      %v596 = vsel %vm483, %v586, 0
      %598 = vmatprep.subr.bf16.mxu0 0
      %599 = vmatpush1.bf16.msra.mxu0 0
      %600 = vmatprep.subr.bf16.mxu0 0
      %601 = vmatpush1.bf16.msra.mxu0 0
      %602 = vmatprep.subr.bf16.mxu0 0
      %603 = vmatpush1.bf16.msra.mxu0 0
      %604 = vmatprep.subr.bf16.mxu0 0
      %605 = vmatpush1.bf16.msra.mxu0 0
      %606 = vmatprep.subr.bf16.mxu0 0
      %607 = vmatpush1.bf16.msra.mxu0 0
      %608 = vmatprep.subr.bf16.mxu0 0
      %609 = vmatpush1.bf16.msra.mxu0 0
      %610 = vmatprep.subr.bf16.mxu0 0
      %611 = vmatpush1.bf16.msra.mxu0 0
      %612 = vmatprep.subr.bf16.mxu0 %v596
      %613 = vmatpush1.bf16.msra.mxu0 %v593
      %614 = vmatprep.subr.bf16.mxu0 0
      %615 = vmatpush2.bf16.msra.mxu0 0
      %616 = vmatprep.subr.bf16.mxu0 0
      %617 = vmatpush2.bf16.msra.mxu0 0
      %618 = vmatprep.subr.bf16.mxu0 0
      %619 = vmatpush2.bf16.msra.mxu0 0
      %620 = vmatprep.subr.bf16.mxu0 0
      %621 = vmatpush2.bf16.msra.mxu0 0
      %622 = vmatprep.subr.bf16.mxu0 0
      %623 = vmatpush2.bf16.msra.mxu0 0
      %624 = vmatprep.subr.bf16.mxu0 0
      %625 = vmatpush2.bf16.msra.mxu0 0
      %626 = vmatprep.subr.bf16.mxu0 0
      %627 = vmatpush2.bf16.msra.mxu0 0
      %628 = vmatprep.subr.bf16.mxu0 0
      %629 = vmatpush2.bf16.msra.mxu0 0
      %630 = vmatprep.mubr.bf16.mxu0 0
      %631 = vmatmul.mubr.bf16.gmra.mxu0 %v590
      %v632 = vpop.f32.mrf.mxu0
      %v633 = vadd.f32 0.0, %v632
      %v634 = vpop.f32.mrf.mxu0
      %v635 = vadd.f32 0.0, %v634
      %v636 = vpop.f32.mrf.mxu0
      %v637 = vpop.f32.mrf.mxu0
      %638 = vdwg.mxu0
      %v639 = vadd.f32 %v575, %v633
      %v640 = vadd.f32 %v577, %v635
      %s641 = scalar_lea.vmem %s2, 12
      %v642 = vld [vmem:[%s641] sm:$0xf]
      %643 = vrot.lane.b32.xlu0 %v466, 112
      %v644 = vpop.permute.xlu0 %643
      %645 = vrot.lane.b32.xlu0 %v467, 112
      %v646 = vpop.permute.xlu0 %645
      %vm647 = vcmask 916480
      %v648 = vsel %vm647, %v644, %v646
      %v650 = vsel %vm479, %v642, 0
      %v653 = vsel %vm483, %v648, 0
      %v656 = vsel %vm483, %v646, 0
      %658 = vmatprep.subr.bf16.mxu0 0
      %659 = vmatpush1.bf16.msra.mxu0 0
      %660 = vmatprep.subr.bf16.mxu0 0
      %661 = vmatpush1.bf16.msra.mxu0 0
      %662 = vmatprep.subr.bf16.mxu0 0
      %663 = vmatpush1.bf16.msra.mxu0 0
      %664 = vmatprep.subr.bf16.mxu0 0
      %665 = vmatpush1.bf16.msra.mxu0 0
      %666 = vmatprep.subr.bf16.mxu0 0
      %667 = vmatpush1.bf16.msra.mxu0 0
      %668 = vmatprep.subr.bf16.mxu0 0
      %669 = vmatpush1.bf16.msra.mxu0 0
      %670 = vmatprep.subr.bf16.mxu0 0
      %671 = vmatpush1.bf16.msra.mxu0 0
      %672 = vmatprep.subr.bf16.mxu0 %v656
      %673 = vmatpush1.bf16.msra.mxu0 %v653
      %674 = vmatprep.subr.bf16.mxu0 0
      %675 = vmatpush2.bf16.msra.mxu0 0
      %676 = vmatprep.subr.bf16.mxu0 0
      %677 = vmatpush2.bf16.msra.mxu0 0
      %678 = vmatprep.subr.bf16.mxu0 0
      %679 = vmatpush2.bf16.msra.mxu0 0
      %680 = vmatprep.subr.bf16.mxu0 0
      %681 = vmatpush2.bf16.msra.mxu0 0
      %682 = vmatprep.subr.bf16.mxu0 0
      %683 = vmatpush2.bf16.msra.mxu0 0
      %684 = vmatprep.subr.bf16.mxu0 0
      %685 = vmatpush2.bf16.msra.mxu0 0
      %686 = vmatprep.subr.bf16.mxu0 0
      %687 = vmatpush2.bf16.msra.mxu0 0
      %688 = vmatprep.subr.bf16.mxu0 0
      %689 = vmatpush2.bf16.msra.mxu0 0
      %690 = vmatprep.mubr.bf16.mxu0 0
      %691 = vmatmul.mubr.bf16.gmra.mxu0 %v650
      %v692 = vpop.f32.mrf.mxu0
      %v693 = vadd.f32 0.0, %v692
      %v694 = vpop.f32.mrf.mxu0
      %v695 = vadd.f32 0.0, %v694
      %v696 = vpop.f32.mrf.mxu0
      %v697 = vpop.f32.mrf.mxu0
      %698 = vdwg.mxu0
      %v699 = vadd.f32 %v639, %v693
      %v700 = vadd.f32 %v640, %v695
      %s701 = scalar_lea.vmem %s2, 16
      %v702 = vld [vmem:[%s701] sm:$0xf]
      %703 = vrot.lane.b32.xlu0 %v466, 111
      %v704 = vpop.permute.xlu0 %703
      %705 = vrot.lane.b32.xlu0 %v467, 111
      %v706 = vpop.permute.xlu0 %705
      %vm707 = vcmask 908288
      %v708 = vsel %vm707, %v704, %v706
      %v710 = vsel %vm479, %v702, 0
      %v713 = vsel %vm483, %v708, 0
      %v716 = vsel %vm483, %v706, 0
      %718 = vmatprep.subr.bf16.mxu0 0
      %719 = vmatpush1.bf16.msra.mxu0 0
      %720 = vmatprep.subr.bf16.mxu0 0
      %721 = vmatpush1.bf16.msra.mxu0 0
      %722 = vmatprep.subr.bf16.mxu0 0
      %723 = vmatpush1.bf16.msra.mxu0 0
      %724 = vmatprep.subr.bf16.mxu0 0
      %725 = vmatpush1.bf16.msra.mxu0 0
      %726 = vmatprep.subr.bf16.mxu0 0
      %727 = vmatpush1.bf16.msra.mxu0 0
      %728 = vmatprep.subr.bf16.mxu0 0
      %729 = vmatpush1.bf16.msra.mxu0 0
      %730 = vmatprep.subr.bf16.mxu0 0
      %731 = vmatpush1.bf16.msra.mxu0 0
      %732 = vmatprep.subr.bf16.mxu0 %v716
      %733 = vmatpush1.bf16.msra.mxu0 %v713
      %734 = vmatprep.subr.bf16.mxu0 0
      %735 = vmatpush2.bf16.msra.mxu0 0
      %736 = vmatprep.subr.bf16.mxu0 0
      %737 = vmatpush2.bf16.msra.mxu0 0
      %738 = vmatprep.subr.bf16.mxu0 0
      %739 = vmatpush2.bf16.msra.mxu0 0
      %740 = vmatprep.subr.bf16.mxu0 0
      %741 = vmatpush2.bf16.msra.mxu0 0
      %742 = vmatprep.subr.bf16.mxu0 0
      %743 = vmatpush2.bf16.msra.mxu0 0
      %744 = vmatprep.subr.bf16.mxu0 0
      %745 = vmatpush2.bf16.msra.mxu0 0
      %746 = vmatprep.subr.bf16.mxu0 0
      %747 = vmatpush2.bf16.msra.mxu0 0
      %748 = vmatprep.subr.bf16.mxu0 0
      %749 = vmatpush2.bf16.msra.mxu0 0
      %750 = vmatprep.mubr.bf16.mxu0 0
      %751 = vmatmul.mubr.bf16.gmra.mxu0 %v710
      %v752 = vpop.f32.mrf.mxu0
      %v753 = vadd.f32 0.0, %v752
      %v754 = vpop.f32.mrf.mxu0
      %v755 = vadd.f32 0.0, %v754
      %v756 = vpop.f32.mrf.mxu0
      %v757 = vpop.f32.mrf.mxu0
      %758 = vdwg.mxu0
      %v759 = vadd.f32 %v699, %v753
      %v760 = vadd.f32 %v700, %v755
      %s761 = scalar_lea.vmem %s2, 20
      %v762 = vld [vmem:[%s761] sm:$0xf]
      %763 = vrot.lane.b32.xlu0 %v466, 110
      %v764 = vpop.permute.xlu0 %763
      %765 = vrot.lane.b32.xlu0 %v467, 110
      %v766 = vpop.permute.xlu0 %765
      %vm767 = vcmask 900096
      %v768 = vsel %vm767, %v764, %v766
      %v770 = vsel %vm479, %v762, 0
      %v773 = vsel %vm483, %v768, 0
      %v776 = vsel %vm483, %v766, 0
      %778 = vmatprep.subr.bf16.mxu0 0
      %779 = vmatpush1.bf16.msra.mxu0 0
      %780 = vmatprep.subr.bf16.mxu0 0
      %781 = vmatpush1.bf16.msra.mxu0 0
      %782 = vmatprep.subr.bf16.mxu0 0
      %783 = vmatpush1.bf16.msra.mxu0 0
      %784 = vmatprep.subr.bf16.mxu0 0
      %785 = vmatpush1.bf16.msra.mxu0 0
      %786 = vmatprep.subr.bf16.mxu0 0
      %787 = vmatpush1.bf16.msra.mxu0 0
      %788 = vmatprep.subr.bf16.mxu0 0
      %789 = vmatpush1.bf16.msra.mxu0 0
      %790 = vmatprep.subr.bf16.mxu0 0
      %791 = vmatpush1.bf16.msra.mxu0 0
      %792 = vmatprep.subr.bf16.mxu0 %v776
      %793 = vmatpush1.bf16.msra.mxu0 %v773
      %794 = vmatprep.subr.bf16.mxu0 0
      %795 = vmatpush2.bf16.msra.mxu0 0
      %796 = vmatprep.subr.bf16.mxu0 0
      %797 = vmatpush2.bf16.msra.mxu0 0
      %798 = vmatprep.subr.bf16.mxu0 0
      %799 = vmatpush2.bf16.msra.mxu0 0
      %800 = vmatprep.subr.bf16.mxu0 0
      %801 = vmatpush2.bf16.msra.mxu0 0
      %802 = vmatprep.subr.bf16.mxu0 0
      %803 = vmatpush2.bf16.msra.mxu0 0
      %804 = vmatprep.subr.bf16.mxu0 0
      %805 = vmatpush2.bf16.msra.mxu0 0
      %806 = vmatprep.subr.bf16.mxu0 0
      %807 = vmatpush2.bf16.msra.mxu0 0
      %808 = vmatprep.subr.bf16.mxu0 0
      %809 = vmatpush2.bf16.msra.mxu0 0
      %810 = vmatprep.mubr.bf16.mxu0 0
      %811 = vmatmul.mubr.bf16.gmra.mxu0 %v770
      %v812 = vpop.f32.mrf.mxu0
      %v813 = vadd.f32 0.0, %v812
      %v814 = vpop.f32.mrf.mxu0
      %v815 = vadd.f32 0.0, %v814
      %v816 = vpop.f32.mrf.mxu0
      %v817 = vpop.f32.mrf.mxu0
      %818 = vdwg.mxu0
      %v819 = vadd.f32 %v759, %v813
      %v820 = vadd.f32 %v760, %v815
      %s821 = scalar_lea.vmem %s2, 24
      %v822 = vld [vmem:[%s821] sm:$0xf]
      %823 = vrot.lane.b32.xlu0 %v466, 96
      %v824 = vpop.permute.xlu0 %823
      %825 = vrot.lane.b32.xlu0 %v467, 96
      %v826 = vpop.permute.xlu0 %825
      %vm827 = vcmask 785408
      %v828 = vsel %vm827, %v824, %v826
      %v830 = vsel %vm479, %v822, 0
      %v833 = vsel %vm483, %v828, 0
      %v836 = vsel %vm483, %v826, 0
      %838 = vmatprep.subr.bf16.mxu0 0
      %839 = vmatpush1.bf16.msra.mxu0 0
      %840 = vmatprep.subr.bf16.mxu0 0
      %841 = vmatpush1.bf16.msra.mxu0 0
      %842 = vmatprep.subr.bf16.mxu0 0
      %843 = vmatpush1.bf16.msra.mxu0 0
      %844 = vmatprep.subr.bf16.mxu0 0
      %845 = vmatpush1.bf16.msra.mxu0 0
      %846 = vmatprep.subr.bf16.mxu0 0
      %847 = vmatpush1.bf16.msra.mxu0 0
      %848 = vmatprep.subr.bf16.mxu0 0
      %849 = vmatpush1.bf16.msra.mxu0 0
      %850 = vmatprep.subr.bf16.mxu0 0
      %851 = vmatpush1.bf16.msra.mxu0 0
      %852 = vmatprep.subr.bf16.mxu0 %v836
      %853 = vmatpush1.bf16.msra.mxu0 %v833
      %854 = vmatprep.subr.bf16.mxu0 0
      %855 = vmatpush2.bf16.msra.mxu0 0
      %856 = vmatprep.subr.bf16.mxu0 0
      %857 = vmatpush2.bf16.msra.mxu0 0
      %858 = vmatprep.subr.bf16.mxu0 0
      %859 = vmatpush2.bf16.msra.mxu0 0
      %860 = vmatprep.subr.bf16.mxu0 0
      %861 = vmatpush2.bf16.msra.mxu0 0
      %862 = vmatprep.subr.bf16.mxu0 0
      %863 = vmatpush2.bf16.msra.mxu0 0
      %864 = vmatprep.subr.bf16.mxu0 0
      %865 = vmatpush2.bf16.msra.mxu0 0
      %866 = vmatprep.subr.bf16.mxu0 0
      %867 = vmatpush2.bf16.msra.mxu0 0
      %868 = vmatprep.subr.bf16.mxu0 0
      %869 = vmatpush2.bf16.msra.mxu0 0
      %870 = vmatprep.mubr.bf16.mxu0 0
      %871 = vmatmul.mubr.bf16.gmra.mxu0 %v830
      %v872 = vpop.f32.mrf.mxu0
      %v873 = vadd.f32 0.0, %v872
      %v874 = vpop.f32.mrf.mxu0
      %v875 = vadd.f32 0.0, %v874
      %v876 = vpop.f32.mrf.mxu0
      %v877 = vpop.f32.mrf.mxu0
      %878 = vdwg.mxu0
      %v879 = vadd.f32 %v819, %v873
      %v880 = vadd.f32 %v820, %v875
      %s881 = scalar_lea.vmem %s2, 28
      %v882 = vld [vmem:[%s881] sm:$0xf]
      %883 = vrot.lane.b32.xlu0 %v466, 95
      %v884 = vpop.permute.xlu0 %883
      %885 = vrot.lane.b32.xlu0 %v467, 95
      %v886 = vpop.permute.xlu0 %885
      %vm887 = vcmask 777216
      %v888 = vsel %vm887, %v884, %v886
      %v890 = vsel %vm479, %v882, 0
      %v893 = vsel %vm483, %v888, 0
      %v896 = vsel %vm483, %v886, 0
      %898 = vmatprep.subr.bf16.mxu0 0
      %899 = vmatpush1.bf16.msra.mxu0 0
      %900 = vmatprep.subr.bf16.mxu0 0
      %901 = vmatpush1.bf16.msra.mxu0 0
      %902 = vmatprep.subr.bf16.mxu0 0
      %903 = vmatpush1.bf16.msra.mxu0 0
      %904 = vmatprep.subr.bf16.mxu0 0
      %905 = vmatpush1.bf16.msra.mxu0 0
      %906 = vmatprep.subr.bf16.mxu0 0
      %907 = vmatpush1.bf16.msra.mxu0 0
      %908 = vmatprep.subr.bf16.mxu0 0
      %909 = vmatpush1.bf16.msra.mxu0 0
      %910 = vmatprep.subr.bf16.mxu0 0
      %911 = vmatpush1.bf16.msra.mxu0 0
      %912 = vmatprep.subr.bf16.mxu0 %v896
      %913 = vmatpush1.bf16.msra.mxu0 %v893
      %914 = vmatprep.subr.bf16.mxu0 0
      %915 = vmatpush2.bf16.msra.mxu0 0
      %916 = vmatprep.subr.bf16.mxu0 0
      %917 = vmatpush2.bf16.msra.mxu0 0
      %918 = vmatprep.subr.bf16.mxu0 0
      %919 = vmatpush2.bf16.msra.mxu0 0
      %920 = vmatprep.subr.bf16.mxu0 0
      %921 = vmatpush2.bf16.msra.mxu0 0
      %922 = vmatprep.subr.bf16.mxu0 0
      %923 = vmatpush2.bf16.msra.mxu0 0
      %924 = vmatprep.subr.bf16.mxu0 0
      %925 = vmatpush2.bf16.msra.mxu0 0
      %926 = vmatprep.subr.bf16.mxu0 0
      %927 = vmatpush2.bf16.msra.mxu0 0
      %928 = vmatprep.subr.bf16.mxu0 0
      %929 = vmatpush2.bf16.msra.mxu0 0
      %930 = vmatprep.mubr.bf16.mxu0 0
      %931 = vmatmul.mubr.bf16.gmra.mxu0 %v890
      %v932 = vpop.f32.mrf.mxu0
      %v933 = vadd.f32 0.0, %v932
      %v934 = vpop.f32.mrf.mxu0
      %v935 = vadd.f32 0.0, %v934
      %v936 = vpop.f32.mrf.mxu0
      %v937 = vpop.f32.mrf.mxu0
      %938 = vdwg.mxu0
      %v939 = vadd.f32 %v879, %v933
      %v940 = vadd.f32 %v880, %v935
      %s941 = scalar_lea.vmem %s2, 32
      %v942 = vld [vmem:[%s941] sm:$0xf]
      %943 = vrot.lane.b32.xlu0 %v466, 94
      %v944 = vpop.permute.xlu0 %943
      %945 = vrot.lane.b32.xlu0 %v467, 94
      %v946 = vpop.permute.xlu0 %945
      %vm947 = vcmask 769024
      %v948 = vsel %vm947, %v944, %v946
      %v950 = vsel %vm479, %v942, 0
      %v953 = vsel %vm483, %v948, 0
      %v956 = vsel %vm483, %v946, 0
      %958 = vmatprep.subr.bf16.mxu0 0
      %959 = vmatpush1.bf16.msra.mxu0 0
      %960 = vmatprep.subr.bf16.mxu0 0
      %961 = vmatpush1.bf16.msra.mxu0 0
      %962 = vmatprep.subr.bf16.mxu0 0
      %963 = vmatpush1.bf16.msra.mxu0 0
      %964 = vmatprep.subr.bf16.mxu0 0
      %965 = vmatpush1.bf16.msra.mxu0 0
      %966 = vmatprep.subr.bf16.mxu0 0
      %967 = vmatpush1.bf16.msra.mxu0 0
      %968 = vmatprep.subr.bf16.mxu0 0
      %969 = vmatpush1.bf16.msra.mxu0 0
      %970 = vmatprep.subr.bf16.mxu0 0
      %971 = vmatpush1.bf16.msra.mxu0 0
      %972 = vmatprep.subr.bf16.mxu0 %v956
      %973 = vmatpush1.bf16.msra.mxu0 %v953
      %974 = vmatprep.subr.bf16.mxu0 0
      %975 = vmatpush2.bf16.msra.mxu0 0
      %976 = vmatprep.subr.bf16.mxu0 0
      %977 = vmatpush2.bf16.msra.mxu0 0
      %978 = vmatprep.subr.bf16.mxu0 0
      %979 = vmatpush2.bf16.msra.mxu0 0
      %980 = vmatprep.subr.bf16.mxu0 0
      %981 = vmatpush2.bf16.msra.mxu0 0
      %982 = vmatprep.subr.bf16.mxu0 0
      %983 = vmatpush2.bf16.msra.mxu0 0
      %984 = vmatprep.subr.bf16.mxu0 0
      %985 = vmatpush2.bf16.msra.mxu0 0
      %986 = vmatprep.subr.bf16.mxu0 0
      %987 = vmatpush2.bf16.msra.mxu0 0
      %988 = vmatprep.subr.bf16.mxu0 0
      %989 = vmatpush2.bf16.msra.mxu0 0
      %990 = vmatprep.mubr.bf16.mxu0 0
      %991 = vmatmul.mubr.bf16.gmra.mxu0 %v950
      %v992 = vpop.f32.mrf.mxu0
      %v993 = vadd.f32 0.0, %v992
      %v994 = vpop.f32.mrf.mxu0
      %v995 = vadd.f32 0.0, %v994
      %v996 = vpop.f32.mrf.mxu0
      %v997 = vpop.f32.mrf.mxu0
      %998 = vdwg.mxu0
      %v999 = vadd.f32 %v939, %v993
      %v1000 = vadd.f32 %v940, %v995
      %v1001 = vld [vmem:[%s3] sm:$0xff]
      %1003 = vset.pattern.permute.xlu0 0
      %1004 = vperm.xlu0 %1003, %v1001
      %v1005 = vpop.permute.xlu0 %1004
      %v1007 = vadd.f32 %v999, %v1005
      %v1008 = vadd.f32 %v1000, %v1005
      %v1009 = vmax.f32 %v1007, 0.0
      %v1010 = vmax.f32 %v1008, 0.0
      %v1011 = vpack.c.bf16 %v1009, %v1009
      %v1012 = vpack.c.bf16 %v1010, %v1010
      %v1013 = vld [vmem:[%s4] sm:$0xf]
      %s1014 = scalar_lea.vmem %s4, 4
      %v1015 = vld [vmem:[%s1014] sm:$0xf]
      %1018 = vrot.lane.b32.xlu0 %v1011, 127
      %v1019 = vpop.permute.xlu0 %1018
      %1020 = vrot.lane.b32.xlu0 %v1012, 127
      %v1021 = vpop.permute.xlu0 %1020
      %v1022 = vsel %vm477, %v1019, %v1021
      %vm1023 = vcmask 64512
      %v1025 = vsel %vm1023, %v1015, 0
      %vm1027 = vcmask 1043456
      %v1029 = vsel %vm1027, %v1022, 0
      %v1032 = vsel %vm1027, %v1021, 0
      %1034 = vmatprep.subr.bf16.mxu0 0
      %1035 = vmatpush1.bf16.msra.mxu0 0
      %1036 = vmatprep.subr.bf16.mxu0 0
      %1037 = vmatpush1.bf16.msra.mxu0 0
      %1038 = vmatprep.subr.bf16.mxu0 0
      %1039 = vmatpush1.bf16.msra.mxu0 0
      %1040 = vmatprep.subr.bf16.mxu0 0
      %1041 = vmatpush1.bf16.msra.mxu0 0
      %1042 = vmatprep.subr.bf16.mxu0 0
      %1043 = vmatpush1.bf16.msra.mxu0 0
      %1044 = vmatprep.subr.bf16.mxu0 0
      %1045 = vmatpush1.bf16.msra.mxu0 0
      %1046 = vmatprep.subr.bf16.mxu0 0
      %1047 = vmatpush1.bf16.msra.mxu0 0
      %1048 = vmatprep.subr.bf16.mxu0 %v1032
      %1049 = vmatpush1.bf16.msra.mxu0 %v1029
      %1050 = vmatprep.subr.bf16.mxu0 0
      %1051 = vmatpush2.bf16.msra.mxu0 0
      %1052 = vmatprep.subr.bf16.mxu0 0
      %1053 = vmatpush2.bf16.msra.mxu0 0
      %1054 = vmatprep.subr.bf16.mxu0 0
      %1055 = vmatpush2.bf16.msra.mxu0 0
      %1056 = vmatprep.subr.bf16.mxu0 0
      %1057 = vmatpush2.bf16.msra.mxu0 0
      %1058 = vmatprep.subr.bf16.mxu0 0
      %1059 = vmatpush2.bf16.msra.mxu0 0
      %1060 = vmatprep.subr.bf16.mxu0 0
      %1061 = vmatpush2.bf16.msra.mxu0 0
      %1062 = vmatprep.subr.bf16.mxu0 0
      %1063 = vmatpush2.bf16.msra.mxu0 0
      %1064 = vmatprep.subr.bf16.mxu0 0
      %1065 = vmatpush2.bf16.msra.mxu0 0
      %1066 = vmatprep.mubr.bf16.mxu0 0
      %1067 = vmatmul.mubr.bf16.gmra.mxu0 %v1025
      %v1068 = vpop.f32.mrf.mxu0
      %v1069 = vadd.f32 0.0, %v1068
      %v1070 = vpop.f32.mrf.mxu0
      %v1071 = vadd.f32 0.0, %v1070
      %v1072 = vpop.f32.mrf.mxu0
      %v1073 = vpop.f32.mrf.mxu0
      %1074 = vdwg.mxu0
      %v1076 = vsel %vm1023, %v1013, 0
      %v1079 = vsel %vm1027, %v1011, 0
      %v1082 = vsel %vm1027, %v1012, 0
      %1084 = vmatprep.subr.bf16.mxu0 0
      %1085 = vmatpush1.bf16.msra.mxu0 0
      %1086 = vmatprep.subr.bf16.mxu0 0
      %1087 = vmatpush1.bf16.msra.mxu0 0
      %1088 = vmatprep.subr.bf16.mxu0 0
      %1089 = vmatpush1.bf16.msra.mxu0 0
      %1090 = vmatprep.subr.bf16.mxu0 0
      %1091 = vmatpush1.bf16.msra.mxu0 0
      %1092 = vmatprep.subr.bf16.mxu0 0
      %1093 = vmatpush1.bf16.msra.mxu0 0
      %1094 = vmatprep.subr.bf16.mxu0 0
      %1095 = vmatpush1.bf16.msra.mxu0 0
      %1096 = vmatprep.subr.bf16.mxu0 0
      %1097 = vmatpush1.bf16.msra.mxu0 0
      %1098 = vmatprep.subr.bf16.mxu0 %v1082
      %1099 = vmatpush1.bf16.msra.mxu0 %v1079
      %1100 = vmatprep.subr.bf16.mxu0 0
      %1101 = vmatpush2.bf16.msra.mxu0 0
      %1102 = vmatprep.subr.bf16.mxu0 0
      %1103 = vmatpush2.bf16.msra.mxu0 0
      %1104 = vmatprep.subr.bf16.mxu0 0
      %1105 = vmatpush2.bf16.msra.mxu0 0
      %1106 = vmatprep.subr.bf16.mxu0 0
      %1107 = vmatpush2.bf16.msra.mxu0 0
      %1108 = vmatprep.subr.bf16.mxu0 0
      %1109 = vmatpush2.bf16.msra.mxu0 0
      %1110 = vmatprep.subr.bf16.mxu0 0
      %1111 = vmatpush2.bf16.msra.mxu0 0
      %1112 = vmatprep.subr.bf16.mxu0 0
      %1113 = vmatpush2.bf16.msra.mxu0 0
      %1114 = vmatprep.subr.bf16.mxu0 0
      %1115 = vmatpush2.bf16.msra.mxu0 0
      %1116 = vmatprep.mubr.bf16.mxu0 0
      %1117 = vmatmul.mubr.bf16.gmra.mxu0 %v1076
      %v1118 = vpop.f32.mrf.mxu0
      %v1119 = vadd.f32 %v1069, %v1118
      %v1120 = vpop.f32.mrf.mxu0
      %v1121 = vadd.f32 %v1071, %v1120
      %v1122 = vpop.f32.mrf.mxu0
      %v1123 = vpop.f32.mrf.mxu0
      %1124 = vdwg.mxu0
      %s1125 = scalar_lea.vmem %s4, 8
      %v1126 = vld [vmem:[%s1125] sm:$0xf]
      %1127 = vrot.lane.b32.xlu0 %v1011, 126
      %v1128 = vpop.permute.xlu0 %1127
      %1129 = vrot.lane.b32.xlu0 %v1012, 126
      %v1130 = vpop.permute.xlu0 %1129
      %v1131 = vsel %vm587, %v1128, %v1130
      %v1133 = vsel %vm1023, %v1126, 0
      %v1136 = vsel %vm1027, %v1131, 0
      %v1139 = vsel %vm1027, %v1130, 0
      %1141 = vmatprep.subr.bf16.mxu0 0
      %1142 = vmatpush1.bf16.msra.mxu0 0
      %1143 = vmatprep.subr.bf16.mxu0 0
      %1144 = vmatpush1.bf16.msra.mxu0 0
      %1145 = vmatprep.subr.bf16.mxu0 0
      %1146 = vmatpush1.bf16.msra.mxu0 0
      %1147 = vmatprep.subr.bf16.mxu0 0
      %1148 = vmatpush1.bf16.msra.mxu0 0
      %1149 = vmatprep.subr.bf16.mxu0 0
      %1150 = vmatpush1.bf16.msra.mxu0 0
      %1151 = vmatprep.subr.bf16.mxu0 0
      %1152 = vmatpush1.bf16.msra.mxu0 0
      %1153 = vmatprep.subr.bf16.mxu0 0
      %1154 = vmatpush1.bf16.msra.mxu0 0
      %1155 = vmatprep.subr.bf16.mxu0 %v1139
      %1156 = vmatpush1.bf16.msra.mxu0 %v1136
      %1157 = vmatprep.subr.bf16.mxu0 0
      %1158 = vmatpush2.bf16.msra.mxu0 0
      %1159 = vmatprep.subr.bf16.mxu0 0
      %1160 = vmatpush2.bf16.msra.mxu0 0
      %1161 = vmatprep.subr.bf16.mxu0 0
      %1162 = vmatpush2.bf16.msra.mxu0 0
      %1163 = vmatprep.subr.bf16.mxu0 0
      %1164 = vmatpush2.bf16.msra.mxu0 0
      %1165 = vmatprep.subr.bf16.mxu0 0
      %1166 = vmatpush2.bf16.msra.mxu0 0
      %1167 = vmatprep.subr.bf16.mxu0 0
      %1168 = vmatpush2.bf16.msra.mxu0 0
      %1169 = vmatprep.subr.bf16.mxu0 0
      %1170 = vmatpush2.bf16.msra.mxu0 0
      %1171 = vmatprep.subr.bf16.mxu0 0
      %1172 = vmatpush2.bf16.msra.mxu0 0
      %1173 = vmatprep.mubr.bf16.mxu0 0
      %1174 = vmatmul.mubr.bf16.gmra.mxu0 %v1133
      %v1175 = vpop.f32.mrf.mxu0
      %v1176 = vadd.f32 0.0, %v1175
      %v1177 = vpop.f32.mrf.mxu0
      %v1178 = vadd.f32 0.0, %v1177
      %v1179 = vpop.f32.mrf.mxu0
      %v1180 = vpop.f32.mrf.mxu0
      %1181 = vdwg.mxu0
      %v1182 = vadd.f32 %v1119, %v1176
      %v1183 = vadd.f32 %v1121, %v1178
      %s1184 = scalar_lea.vmem %s4, 12
      %v1185 = vld [vmem:[%s1184] sm:$0xf]
      %1186 = vrot.lane.b32.xlu0 %v1011, 112
      %v1187 = vpop.permute.xlu0 %1186
      %1188 = vrot.lane.b32.xlu0 %v1012, 112
      %v1189 = vpop.permute.xlu0 %1188
      %v1190 = vsel %vm647, %v1187, %v1189
      %v1192 = vsel %vm1023, %v1185, 0
      %v1195 = vsel %vm1027, %v1190, 0
      %v1198 = vsel %vm1027, %v1189, 0
      %1200 = vmatprep.subr.bf16.mxu0 0
      %1201 = vmatpush1.bf16.msra.mxu0 0
      %1202 = vmatprep.subr.bf16.mxu0 0
      %1203 = vmatpush1.bf16.msra.mxu0 0
      %1204 = vmatprep.subr.bf16.mxu0 0
      %1205 = vmatpush1.bf16.msra.mxu0 0
      %1206 = vmatprep.subr.bf16.mxu0 0
      %1207 = vmatpush1.bf16.msra.mxu0 0
      %1208 = vmatprep.subr.bf16.mxu0 0
      %1209 = vmatpush1.bf16.msra.mxu0 0
      %1210 = vmatprep.subr.bf16.mxu0 0
      %1211 = vmatpush1.bf16.msra.mxu0 0
      %1212 = vmatprep.subr.bf16.mxu0 0
      %1213 = vmatpush1.bf16.msra.mxu0 0
      %1214 = vmatprep.subr.bf16.mxu0 %v1198
      %1215 = vmatpush1.bf16.msra.mxu0 %v1195
      %1216 = vmatprep.subr.bf16.mxu0 0
      %1217 = vmatpush2.bf16.msra.mxu0 0
      %1218 = vmatprep.subr.bf16.mxu0 0
      %1219 = vmatpush2.bf16.msra.mxu0 0
      %1220 = vmatprep.subr.bf16.mxu0 0
      %1221 = vmatpush2.bf16.msra.mxu0 0
      %1222 = vmatprep.subr.bf16.mxu0 0
      %1223 = vmatpush2.bf16.msra.mxu0 0
      %1224 = vmatprep.subr.bf16.mxu0 0
      %1225 = vmatpush2.bf16.msra.mxu0 0
      %1226 = vmatprep.subr.bf16.mxu0 0
      %1227 = vmatpush2.bf16.msra.mxu0 0
      %1228 = vmatprep.subr.bf16.mxu0 0
      %1229 = vmatpush2.bf16.msra.mxu0 0
      %1230 = vmatprep.subr.bf16.mxu0 0
      %1231 = vmatpush2.bf16.msra.mxu0 0
      %1232 = vmatprep.mubr.bf16.mxu0 0
      %1233 = vmatmul.mubr.bf16.gmra.mxu0 %v1192
      %v1234 = vpop.f32.mrf.mxu0
      %v1235 = vadd.f32 0.0, %v1234
      %v1236 = vpop.f32.mrf.mxu0
      %v1237 = vadd.f32 0.0, %v1236
      %v1238 = vpop.f32.mrf.mxu0
      %v1239 = vpop.f32.mrf.mxu0
      %1240 = vdwg.mxu0
      %v1241 = vadd.f32 %v1182, %v1235
      %v1242 = vadd.f32 %v1183, %v1237
      %s1243 = scalar_lea.vmem %s4, 16
      %v1244 = vld [vmem:[%s1243] sm:$0xf]
      %1245 = vrot.lane.b32.xlu0 %v1011, 111
      %v1246 = vpop.permute.xlu0 %1245
      %1247 = vrot.lane.b32.xlu0 %v1012, 111
      %v1248 = vpop.permute.xlu0 %1247
      %v1249 = vsel %vm707, %v1246, %v1248
      %v1251 = vsel %vm1023, %v1244, 0
      %v1254 = vsel %vm1027, %v1249, 0
      %v1257 = vsel %vm1027, %v1248, 0
      %1259 = vmatprep.subr.bf16.mxu0 0
      %1260 = vmatpush1.bf16.msra.mxu0 0
      %1261 = vmatprep.subr.bf16.mxu0 0
      %1262 = vmatpush1.bf16.msra.mxu0 0
      %1263 = vmatprep.subr.bf16.mxu0 0
      %1264 = vmatpush1.bf16.msra.mxu0 0
      %1265 = vmatprep.subr.bf16.mxu0 0
      %1266 = vmatpush1.bf16.msra.mxu0 0
      %1267 = vmatprep.subr.bf16.mxu0 0
      %1268 = vmatpush1.bf16.msra.mxu0 0
      %1269 = vmatprep.subr.bf16.mxu0 0
      %1270 = vmatpush1.bf16.msra.mxu0 0
      %1271 = vmatprep.subr.bf16.mxu0 0
      %1272 = vmatpush1.bf16.msra.mxu0 0
      %1273 = vmatprep.subr.bf16.mxu0 %v1257
      %1274 = vmatpush1.bf16.msra.mxu0 %v1254
      %1275 = vmatprep.subr.bf16.mxu0 0
      %1276 = vmatpush2.bf16.msra.mxu0 0
      %1277 = vmatprep.subr.bf16.mxu0 0
      %1278 = vmatpush2.bf16.msra.mxu0 0
      %1279 = vmatprep.subr.bf16.mxu0 0
      %1280 = vmatpush2.bf16.msra.mxu0 0
      %1281 = vmatprep.subr.bf16.mxu0 0
      %1282 = vmatpush2.bf16.msra.mxu0 0
      %1283 = vmatprep.subr.bf16.mxu0 0
      %1284 = vmatpush2.bf16.msra.mxu0 0
      %1285 = vmatprep.subr.bf16.mxu0 0
      %1286 = vmatpush2.bf16.msra.mxu0 0
      %1287 = vmatprep.subr.bf16.mxu0 0
      %1288 = vmatpush2.bf16.msra.mxu0 0
      %1289 = vmatprep.subr.bf16.mxu0 0
      %1290 = vmatpush2.bf16.msra.mxu0 0
      %1291 = vmatprep.mubr.bf16.mxu0 0
      %1292 = vmatmul.mubr.bf16.gmra.mxu0 %v1251
      %v1293 = vpop.f32.mrf.mxu0
      %v1294 = vadd.f32 0.0, %v1293
      %v1295 = vpop.f32.mrf.mxu0
      %v1296 = vadd.f32 0.0, %v1295
      %v1297 = vpop.f32.mrf.mxu0
      %v1298 = vpop.f32.mrf.mxu0
      %1299 = vdwg.mxu0
      %v1300 = vadd.f32 %v1241, %v1294
      %v1301 = vadd.f32 %v1242, %v1296
      %s1302 = scalar_lea.vmem %s4, 20
      %v1303 = vld [vmem:[%s1302] sm:$0xf]
      %1304 = vrot.lane.b32.xlu0 %v1011, 110
      %v1305 = vpop.permute.xlu0 %1304
      %1306 = vrot.lane.b32.xlu0 %v1012, 110
      %v1307 = vpop.permute.xlu0 %1306
      %v1308 = vsel %vm767, %v1305, %v1307
      %v1310 = vsel %vm1023, %v1303, 0
      %v1313 = vsel %vm1027, %v1308, 0
      %v1316 = vsel %vm1027, %v1307, 0
      %1318 = vmatprep.subr.bf16.mxu0 0
      %1319 = vmatpush1.bf16.msra.mxu0 0
      %1320 = vmatprep.subr.bf16.mxu0 0
      %1321 = vmatpush1.bf16.msra.mxu0 0
      %1322 = vmatprep.subr.bf16.mxu0 0
      %1323 = vmatpush1.bf16.msra.mxu0 0
      %1324 = vmatprep.subr.bf16.mxu0 0
      %1325 = vmatpush1.bf16.msra.mxu0 0
      %1326 = vmatprep.subr.bf16.mxu0 0
      %1327 = vmatpush1.bf16.msra.mxu0 0
      %1328 = vmatprep.subr.bf16.mxu0 0
      %1329 = vmatpush1.bf16.msra.mxu0 0
      %1330 = vmatprep.subr.bf16.mxu0 0
      %1331 = vmatpush1.bf16.msra.mxu0 0
      %1332 = vmatprep.subr.bf16.mxu0 %v1316
      %1333 = vmatpush1.bf16.msra.mxu0 %v1313
      %1334 = vmatprep.subr.bf16.mxu0 0
      %1335 = vmatpush2.bf16.msra.mxu0 0
      %1336 = vmatprep.subr.bf16.mxu0 0
      %1337 = vmatpush2.bf16.msra.mxu0 0
      %1338 = vmatprep.subr.bf16.mxu0 0
      %1339 = vmatpush2.bf16.msra.mxu0 0
      %1340 = vmatprep.subr.bf16.mxu0 0
      %1341 = vmatpush2.bf16.msra.mxu0 0
      %1342 = vmatprep.subr.bf16.mxu0 0
      %1343 = vmatpush2.bf16.msra.mxu0 0
      %1344 = vmatprep.subr.bf16.mxu0 0
      %1345 = vmatpush2.bf16.msra.mxu0 0
      %1346 = vmatprep.subr.bf16.mxu0 0
      %1347 = vmatpush2.bf16.msra.mxu0 0
      %1348 = vmatprep.subr.bf16.mxu0 0
      %1349 = vmatpush2.bf16.msra.mxu0 0
      %1350 = vmatprep.mubr.bf16.mxu0 0
      %1351 = vmatmul.mubr.bf16.gmra.mxu0 %v1310
      %v1352 = vpop.f32.mrf.mxu0
      %v1353 = vadd.f32 0.0, %v1352
      %v1354 = vpop.f32.mrf.mxu0
      %v1355 = vadd.f32 0.0, %v1354
      %v1356 = vpop.f32.mrf.mxu0
      %v1357 = vpop.f32.mrf.mxu0
      %1358 = vdwg.mxu0
      %v1359 = vadd.f32 %v1300, %v1353
      %v1360 = vadd.f32 %v1301, %v1355
      %s1361 = scalar_lea.vmem %s4, 24
      %v1362 = vld [vmem:[%s1361] sm:$0xf]
      %1363 = vrot.lane.b32.xlu0 %v1011, 96
      %v1364 = vpop.permute.xlu0 %1363
      %1365 = vrot.lane.b32.xlu0 %v1012, 96
      %v1366 = vpop.permute.xlu0 %1365
      %v1367 = vsel %vm827, %v1364, %v1366
      %v1369 = vsel %vm1023, %v1362, 0
      %v1372 = vsel %vm1027, %v1367, 0
      %v1375 = vsel %vm1027, %v1366, 0
      %1377 = vmatprep.subr.bf16.mxu0 0
      %1378 = vmatpush1.bf16.msra.mxu0 0
      %1379 = vmatprep.subr.bf16.mxu0 0
      %1380 = vmatpush1.bf16.msra.mxu0 0
      %1381 = vmatprep.subr.bf16.mxu0 0
      %1382 = vmatpush1.bf16.msra.mxu0 0
      %1383 = vmatprep.subr.bf16.mxu0 0
      %1384 = vmatpush1.bf16.msra.mxu0 0
      %1385 = vmatprep.subr.bf16.mxu0 0
      %1386 = vmatpush1.bf16.msra.mxu0 0
      %1387 = vmatprep.subr.bf16.mxu0 0
      %1388 = vmatpush1.bf16.msra.mxu0 0
      %1389 = vmatprep.subr.bf16.mxu0 0
      %1390 = vmatpush1.bf16.msra.mxu0 0
      %1391 = vmatprep.subr.bf16.mxu0 %v1375
      %1392 = vmatpush1.bf16.msra.mxu0 %v1372
      %1393 = vmatprep.subr.bf16.mxu0 0
      %1394 = vmatpush2.bf16.msra.mxu0 0
      %1395 = vmatprep.subr.bf16.mxu0 0
      %1396 = vmatpush2.bf16.msra.mxu0 0
      %1397 = vmatprep.subr.bf16.mxu0 0
      %1398 = vmatpush2.bf16.msra.mxu0 0
      %1399 = vmatprep.subr.bf16.mxu0 0
      %1400 = vmatpush2.bf16.msra.mxu0 0
      %1401 = vmatprep.subr.bf16.mxu0 0
      %1402 = vmatpush2.bf16.msra.mxu0 0
      %1403 = vmatprep.subr.bf16.mxu0 0
      %1404 = vmatpush2.bf16.msra.mxu0 0
      %1405 = vmatprep.subr.bf16.mxu0 0
      %1406 = vmatpush2.bf16.msra.mxu0 0
      %1407 = vmatprep.subr.bf16.mxu0 0
      %1408 = vmatpush2.bf16.msra.mxu0 0
      %1409 = vmatprep.mubr.bf16.mxu0 0
      %1410 = vmatmul.mubr.bf16.gmra.mxu0 %v1369
      %v1411 = vpop.f32.mrf.mxu0
      %v1412 = vadd.f32 0.0, %v1411
      %v1413 = vpop.f32.mrf.mxu0
      %v1414 = vadd.f32 0.0, %v1413
      %v1415 = vpop.f32.mrf.mxu0
      %v1416 = vpop.f32.mrf.mxu0
      %1417 = vdwg.mxu0
      %v1418 = vadd.f32 %v1359, %v1412
      %v1419 = vadd.f32 %v1360, %v1414
      %s1420 = scalar_lea.vmem %s4, 28
      %v1421 = vld [vmem:[%s1420] sm:$0xf]
      %1422 = vrot.lane.b32.xlu0 %v1011, 95
      %v1423 = vpop.permute.xlu0 %1422
      %1424 = vrot.lane.b32.xlu0 %v1012, 95
      %v1425 = vpop.permute.xlu0 %1424
      %v1426 = vsel %vm887, %v1423, %v1425
      %v1428 = vsel %vm1023, %v1421, 0
      %v1431 = vsel %vm1027, %v1426, 0
      %v1434 = vsel %vm1027, %v1425, 0
      %1436 = vmatprep.subr.bf16.mxu0 0
      %1437 = vmatpush1.bf16.msra.mxu0 0
      %1438 = vmatprep.subr.bf16.mxu0 0
      %1439 = vmatpush1.bf16.msra.mxu0 0
      %1440 = vmatprep.subr.bf16.mxu0 0
      %1441 = vmatpush1.bf16.msra.mxu0 0
      %1442 = vmatprep.subr.bf16.mxu0 0
      %1443 = vmatpush1.bf16.msra.mxu0 0
      %1444 = vmatprep.subr.bf16.mxu0 0
      %1445 = vmatpush1.bf16.msra.mxu0 0
      %1446 = vmatprep.subr.bf16.mxu0 0
      %1447 = vmatpush1.bf16.msra.mxu0 0
      %1448 = vmatprep.subr.bf16.mxu0 0
      %1449 = vmatpush1.bf16.msra.mxu0 0
      %1450 = vmatprep.subr.bf16.mxu0 %v1434
      %1451 = vmatpush1.bf16.msra.mxu0 %v1431
      %1452 = vmatprep.subr.bf16.mxu0 0
      %1453 = vmatpush2.bf16.msra.mxu0 0
      %1454 = vmatprep.subr.bf16.mxu0 0
      %1455 = vmatpush2.bf16.msra.mxu0 0
      %1456 = vmatprep.subr.bf16.mxu0 0
      %1457 = vmatpush2.bf16.msra.mxu0 0
      %1458 = vmatprep.subr.bf16.mxu0 0
      %1459 = vmatpush2.bf16.msra.mxu0 0
      %1460 = vmatprep.subr.bf16.mxu0 0
      %1461 = vmatpush2.bf16.msra.mxu0 0
      %1462 = vmatprep.subr.bf16.mxu0 0
      %1463 = vmatpush2.bf16.msra.mxu0 0
      %1464 = vmatprep.subr.bf16.mxu0 0
      %1465 = vmatpush2.bf16.msra.mxu0 0
      %1466 = vmatprep.subr.bf16.mxu0 0
      %1467 = vmatpush2.bf16.msra.mxu0 0
      %1468 = vmatprep.mubr.bf16.mxu0 0
      %1469 = vmatmul.mubr.bf16.gmra.mxu0 %v1428
      %v1470 = vpop.f32.mrf.mxu0
      %v1471 = vadd.f32 0.0, %v1470
      %v1472 = vpop.f32.mrf.mxu0
      %v1473 = vadd.f32 0.0, %v1472
      %v1474 = vpop.f32.mrf.mxu0
      %v1475 = vpop.f32.mrf.mxu0
      %1476 = vdwg.mxu0
      %v1477 = vadd.f32 %v1418, %v1471
      %v1478 = vadd.f32 %v1419, %v1473
      %s1479 = scalar_lea.vmem %s4, 32
      %v1480 = vld [vmem:[%s1479] sm:$0xf]
      %1481 = vrot.lane.b32.xlu0 %v1011, 94
      %v1482 = vpop.permute.xlu0 %1481
      %1483 = vrot.lane.b32.xlu0 %v1012, 94
      %v1484 = vpop.permute.xlu0 %1483
      %v1485 = vsel %vm947, %v1482, %v1484
      %v1487 = vsel %vm1023, %v1480, 0
      %v1490 = vsel %vm1027, %v1485, 0
      %v1493 = vsel %vm1027, %v1484, 0
      %1495 = vmatprep.subr.bf16.mxu0 0
      %1496 = vmatpush1.bf16.msra.mxu0 0
      %1497 = vmatprep.subr.bf16.mxu0 0
      %1498 = vmatpush1.bf16.msra.mxu0 0
      %1499 = vmatprep.subr.bf16.mxu0 0
      %1500 = vmatpush1.bf16.msra.mxu0 0
      %1501 = vmatprep.subr.bf16.mxu0 0
      %1502 = vmatpush1.bf16.msra.mxu0 0
      %1503 = vmatprep.subr.bf16.mxu0 0
      %1504 = vmatpush1.bf16.msra.mxu0 0
      %1505 = vmatprep.subr.bf16.mxu0 0
      %1506 = vmatpush1.bf16.msra.mxu0 0
      %1507 = vmatprep.subr.bf16.mxu0 0
      %1508 = vmatpush1.bf16.msra.mxu0 0
      %1509 = vmatprep.subr.bf16.mxu0 %v1493
      %1510 = vmatpush1.bf16.msra.mxu0 %v1490
      %1511 = vmatprep.subr.bf16.mxu0 0
      %1512 = vmatpush2.bf16.msra.mxu0 0
      %1513 = vmatprep.subr.bf16.mxu0 0
      %1514 = vmatpush2.bf16.msra.mxu0 0
      %1515 = vmatprep.subr.bf16.mxu0 0
      %1516 = vmatpush2.bf16.msra.mxu0 0
      %1517 = vmatprep.subr.bf16.mxu0 0
      %1518 = vmatpush2.bf16.msra.mxu0 0
      %1519 = vmatprep.subr.bf16.mxu0 0
      %1520 = vmatpush2.bf16.msra.mxu0 0
      %1521 = vmatprep.subr.bf16.mxu0 0
      %1522 = vmatpush2.bf16.msra.mxu0 0
      %1523 = vmatprep.subr.bf16.mxu0 0
      %1524 = vmatpush2.bf16.msra.mxu0 0
      %1525 = vmatprep.subr.bf16.mxu0 0
      %1526 = vmatpush2.bf16.msra.mxu0 0
      %1527 = vmatprep.mubr.bf16.mxu0 0
      %1528 = vmatmul.mubr.bf16.gmra.mxu0 %v1487
      %v1529 = vpop.f32.mrf.mxu0
      %v1530 = vadd.f32 0.0, %v1529
      %v1531 = vpop.f32.mrf.mxu0
      %v1532 = vadd.f32 0.0, %v1531
      %v1533 = vpop.f32.mrf.mxu0
      %v1534 = vpop.f32.mrf.mxu0
      %1535 = vdwg.mxu0
      %v1536 = vadd.f32 %v1477, %v1530
      %v1537 = vadd.f32 %v1478, %v1532
      %v1538 = vld [vmem:[%s5] sm:$0xff]
      %1540 = vset.pattern.permute.xlu0 0
      %1541 = vperm.xlu0 %1540, %v1538
      %v1542 = vpop.permute.xlu0 %1541
      %v1544 = vadd.f32 %v1536, %v1542
      %v1545 = vadd.f32 %v1537, %v1542
      %v1546 = vmax.f32 %v1544, 0.0
      %v1547 = vmax.f32 %v1545, 0.0
      %1550 = vrot.lane.b32.xlu0 %v1546, 127
      %v1551 = vpop.permute.xlu0 %1550
      %1552 = vrot.lane.b32.xlu0 %v1547, 127
      %v1553 = vpop.permute.xlu0 %1552
      %vm1554 = vcmask 1039360
      %v1555 = vsel %vm1554, %v1551, %v1553
      %v1558 = vmax.f32 %v1546, %v1555
      %v1559 = vmax.f32 %v1547, %v1553
      %1562 = vrot.lane.b32.xlu0 %v1558, 112
      %v1563 = vpop.permute.xlu0 %1562
      %1564 = vrot.lane.b32.xlu0 %v1559, 112
      %v1565 = vpop.permute.xlu0 %1564
      %vm1566 = vcmask 916480
      %v1567 = vsel %vm1566, %v1563, %v1565
      %v1570 = vmax.f32 %v1558, %v1567
      %v1571 = vmax.f32 %v1559, %v1565
      %v1572 = vld [vmem:[%s11] sm:$0xff]
      %v1573 = vld [vmem:[%s11 + $0x8] sm:$0xff]
      %v1574 = vld [vmem:[%s11 + $0x10] sm:$0xff]
      %v1575 = vld [vmem:[%s11 + $0x18] sm:$0xff]
      %v1576 = vld [vmem:[%s11 + $0x20] sm:$0xff]
      %v1577 = vld [vmem:[%s11 + $0x28] sm:$0xff]
      %v1578 = vld [vmem:[%s11 + $0x30] sm:$0xff]
      %v1579 = vld [vmem:[%s11 + $0x38] sm:$0xff]
      %v1580 = vld [vmem:[%s11 + $0x40] sm:$0xff]
      %v1581 = vld [vmem:[%s11 + $0x48] sm:$0xff]
      %v1582 = vld [vmem:[%s11 + $0x50] sm:$0xff]
      %v1583 = vld [vmem:[%s11 + $0x58] sm:$0xff]
      %v1584 = vld [vmem:[%s11 + $0x60] sm:$0xff]
      %v1585 = vld [vmem:[%s11 + $0x68] sm:$0xff]
      %v1586 = vld [vmem:[%s11 + $0x70] sm:$0xff]
      %v1587 = vld [vmem:[%s11 + $0x78] sm:$0xff]
      %v1588 = vld [vmem:[%s11 + $0x80] sm:$0xff]
      %v1589 = vld [vmem:[%s11 + $0x88] sm:$0xff]
      %v1590 = vld [vmem:[%s11 + $0x90] sm:$0xff]
      %v1591 = vld [vmem:[%s11 + $0x98] sm:$0xff]
      %v1592 = vld [vmem:[%s11 + $0xa0] sm:$0xff]
      %v1593 = vld [vmem:[%s11 + $0xa8] sm:$0x7]
      %vm1594 = vcmask 351232
      %v1596 = vsel %vm1594, %v1571, 0
      %vm1598 = vcmask 1042432
      %v1600 = vsel %vm1598, %v1593, 0
      %1602 = vmatprep.subr.mxu0 0.0
      %1603 = vmatpush1.msra.mxu0 %v1587
      %1604 = vmatprep.subr.mxu0 0.0
      %1605 = vmatpush1.msra.mxu0 %v1586
      %1606 = vmatprep.subr.mxu0 0.0
      %1607 = vmatpush1.msra.mxu0 %v1585
      %1608 = vmatprep.subr.mxu0 0.0
      %1609 = vmatpush1.msra.mxu0 %v1584
      %1610 = vmatprep.subr.mxu0 0.0
      %1611 = vmatpush1.msra.mxu0 %v1583
      %1612 = vmatprep.subr.mxu0 0.0
      %1613 = vmatpush1.msra.mxu0 %v1582
      %1614 = vmatprep.subr.mxu0 0.0
      %1615 = vmatpush1.msra.mxu0 %v1581
      %1616 = vmatprep.subr.mxu0 0.0
      %1617 = vmatpush1.msra.mxu0 %v1580
      %1618 = vmatprep.subr.mxu0 0.0
      %1619 = vmatpush1.msra.mxu0 %v1579
      %1620 = vmatprep.subr.mxu0 0.0
      %1621 = vmatpush1.msra.mxu0 %v1578
      %1622 = vmatprep.subr.mxu0 0.0
      %1623 = vmatpush1.msra.mxu0 %v1577
      %1624 = vmatprep.subr.mxu0 0.0
      %1625 = vmatpush1.msra.mxu0 %v1576
      %1626 = vmatprep.subr.mxu0 0.0
      %1627 = vmatpush1.msra.mxu0 %v1575
      %1628 = vmatprep.subr.mxu0 0.0
      %1629 = vmatpush1.msra.mxu0 %v1574
      %1630 = vmatprep.subr.mxu0 0.0
      %1631 = vmatpush1.msra.mxu0 %v1573
      %1632 = vmatprep.subr.mxu0 0.0
      %1633 = vmatpush1.msra.mxu0 %v1572
      %1634 = vmatprep.subr.mxu0 0.0
      %1635 = vmatpush2.msra.mxu0 0.0
      %1636 = vmatprep.subr.mxu0 0.0
      %1637 = vmatpush2.msra.mxu0 0.0
      %1638 = vmatprep.subr.mxu0 0.0
      %1639 = vmatpush2.msra.mxu0 0.0
      %1640 = vmatprep.subr.mxu0 0.0
      %1641 = vmatpush2.msra.mxu0 0.0
      %1642 = vmatprep.subr.mxu0 0.0
      %1643 = vmatpush2.msra.mxu0 0.0
      %1644 = vmatprep.subr.mxu0 0.0
      %1645 = vmatpush2.msra.mxu0 0.0
      %1646 = vmatprep.subr.mxu0 0.0
      %1647 = vmatpush2.msra.mxu0 0.0
      %1648 = vmatprep.subr.mxu0 0.0
      %1649 = vmatpush2.msra.mxu0 0.0
      %1650 = vmatprep.subr.mxu0 0.0
      %1651 = vmatpush2.msra.mxu0 0.0
      %1652 = vmatprep.subr.mxu0 0.0
      %1653 = vmatpush2.msra.mxu0 0.0
      %1654 = vmatprep.subr.mxu0 0.0
      %1655 = vmatpush2.msra.mxu0 %v1600
      %1656 = vmatprep.subr.mxu0 0.0
      %1657 = vmatpush2.msra.mxu0 %v1592
      %1658 = vmatprep.subr.mxu0 0.0
      %1659 = vmatpush2.msra.mxu0 %v1591
      %1660 = vmatprep.subr.mxu0 0.0
      %1661 = vmatpush2.msra.mxu0 %v1590
      %1662 = vmatprep.subr.mxu0 0.0
      %1663 = vmatpush2.msra.mxu0 %v1589
      %1664 = vmatprep.subr.mxu0 0.0
      %1665 = vmatpush2.msra.mxu0 %v1588
      %1666 = vmatprep.mubr.f32.mxu0 %v1596
      %1667 = vmatmul.mubr.f32.gmra.mxu0 %v1570
      %v1668 = vpop.f32.mrf.mxu0
      %v1669 = vadd.f32 0.0, %v1668
      %v1670 = vpop.f32.mrf.mxu0
      %1671 = vdwg.mxu0
      %v1672 = vld [vmem:[%s455] sm:$0x77]
      %v1673 = vld [vmem:[%s455 + $0x8] sm:$0x77]
      %v1674 = vld [vmem:[%s455 + $0x10] sm:$0x77]
      %v1675 = vld [vmem:[%s455 + $0x18] sm:$0x77]
      %v1680 = vcombine.high %v1672, %v1672
      %v1681 = vcombine.high %v1673, %v1673
      %v1682 = vcombine.high %v1674, %v1674
      %v1683 = vcombine.high %v1675, %v1675
      %v1688 = vpack.c.bf16 %v1672, %v1672
      %v1689 = vpack.c.bf16 %v1680, %v1680
      %v1690 = vpack.c.bf16 %v1673, %v1673
      %v1691 = vpack.c.bf16 %v1681, %v1681
      %v1692 = vpack.c.bf16 %v1674, %v1674
      %v1693 = vpack.c.bf16 %v1682, %v1682
      %v1694 = vpack.c.bf16 %v1675, %v1675
      %v1695 = vpack.c.bf16 %v1683, %v1683
      %v1696 = vld [vmem:[%s10] sm:$0xf]
      %v1697 = vld [vmem:[%s10 + $0x4] sm:$0xf]
      %v1698 = vld [vmem:[%s10 + $0x8] sm:$0xf]
      %v1699 = vld [vmem:[%s10 + $0xc] sm:$0xf]
      %v1700 = vld [vmem:[%s10 + $0x10] sm:$0xf]
      %v1701 = vld [vmem:[%s10 + $0x14] sm:$0xf]
      %v1702 = vld [vmem:[%s10 + $0x18] sm:$0xf]
      %v1703 = vld [vmem:[%s10 + $0x1c] sm:$0xf]
      %v1704 = vld [vmem:[%s10 + $0x20] sm:$0xf]
      %v1705 = vld [vmem:[%s10 + $0x24] sm:$0xf]
      %v1706 = vld [vmem:[%s10 + $0x28] sm:$0xf]
      %v1707 = vld [vmem:[%s10 + $0x2c] sm:$0xf]
      %v1708 = vld [vmem:[%s10 + $0x30] sm:$0xf]
      %v1709 = vld [vmem:[%s10 + $0x34] sm:$0xf]
      %v1710 = vld [vmem:[%s10 + $0x38] sm:$0xf]
      %v1711 = vld [vmem:[%s10 + $0x3c] sm:$0xf]
      %v1712 = vld [vmem:[%s10 + $0x40] sm:$0xf]
      %v1713 = vld [vmem:[%s10 + $0x44] sm:$0xf]
      %v1714 = vld [vmem:[%s10 + $0x48] sm:$0xf]
      %v1715 = vld [vmem:[%s10 + $0x4c] sm:$0xf]
      %v1716 = vld [vmem:[%s10 + $0x50] sm:$0xf]
      %v1717 = vld [vmem:[%s10 + $0x54] sm:$0xf]
      %v1718 = vld [vmem:[%s10 + $0x58] sm:$0xf]
      %v1719 = vld [vmem:[%s10 + $0x5c] sm:$0xf]
      %v1720 = vld [vmem:[%s10 + $0x60] sm:$0xf]
      %v1721 = vld [vmem:[%s10 + $0x64] sm:$0xf]
      %v1722 = vld [vmem:[%s10 + $0x68] sm:$0xf]
      %v1723 = vld [vmem:[%s10 + $0x6c] sm:$0xf]
      %v1724 = vld [vmem:[%s10 + $0x70] sm:$0xf]
      %v1725 = vld [vmem:[%s10 + $0x74] sm:$0xf]
      %v1726 = vld [vmem:[%s10 + $0x78] sm:$0xf]
      %v1727 = vld [vmem:[%s10 + $0x7c] sm:$0xf]
      %v1728 = vld [vmem:[%s10 + $0x80] sm:$0xf]
      %v1729 = vld [vmem:[%s10 + $0x84] sm:$0xf]
      %v1730 = vld [vmem:[%s10 + $0x88] sm:$0xf]
      %v1731 = vld [vmem:[%s10 + $0x8c] sm:$0xf]
      %v1732 = vld [vmem:[%s10 + $0x90] sm:$0xf]
      %v1733 = vld [vmem:[%s10 + $0x94] sm:$0xf]
      %v1734 = vld [vmem:[%s10 + $0x98] sm:$0xf]
      %v1735 = vld [vmem:[%s10 + $0x9c] sm:$0xf]
      %v1736 = vld [vmem:[%s10 + $0xa0] sm:$0xf]
      %v1737 = vld [vmem:[%s10 + $0xa4] sm:$0xf]
      %v1738 = vld [vmem:[%s10 + $0xa8] sm:$0xf]
      %v1739 = vld [vmem:[%s10 + $0xac] sm:$0xf]
      %v1740 = vld [vmem:[%s10 + $0xb0] sm:$0xf]
      %v1741 = vld [vmem:[%s10 + $0xb4] sm:$0xf]
      %v1742 = vld [vmem:[%s10 + $0xb8] sm:$0xf]
      %v1743 = vld [vmem:[%s10 + $0xbc] sm:$0xf]
      %v1744 = vld [vmem:[%s10 + $0xc0] sm:$0xf]
      %v1745 = vld [vmem:[%s10 + $0xc4] sm:$0xf]
      %v1746 = vld [vmem:[%s10 + $0xc8] sm:$0xf]
      %v1747 = vld [vmem:[%s10 + $0xcc] sm:$0xf]
      %v1748 = vld [vmem:[%s10 + $0xd0] sm:$0xf]
      %v1749 = vld [vmem:[%s10 + $0xd4] sm:$0xf]
      %v1750 = vld [vmem:[%s10 + $0xd8] sm:$0xf]
      %v1751 = vld [vmem:[%s10 + $0xdc] sm:$0xf]
      %v1752 = vld [vmem:[%s10 + $0xe0] sm:$0xf]
      %v1753 = vld [vmem:[%s10 + $0xe4] sm:$0xf]
      %v1754 = vld [vmem:[%s10 + $0xe8] sm:$0xf]
      %v1755 = vld [vmem:[%s10 + $0xec] sm:$0xf]
      %v1756 = vld [vmem:[%s10 + $0xf0] sm:$0xf]
      %v1757 = vld [vmem:[%s10 + $0xf4] sm:$0xf]
      %v1758 = vld [vmem:[%s10 + $0xf8] sm:$0xf]
      %v1759 = vld [vmem:[%s10 + $0xfc] sm:$0xf]
      %v1760 = vld [vmem:[%s10 + $0x100] sm:$0xf]
      %v1761 = vld [vmem:[%s10 + $0x104] sm:$0xf]
      %v1762 = vld [vmem:[%s10 + $0x108] sm:$0xf]
      %v1763 = vld [vmem:[%s10 + $0x10c] sm:$0xf]
      %v1764 = vld [vmem:[%s10 + $0x110] sm:$0xf]
      %v1765 = vld [vmem:[%s10 + $0x114] sm:$0xf]
      %v1766 = vld [vmem:[%s10 + $0x118] sm:$0xf]
      %v1767 = vld [vmem:[%s10 + $0x11c] sm:$0xf]
      %v1768 = vld [vmem:[%s10 + $0x120] sm:$0xf]
      %v1769 = vld [vmem:[%s10 + $0x124] sm:$0xf]
      %v1770 = vld [vmem:[%s10 + $0x128] sm:$0xf]
      %v1771 = vld [vmem:[%s10 + $0x12c] sm:$0xf]
      %v1772 = vld [vmem:[%s10 + $0x130] sm:$0xf]
      %v1773 = vld [vmem:[%s10 + $0x134] sm:$0xf]
      %v1774 = vld [vmem:[%s10 + $0x138] sm:$0xf]
      %v1775 = vld [vmem:[%s10 + $0x13c] sm:$0xf]
      %v1776 = vld [vmem:[%s10 + $0x140] sm:$0xf]
      %v1777 = vld [vmem:[%s10 + $0x144] sm:$0xf]
      %v1778 = vld [vmem:[%s10 + $0x148] sm:$0xf]
      %v1779 = vld [vmem:[%s10 + $0x14c] sm:$0xf]
      %v1780 = vld [vmem:[%s10 + $0x150] sm:$0xf]
      %v1781 = vld [vmem:[%s10 + $0x154] sm:$0xf]
      %v1782 = vld [vmem:[%s10 + $0x158] sm:$0xf]
      %v1783 = vld [vmem:[%s10 + $0x15c] sm:$0xf]
      %v1784 = vld [vmem:[%s10 + $0x160] sm:$0xf]
      %v1785 = vld [vmem:[%s10 + $0x164] sm:$0xf]
      %v1786 = vld [vmem:[%s10 + $0x168] sm:$0xf]
      %v1787 = vld [vmem:[%s10 + $0x16c] sm:$0xf]
      %v1788 = vld [vmem:[%s10 + $0x170] sm:$0xf]
      %v1789 = vld [vmem:[%s10 + $0x174] sm:$0xf]
      %v1790 = vld [vmem:[%s10 + $0x178] sm:$0xf]
      %v1791 = vld [vmem:[%s10 + $0x17c] sm:$0xf]
      %v1792 = vld [vmem:[%s10 + $0x180] sm:$0xf]
      %v1793 = vld [vmem:[%s10 + $0x184] sm:$0xf]
      %v1794 = vld [vmem:[%s10 + $0x188] sm:$0xf]
      %v1795 = vld [vmem:[%s10 + $0x18c] sm:$0xf]
      %v1796 = vld [vmem:[%s10 + $0x190] sm:$0xf]
      %v1797 = vld [vmem:[%s10 + $0x194] sm:$0xf]
      %v1798 = vld [vmem:[%s10 + $0x198] sm:$0xf]
      %v1799 = vld [vmem:[%s10 + $0x19c] sm:$0xf]
      %v1800 = vld [vmem:[%s10 + $0x1a0] sm:$0xf]
      %v1801 = vld [vmem:[%s10 + $0x1a4] sm:$0xf]
      %v1802 = vld [vmem:[%s10 + $0x1a8] sm:$0xf]
      %v1803 = vld [vmem:[%s10 + $0x1ac] sm:$0xf]
      %v1804 = vld [vmem:[%s10 + $0x1b0] sm:$0xf]
      %v1805 = vld [vmem:[%s10 + $0x1b4] sm:$0xf]
      %v1806 = vld [vmem:[%s10 + $0x1b8] sm:$0xf]
      %v1807 = vld [vmem:[%s10 + $0x1bc] sm:$0xf]
      %v1808 = vld [vmem:[%s10 + $0x1c0] sm:$0xf]
      %v1809 = vld [vmem:[%s10 + $0x1c4] sm:$0xf]
      %v1810 = vld [vmem:[%s10 + $0x1c8] sm:$0xf]
      %v1811 = vld [vmem:[%s10 + $0x1cc] sm:$0xf]
      %v1812 = vld [vmem:[%s10 + $0x1d0] sm:$0xf]
      %v1813 = vld [vmem:[%s10 + $0x1d4] sm:$0xf]
      %v1814 = vld [vmem:[%s10 + $0x1d8] sm:$0xf]
      %v1815 = vld [vmem:[%s10 + $0x1dc] sm:$0xf]
      %v1816 = vld [vmem:[%s10 + $0x1e0] sm:$0xf]
      %v1817 = vld [vmem:[%s10 + $0x1e4] sm:$0xf]
      %v1818 = vld [vmem:[%s10 + $0x1e8] sm:$0xf]
      %v1819 = vld [vmem:[%s10 + $0x1ec] sm:$0xf]
      %v1820 = vld [vmem:[%s10 + $0x1f0] sm:$0xf]
      %v1821 = vld [vmem:[%s10 + $0x1f4] sm:$0xf]
      %v1822 = vld [vmem:[%s10 + $0x1f8] sm:$0xf]
      %v1823 = vld [vmem:[%s10 + $0x1fc] sm:$0xf]
      %v1952 = vunpack.c.l.b16 %v1696
      %v1953 = vunpack.c.l.b16 %v1697
      %v1954 = vunpack.c.l.b16 %v1698
      %v1955 = vunpack.c.l.b16 %v1699
      %v1956 = vunpack.c.l.b16 %v1700
      %v1957 = vunpack.c.l.b16 %v1701
      %v1958 = vunpack.c.l.b16 %v1702
      %v1959 = vunpack.c.l.b16 %v1703
      %v1960 = vunpack.c.l.b16 %v1704
      %v1961 = vunpack.c.l.b16 %v1705
      %v1962 = vunpack.c.l.b16 %v1706
      %v1963 = vunpack.c.l.b16 %v1707
      %v1964 = vunpack.c.l.b16 %v1708
      %v1965 = vunpack.c.l.b16 %v1709
      %v1966 = vunpack.c.l.b16 %v1710
      %v1967 = vunpack.c.l.b16 %v1711
      %v1968 = vunpack.c.l.b16 %v1712
      %v1969 = vunpack.c.l.b16 %v1713
      %v1970 = vunpack.c.l.b16 %v1714
      %v1971 = vunpack.c.l.b16 %v1715
      %v1972 = vunpack.c.l.b16 %v1716
      %v1973 = vunpack.c.l.b16 %v1717
      %v1974 = vunpack.c.l.b16 %v1718
      %v1975 = vunpack.c.l.b16 %v1719
      %v1976 = vunpack.c.l.b16 %v1720
      %v1977 = vunpack.c.l.b16 %v1721
      %v1978 = vunpack.c.l.b16 %v1722
      %v1979 = vunpack.c.l.b16 %v1723
      %v1980 = vunpack.c.l.b16 %v1724
      %v1981 = vunpack.c.l.b16 %v1725
      %v1982 = vunpack.c.l.b16 %v1726
      %v1983 = vunpack.c.l.b16 %v1727
      %v1984 = vunpack.c.l.b16 %v1728
      %v1985 = vunpack.c.l.b16 %v1729
      %v1986 = vunpack.c.l.b16 %v1730
      %v1987 = vunpack.c.l.b16 %v1731
      %v1988 = vunpack.c.l.b16 %v1732
      %v1989 = vunpack.c.l.b16 %v1733
      %v1990 = vunpack.c.l.b16 %v1734
      %v1991 = vunpack.c.l.b16 %v1735
      %v1992 = vunpack.c.l.b16 %v1736
      %v1993 = vunpack.c.l.b16 %v1737
      %v1994 = vunpack.c.l.b16 %v1738
      %v1995 = vunpack.c.l.b16 %v1739
      %v1996 = vunpack.c.l.b16 %v1740
      %v1997 = vunpack.c.l.b16 %v1741
      %v1998 = vunpack.c.l.b16 %v1742
      %v1999 = vunpack.c.l.b16 %v1743
      %v2000 = vunpack.c.l.b16 %v1744
      %v2001 = vunpack.c.l.b16 %v1745
      %v2002 = vunpack.c.l.b16 %v1746
      %v2003 = vunpack.c.l.b16 %v1747
      %v2004 = vunpack.c.l.b16 %v1748
      %v2005 = vunpack.c.l.b16 %v1749
      %v2006 = vunpack.c.l.b16 %v1750
      %v2007 = vunpack.c.l.b16 %v1751
      %v2008 = vunpack.c.l.b16 %v1752
      %v2009 = vunpack.c.l.b16 %v1753
      %v2010 = vunpack.c.l.b16 %v1754
      %v2011 = vunpack.c.l.b16 %v1755
      %v2012 = vunpack.c.l.b16 %v1756
      %v2013 = vunpack.c.l.b16 %v1757
      %v2014 = vunpack.c.l.b16 %v1758
      %v2015 = vunpack.c.l.b16 %v1759
      %v2016 = vunpack.c.l.b16 %v1760
      %v2017 = vunpack.c.l.b16 %v1761
      %v2018 = vunpack.c.l.b16 %v1762
      %v2019 = vunpack.c.l.b16 %v1763
      %v2020 = vunpack.c.l.b16 %v1764
      %v2021 = vunpack.c.l.b16 %v1765
      %v2022 = vunpack.c.l.b16 %v1766
      %v2023 = vunpack.c.l.b16 %v1767
      %v2024 = vunpack.c.l.b16 %v1768
      %v2025 = vunpack.c.l.b16 %v1769
      %v2026 = vunpack.c.l.b16 %v1770
      %v2027 = vunpack.c.l.b16 %v1771
      %v2028 = vunpack.c.l.b16 %v1772
      %v2029 = vunpack.c.l.b16 %v1773
      %v2030 = vunpack.c.l.b16 %v1774
      %v2031 = vunpack.c.l.b16 %v1775
      %v2032 = vunpack.c.l.b16 %v1776
      %v2033 = vunpack.c.l.b16 %v1777
      %v2034 = vunpack.c.l.b16 %v1778
      %v2035 = vunpack.c.l.b16 %v1779
      %v2036 = vunpack.c.l.b16 %v1780
      %v2037 = vunpack.c.l.b16 %v1781
      %v2038 = vunpack.c.l.b16 %v1782
      %v2039 = vunpack.c.l.b16 %v1783
      %v2040 = vunpack.c.l.b16 %v1784
      %v2041 = vunpack.c.l.b16 %v1785
      %v2042 = vunpack.c.l.b16 %v1786
      %v2043 = vunpack.c.l.b16 %v1787
      %v2044 = vunpack.c.l.b16 %v1788
      %v2045 = vunpack.c.l.b16 %v1789
      %v2046 = vunpack.c.l.b16 %v1790
      %v2047 = vunpack.c.l.b16 %v1791
      %v2048 = vunpack.c.l.b16 %v1792
      %v2049 = vunpack.c.l.b16 %v1793
      %v2050 = vunpack.c.l.b16 %v1794
      %v2051 = vunpack.c.l.b16 %v1795
      %v2052 = vunpack.c.l.b16 %v1796
      %v2053 = vunpack.c.l.b16 %v1797
      %v2054 = vunpack.c.l.b16 %v1798
      %v2055 = vunpack.c.l.b16 %v1799
      %v2056 = vunpack.c.l.b16 %v1800
      %v2057 = vunpack.c.l.b16 %v1801
      %v2058 = vunpack.c.l.b16 %v1802
      %v2059 = vunpack.c.l.b16 %v1803
      %v2060 = vunpack.c.l.b16 %v1804
      %v2061 = vunpack.c.l.b16 %v1805
      %v2062 = vunpack.c.l.b16 %v1806
      %v2063 = vunpack.c.l.b16 %v1807
      %v2064 = vunpack.c.l.b16 %v1808
      %v2065 = vunpack.c.l.b16 %v1809
      %v2066 = vunpack.c.l.b16 %v1810
      %v2067 = vunpack.c.l.b16 %v1811
      %v2068 = vunpack.c.l.b16 %v1812
      %v2069 = vunpack.c.l.b16 %v1813
      %v2070 = vunpack.c.l.b16 %v1814
      %v2071 = vunpack.c.l.b16 %v1815
      %v2072 = vunpack.c.l.b16 %v1816
      %v2073 = vunpack.c.l.b16 %v1817
      %v2074 = vunpack.c.l.b16 %v1818
      %v2075 = vunpack.c.l.b16 %v1819
      %v2076 = vunpack.c.l.b16 %v1820
      %v2077 = vunpack.c.l.b16 %v1821
      %v2078 = vunpack.c.l.b16 %v1822
      %v2079 = vunpack.c.l.b16 %v1823
      %v2080 = vpack.c.b16 %v1953, %v1952
      %v2081 = vpack.c.b16 %v1955, %v1954
      %v2082 = vpack.c.b16 %v1957, %v1956
      %v2083 = vpack.c.b16 %v1959, %v1958
      %v2084 = vpack.c.b16 %v1961, %v1960
      %v2085 = vpack.c.b16 %v1963, %v1962
      %v2086 = vpack.c.b16 %v1965, %v1964
      %v2087 = vpack.c.b16 %v1967, %v1966
      %v2088 = vpack.c.b16 %v1969, %v1968
      %v2089 = vpack.c.b16 %v1971, %v1970
      %v2090 = vpack.c.b16 %v1973, %v1972
      %v2091 = vpack.c.b16 %v1975, %v1974
      %v2092 = vpack.c.b16 %v1977, %v1976
      %v2093 = vpack.c.b16 %v1979, %v1978
      %v2094 = vpack.c.b16 %v1981, %v1980
      %v2095 = vpack.c.b16 %v1983, %v1982
      %v2096 = vpack.c.b16 %v1985, %v1984
      %v2097 = vpack.c.b16 %v1987, %v1986
      %v2098 = vpack.c.b16 %v1989, %v1988
      %v2099 = vpack.c.b16 %v1991, %v1990
      %v2100 = vpack.c.b16 %v1993, %v1992
      %v2101 = vpack.c.b16 %v1995, %v1994
      %v2102 = vpack.c.b16 %v1997, %v1996
      %v2103 = vpack.c.b16 %v1999, %v1998
      %v2104 = vpack.c.b16 %v2001, %v2000
      %v2105 = vpack.c.b16 %v2003, %v2002
      %v2106 = vpack.c.b16 %v2005, %v2004
      %v2107 = vpack.c.b16 %v2007, %v2006
      %v2108 = vpack.c.b16 %v2009, %v2008
      %v2109 = vpack.c.b16 %v2011, %v2010
      %v2110 = vpack.c.b16 %v2013, %v2012
      %v2111 = vpack.c.b16 %v2015, %v2014
      %v2112 = vpack.c.b16 %v2017, %v2016
      %v2113 = vpack.c.b16 %v2019, %v2018
      %v2114 = vpack.c.b16 %v2021, %v2020
      %v2115 = vpack.c.b16 %v2023, %v2022
      %v2116 = vpack.c.b16 %v2025, %v2024
      %v2117 = vpack.c.b16 %v2027, %v2026
      %v2118 = vpack.c.b16 %v2029, %v2028
      %v2119 = vpack.c.b16 %v2031, %v2030
      %v2120 = vpack.c.b16 %v2033, %v2032
      %v2121 = vpack.c.b16 %v2035, %v2034
      %v2122 = vpack.c.b16 %v2037, %v2036
      %v2123 = vpack.c.b16 %v2039, %v2038
      %v2124 = vpack.c.b16 %v2041, %v2040
      %v2125 = vpack.c.b16 %v2043, %v2042
      %v2126 = vpack.c.b16 %v2045, %v2044
      %v2127 = vpack.c.b16 %v2047, %v2046
      %v2128 = vpack.c.b16 %v2049, %v2048
      %v2129 = vpack.c.b16 %v2051, %v2050
      %v2130 = vpack.c.b16 %v2053, %v2052
      %v2131 = vpack.c.b16 %v2055, %v2054
      %v2132 = vpack.c.b16 %v2057, %v2056
      %v2133 = vpack.c.b16 %v2059, %v2058
      %v2134 = vpack.c.b16 %v2061, %v2060
      %v2135 = vpack.c.b16 %v2063, %v2062
      %v2136 = vpack.c.b16 %v2065, %v2064
      %v2137 = vpack.c.b16 %v2067, %v2066
      %v2138 = vpack.c.b16 %v2069, %v2068
      %v2139 = vpack.c.b16 %v2071, %v2070
      %v2140 = vpack.c.b16 %v2073, %v2072
      %v2141 = vpack.c.b16 %v2075, %v2074
      %v2142 = vpack.c.b16 %v2077, %v2076
      %v2143 = vpack.c.b16 %v2079, %v2078
      %2208 = vmatprep.subr.bf16.mxu0 0
      %2209 = vmatpush1.bf16.msra.mxu0 %v2087
      %2210 = vmatprep.subr.bf16.mxu0 0
      %2211 = vmatpush1.bf16.msra.mxu0 %v2086
      %2212 = vmatprep.subr.bf16.mxu0 0
      %2213 = vmatpush1.bf16.msra.mxu0 %v2085
      %2214 = vmatprep.subr.bf16.mxu0 0
      %2215 = vmatpush1.bf16.msra.mxu0 %v2084
      %2216 = vmatprep.subr.bf16.mxu0 0
      %2217 = vmatpush1.bf16.msra.mxu0 %v2083
      %2218 = vmatprep.subr.bf16.mxu0 0
      %2219 = vmatpush1.bf16.msra.mxu0 %v2082
      %2220 = vmatprep.subr.bf16.mxu0 0
      %2221 = vmatpush1.bf16.msra.mxu0 %v2081
      %2222 = vmatprep.subr.bf16.mxu0 0
      %2223 = vmatpush1.bf16.msra.mxu0 %v2080
      %2224 = vmatprep.subr.bf16.mxu0 0
      %2225 = vmatpush2.bf16.msra.mxu0 %v2095
      %2226 = vmatprep.subr.bf16.mxu0 0
      %2227 = vmatpush2.bf16.msra.mxu0 %v2094
      %2228 = vmatprep.subr.bf16.mxu0 0
      %2229 = vmatpush2.bf16.msra.mxu0 %v2093
      %2230 = vmatprep.subr.bf16.mxu0 0
      %2231 = vmatpush2.bf16.msra.mxu0 %v2092
      %2232 = vmatprep.subr.bf16.mxu0 0
      %2233 = vmatpush2.bf16.msra.mxu0 %v2091
      %2234 = vmatprep.subr.bf16.mxu0 0
      %2235 = vmatpush2.bf16.msra.mxu0 %v2090
      %2236 = vmatprep.subr.bf16.mxu0 0
      %2237 = vmatpush2.bf16.msra.mxu0 %v2089
      %2238 = vmatprep.subr.bf16.mxu0 0
      %2239 = vmatpush2.bf16.msra.mxu0 %v2088
      %2240 = vmatprep.mubr.bf16.mxu0 %v1689
      %2241 = vmatmul.mubr.bf16.gmra.mxu0 %v1688
      %v2242 = vpop.f32.mrf.mxu0
      %v2243 = vadd.f32 0.0, %v2242
      %v2244 = vpop.f32.mrf.mxu0
      %v2245 = vpop.f32.mrf.mxu0
      %v2246 = vpop.f32.mrf.mxu0
      %2247 = vdwg.mxu0
      %2248 = vmatprep.subr.bf16.mxu0 0
      %2249 = vmatpush1.bf16.msra.mxu0 %v2103
      %2250 = vmatprep.subr.bf16.mxu0 0
      %2251 = vmatpush1.bf16.msra.mxu0 %v2102
      %2252 = vmatprep.subr.bf16.mxu0 0
      %2253 = vmatpush1.bf16.msra.mxu0 %v2101
      %2254 = vmatprep.subr.bf16.mxu0 0
      %2255 = vmatpush1.bf16.msra.mxu0 %v2100
      %2256 = vmatprep.subr.bf16.mxu0 0
      %2257 = vmatpush1.bf16.msra.mxu0 %v2099
      %2258 = vmatprep.subr.bf16.mxu0 0
      %2259 = vmatpush1.bf16.msra.mxu0 %v2098
      %2260 = vmatprep.subr.bf16.mxu0 0
      %2261 = vmatpush1.bf16.msra.mxu0 %v2097
      %2262 = vmatprep.subr.bf16.mxu0 0
      %2263 = vmatpush1.bf16.msra.mxu0 %v2096
      %2264 = vmatprep.subr.bf16.mxu0 0
      %2265 = vmatpush2.bf16.msra.mxu0 %v2111
      %2266 = vmatprep.subr.bf16.mxu0 0
      %2267 = vmatpush2.bf16.msra.mxu0 %v2110
      %2268 = vmatprep.subr.bf16.mxu0 0
      %2269 = vmatpush2.bf16.msra.mxu0 %v2109
      %2270 = vmatprep.subr.bf16.mxu0 0
      %2271 = vmatpush2.bf16.msra.mxu0 %v2108
      %2272 = vmatprep.subr.bf16.mxu0 0
      %2273 = vmatpush2.bf16.msra.mxu0 %v2107
      %2274 = vmatprep.subr.bf16.mxu0 0
      %2275 = vmatpush2.bf16.msra.mxu0 %v2106
      %2276 = vmatprep.subr.bf16.mxu0 0
      %2277 = vmatpush2.bf16.msra.mxu0 %v2105
      %2278 = vmatprep.subr.bf16.mxu0 0
      %2279 = vmatpush2.bf16.msra.mxu0 %v2104
      %2280 = vmatprep.mubr.bf16.mxu0 %v1691
      %2281 = vmatmul.mubr.bf16.gmra.mxu0 %v1690
      %v2282 = vpop.f32.mrf.mxu0
      %v2283 = vadd.f32 %v2243, %v2282
      %v2284 = vpop.f32.mrf.mxu0
      %v2285 = vpop.f32.mrf.mxu0
      %v2286 = vpop.f32.mrf.mxu0
      %2287 = vdwg.mxu0
      %2288 = vmatprep.subr.bf16.mxu0 0
      %2289 = vmatpush1.bf16.msra.mxu0 %v2119
      %2290 = vmatprep.subr.bf16.mxu0 0
      %2291 = vmatpush1.bf16.msra.mxu0 %v2118
      %2292 = vmatprep.subr.bf16.mxu0 0
      %2293 = vmatpush1.bf16.msra.mxu0 %v2117
      %2294 = vmatprep.subr.bf16.mxu0 0
      %2295 = vmatpush1.bf16.msra.mxu0 %v2116
      %2296 = vmatprep.subr.bf16.mxu0 0
      %2297 = vmatpush1.bf16.msra.mxu0 %v2115
      %2298 = vmatprep.subr.bf16.mxu0 0
      %2299 = vmatpush1.bf16.msra.mxu0 %v2114
      %2300 = vmatprep.subr.bf16.mxu0 0
      %2301 = vmatpush1.bf16.msra.mxu0 %v2113
      %2302 = vmatprep.subr.bf16.mxu0 0
      %2303 = vmatpush1.bf16.msra.mxu0 %v2112
      %2304 = vmatprep.subr.bf16.mxu0 0
      %2305 = vmatpush2.bf16.msra.mxu0 %v2127
      %2306 = vmatprep.subr.bf16.mxu0 0
      %2307 = vmatpush2.bf16.msra.mxu0 %v2126
      %2308 = vmatprep.subr.bf16.mxu0 0
      %2309 = vmatpush2.bf16.msra.mxu0 %v2125
      %2310 = vmatprep.subr.bf16.mxu0 0
      %2311 = vmatpush2.bf16.msra.mxu0 %v2124
      %2312 = vmatprep.subr.bf16.mxu0 0
      %2313 = vmatpush2.bf16.msra.mxu0 %v2123
      %2314 = vmatprep.subr.bf16.mxu0 0
      %2315 = vmatpush2.bf16.msra.mxu0 %v2122
      %2316 = vmatprep.subr.bf16.mxu0 0
      %2317 = vmatpush2.bf16.msra.mxu0 %v2121
      %2318 = vmatprep.subr.bf16.mxu0 0
      %2319 = vmatpush2.bf16.msra.mxu0 %v2120
      %2320 = vmatprep.mubr.bf16.mxu0 %v1693
      %2321 = vmatmul.mubr.bf16.gmra.mxu0 %v1692
      %v2322 = vpop.f32.mrf.mxu0
      %v2323 = vadd.f32 %v2283, %v2322
      %v2324 = vpop.f32.mrf.mxu0
      %v2325 = vpop.f32.mrf.mxu0
      %v2326 = vpop.f32.mrf.mxu0
      %2327 = vdwg.mxu0
      %2328 = vmatprep.subr.bf16.mxu0 0
      %2329 = vmatpush1.bf16.msra.mxu0 %v2135
      %2330 = vmatprep.subr.bf16.mxu0 0
      %2331 = vmatpush1.bf16.msra.mxu0 %v2134
      %2332 = vmatprep.subr.bf16.mxu0 0
      %2333 = vmatpush1.bf16.msra.mxu0 %v2133
      %2334 = vmatprep.subr.bf16.mxu0 0
      %2335 = vmatpush1.bf16.msra.mxu0 %v2132
      %2336 = vmatprep.subr.bf16.mxu0 0
      %2337 = vmatpush1.bf16.msra.mxu0 %v2131
      %2338 = vmatprep.subr.bf16.mxu0 0
      %2339 = vmatpush1.bf16.msra.mxu0 %v2130
      %2340 = vmatprep.subr.bf16.mxu0 0
      %2341 = vmatpush1.bf16.msra.mxu0 %v2129
      %2342 = vmatprep.subr.bf16.mxu0 0
      %2343 = vmatpush1.bf16.msra.mxu0 %v2128
      %2344 = vmatprep.subr.bf16.mxu0 0
      %2345 = vmatpush2.bf16.msra.mxu0 %v2143
      %2346 = vmatprep.subr.bf16.mxu0 0
      %2347 = vmatpush2.bf16.msra.mxu0 %v2142
      %2348 = vmatprep.subr.bf16.mxu0 0
      %2349 = vmatpush2.bf16.msra.mxu0 %v2141
      %2350 = vmatprep.subr.bf16.mxu0 0
      %2351 = vmatpush2.bf16.msra.mxu0 %v2140
      %2352 = vmatprep.subr.bf16.mxu0 0
      %2353 = vmatpush2.bf16.msra.mxu0 %v2139
      %2354 = vmatprep.subr.bf16.mxu0 0
      %2355 = vmatpush2.bf16.msra.mxu0 %v2138
      %2356 = vmatprep.subr.bf16.mxu0 0
      %2357 = vmatpush2.bf16.msra.mxu0 %v2137
      %2358 = vmatprep.subr.bf16.mxu0 0
      %2359 = vmatpush2.bf16.msra.mxu0 %v2136
      %2360 = vmatprep.mubr.bf16.mxu0 %v1695
      %2361 = vmatmul.mubr.bf16.gmra.mxu0 %v1694
      %v2362 = vpop.f32.mrf.mxu0
      %v2363 = vadd.f32 %v2323, %v2362
      %v2364 = vpop.f32.mrf.mxu0
      %v2365 = vpop.f32.mrf.mxu0
      %v2366 = vpop.f32.mrf.mxu0
      %2367 = vdwg.mxu0
      %v2368 = vpack.c.bf16 %v2363, %v2363
      %v2369 = vld [vmem:[%s6] sm:$0xf]
      %s2370 = scalar_lea.vmem %s6, 4
      %v2371 = vld [vmem:[%s2370] sm:$0xf]
      %2373 = vrot.lane.b32.xlu0 %v2368, 127
      %v2374 = vpop.permute.xlu0 %2373
      %vm2375 = vcmask 23552
      %v2377 = vsel %vm2375, %v2371, 0
      %vm2379 = vcmask 1040384
      %v2380 = vsel %vm2379, 4294967295, 65535
      %v2381 = vsel %vm483, %v2380, 0
      %v2383 = vand.u32 %v2374, %v2381
      %2385 = vmatprep.subr.bf16.mxu0 0
      %2386 = vmatpush1.bf16.msra.mxu0 0
      %2387 = vmatprep.subr.bf16.mxu0 0
      %2388 = vmatpush1.bf16.msra.mxu0 0
      %2389 = vmatprep.subr.bf16.mxu0 0
      %2390 = vmatpush1.bf16.msra.mxu0 0
      %2391 = vmatprep.subr.bf16.mxu0 0
      %2392 = vmatpush1.bf16.msra.mxu0 0
      %2393 = vmatprep.subr.bf16.mxu0 0
      %2394 = vmatpush1.bf16.msra.mxu0 0
      %2395 = vmatprep.subr.bf16.mxu0 0
      %2396 = vmatpush1.bf16.msra.mxu0 0
      %2397 = vmatprep.subr.bf16.mxu0 0
      %2398 = vmatpush1.bf16.msra.mxu0 0
      %2399 = vmatprep.subr.bf16.mxu0 0
      %2400 = vmatpush1.bf16.msra.mxu0 %v2383
      %2401 = vmatprep.subr.bf16.mxu0 0
      %2402 = vmatpush2.bf16.msra.mxu0 0
      %2403 = vmatprep.subr.bf16.mxu0 0
      %2404 = vmatpush2.bf16.msra.mxu0 0
      %2405 = vmatprep.subr.bf16.mxu0 0
      %2406 = vmatpush2.bf16.msra.mxu0 0
      %2407 = vmatprep.subr.bf16.mxu0 0
      %2408 = vmatpush2.bf16.msra.mxu0 0
      %2409 = vmatprep.subr.bf16.mxu0 0
      %2410 = vmatpush2.bf16.msra.mxu0 0
      %2411 = vmatprep.subr.bf16.mxu0 0
      %2412 = vmatpush2.bf16.msra.mxu0 0
      %2413 = vmatprep.subr.bf16.mxu0 0
      %2414 = vmatpush2.bf16.msra.mxu0 0
      %2415 = vmatprep.subr.bf16.mxu0 0
      %2416 = vmatpush2.bf16.msra.mxu0 0
      %2417 = vmatprep.mubr.bf16.mxu0 0
      %2418 = vmatmul.mubr.bf16.gmra.mxu0 %v2377
      %v2419 = vpop.f32.mrf.mxu0
      %v2420 = vadd.f32 0.0, %v2419
      %v2421 = vpop.f32.mrf.mxu0
      %v2422 = vpop.f32.mrf.mxu0
      %v2423 = vpop.f32.mrf.mxu0
      %2424 = vdwg.mxu0
      %v2426 = vsel %vm2375, %v2369, 0
      %v2429 = vand.u32 %v2368, %v2381
      %2431 = vmatprep.subr.bf16.mxu0 0
      %2432 = vmatpush1.bf16.msra.mxu0 0
      %2433 = vmatprep.subr.bf16.mxu0 0
      %2434 = vmatpush1.bf16.msra.mxu0 0
      %2435 = vmatprep.subr.bf16.mxu0 0
      %2436 = vmatpush1.bf16.msra.mxu0 0
      %2437 = vmatprep.subr.bf16.mxu0 0
      %2438 = vmatpush1.bf16.msra.mxu0 0
      %2439 = vmatprep.subr.bf16.mxu0 0
      %2440 = vmatpush1.bf16.msra.mxu0 0
      %2441 = vmatprep.subr.bf16.mxu0 0
      %2442 = vmatpush1.bf16.msra.mxu0 0
      %2443 = vmatprep.subr.bf16.mxu0 0
      %2444 = vmatpush1.bf16.msra.mxu0 0
      %2445 = vmatprep.subr.bf16.mxu0 0
      %2446 = vmatpush1.bf16.msra.mxu0 %v2429
      %2447 = vmatprep.subr.bf16.mxu0 0
      %2448 = vmatpush2.bf16.msra.mxu0 0
      %2449 = vmatprep.subr.bf16.mxu0 0
      %2450 = vmatpush2.bf16.msra.mxu0 0
      %2451 = vmatprep.subr.bf16.mxu0 0
      %2452 = vmatpush2.bf16.msra.mxu0 0
      %2453 = vmatprep.subr.bf16.mxu0 0
      %2454 = vmatpush2.bf16.msra.mxu0 0
      %2455 = vmatprep.subr.bf16.mxu0 0
      %2456 = vmatpush2.bf16.msra.mxu0 0
      %2457 = vmatprep.subr.bf16.mxu0 0
      %2458 = vmatpush2.bf16.msra.mxu0 0
      %2459 = vmatprep.subr.bf16.mxu0 0
      %2460 = vmatpush2.bf16.msra.mxu0 0
      %2461 = vmatprep.subr.bf16.mxu0 0
      %2462 = vmatpush2.bf16.msra.mxu0 0
      %2463 = vmatprep.mubr.bf16.mxu0 0
      %2464 = vmatmul.mubr.bf16.gmra.mxu0 %v2426
      %v2465 = vpop.f32.mrf.mxu0
      %v2466 = vadd.f32 %v2420, %v2465
      %v2467 = vpop.f32.mrf.mxu0
      %v2468 = vpop.f32.mrf.mxu0
      %v2469 = vpop.f32.mrf.mxu0
      %2470 = vdwg.mxu0
      %s2471 = scalar_lea.vmem %s6, 8
      %v2472 = vld [vmem:[%s2471] sm:$0xf]
      %2473 = vrot.lane.b32.xlu0 %v2368, 126
      %v2474 = vpop.permute.xlu0 %2473
      %v2476 = vsel %vm2375, %v2472, 0
      %v2479 = vand.u32 %v2474, %v2381
      %2481 = vmatprep.subr.bf16.mxu0 0
      %2482 = vmatpush1.bf16.msra.mxu0 0
      %2483 = vmatprep.subr.bf16.mxu0 0
      %2484 = vmatpush1.bf16.msra.mxu0 0
      %2485 = vmatprep.subr.bf16.mxu0 0
      %2486 = vmatpush1.bf16.msra.mxu0 0
      %2487 = vmatprep.subr.bf16.mxu0 0
      %2488 = vmatpush1.bf16.msra.mxu0 0
      %2489 = vmatprep.subr.bf16.mxu0 0
      %2490 = vmatpush1.bf16.msra.mxu0 0
      %2491 = vmatprep.subr.bf16.mxu0 0
      %2492 = vmatpush1.bf16.msra.mxu0 0
      %2493 = vmatprep.subr.bf16.mxu0 0
      %2494 = vmatpush1.bf16.msra.mxu0 0
      %2495 = vmatprep.subr.bf16.mxu0 0
      %2496 = vmatpush1.bf16.msra.mxu0 %v2479
      %2497 = vmatprep.subr.bf16.mxu0 0
      %2498 = vmatpush2.bf16.msra.mxu0 0
      %2499 = vmatprep.subr.bf16.mxu0 0
      %2500 = vmatpush2.bf16.msra.mxu0 0
      %2501 = vmatprep.subr.bf16.mxu0 0
      %2502 = vmatpush2.bf16.msra.mxu0 0
      %2503 = vmatprep.subr.bf16.mxu0 0
      %2504 = vmatpush2.bf16.msra.mxu0 0
      %2505 = vmatprep.subr.bf16.mxu0 0
      %2506 = vmatpush2.bf16.msra.mxu0 0
      %2507 = vmatprep.subr.bf16.mxu0 0
      %2508 = vmatpush2.bf16.msra.mxu0 0
      %2509 = vmatprep.subr.bf16.mxu0 0
      %2510 = vmatpush2.bf16.msra.mxu0 0
      %2511 = vmatprep.subr.bf16.mxu0 0
      %2512 = vmatpush2.bf16.msra.mxu0 0
      %2513 = vmatprep.mubr.bf16.mxu0 0
      %2514 = vmatmul.mubr.bf16.gmra.mxu0 %v2476
      %v2515 = vpop.f32.mrf.mxu0
      %v2516 = vadd.f32 0.0, %v2515
      %v2517 = vpop.f32.mrf.mxu0
      %v2518 = vpop.f32.mrf.mxu0
      %v2519 = vpop.f32.mrf.mxu0
      %2520 = vdwg.mxu0
      %v2521 = vadd.f32 %v2466, %v2516
      %s2522 = scalar_lea.vmem %s6, 12
      %v2523 = vld [vmem:[%s2522] sm:$0xf]
      %2524 = vrot.lane.b32.xlu0 %v2368, 118
      %v2525 = vpop.permute.xlu0 %2524
      %v2527 = vsel %vm2375, %v2523, 0
      %v2530 = vand.u32 %v2525, %v2381
      %2532 = vmatprep.subr.bf16.mxu0 0
      %2533 = vmatpush1.bf16.msra.mxu0 0
      %2534 = vmatprep.subr.bf16.mxu0 0
      %2535 = vmatpush1.bf16.msra.mxu0 0
      %2536 = vmatprep.subr.bf16.mxu0 0
      %2537 = vmatpush1.bf16.msra.mxu0 0
      %2538 = vmatprep.subr.bf16.mxu0 0
      %2539 = vmatpush1.bf16.msra.mxu0 0
      %2540 = vmatprep.subr.bf16.mxu0 0
      %2541 = vmatpush1.bf16.msra.mxu0 0
      %2542 = vmatprep.subr.bf16.mxu0 0
      %2543 = vmatpush1.bf16.msra.mxu0 0
      %2544 = vmatprep.subr.bf16.mxu0 0
      %2545 = vmatpush1.bf16.msra.mxu0 0
      %2546 = vmatprep.subr.bf16.mxu0 0
      %2547 = vmatpush1.bf16.msra.mxu0 %v2530
      %2548 = vmatprep.subr.bf16.mxu0 0
      %2549 = vmatpush2.bf16.msra.mxu0 0
      %2550 = vmatprep.subr.bf16.mxu0 0
      %2551 = vmatpush2.bf16.msra.mxu0 0
      %2552 = vmatprep.subr.bf16.mxu0 0
      %2553 = vmatpush2.bf16.msra.mxu0 0
      %2554 = vmatprep.subr.bf16.mxu0 0
      %2555 = vmatpush2.bf16.msra.mxu0 0
      %2556 = vmatprep.subr.bf16.mxu0 0
      %2557 = vmatpush2.bf16.msra.mxu0 0
      %2558 = vmatprep.subr.bf16.mxu0 0
      %2559 = vmatpush2.bf16.msra.mxu0 0
      %2560 = vmatprep.subr.bf16.mxu0 0
      %2561 = vmatpush2.bf16.msra.mxu0 0
      %2562 = vmatprep.subr.bf16.mxu0 0
      %2563 = vmatpush2.bf16.msra.mxu0 0
      %2564 = vmatprep.mubr.bf16.mxu0 0
      %2565 = vmatmul.mubr.bf16.gmra.mxu0 %v2527
      %v2566 = vpop.f32.mrf.mxu0
      %v2567 = vadd.f32 0.0, %v2566
      %v2568 = vpop.f32.mrf.mxu0
      %v2569 = vpop.f32.mrf.mxu0
      %v2570 = vpop.f32.mrf.mxu0
      %2571 = vdwg.mxu0
      %v2572 = vadd.f32 %v2521, %v2567
      %s2573 = scalar_lea.vmem %s6, 16
      %v2574 = vld [vmem:[%s2573] sm:$0xf]
      %2575 = vrot.lane.b32.xlu0 %v2368, 117
      %v2576 = vpop.permute.xlu0 %2575
      %v2578 = vsel %vm2375, %v2574, 0
      %v2581 = vand.u32 %v2576, %v2381
      %2583 = vmatprep.subr.bf16.mxu0 0
      %2584 = vmatpush1.bf16.msra.mxu0 0
      %2585 = vmatprep.subr.bf16.mxu0 0
      %2586 = vmatpush1.bf16.msra.mxu0 0
      %2587 = vmatprep.subr.bf16.mxu0 0
      %2588 = vmatpush1.bf16.msra.mxu0 0
      %2589 = vmatprep.subr.bf16.mxu0 0
      %2590 = vmatpush1.bf16.msra.mxu0 0
      %2591 = vmatprep.subr.bf16.mxu0 0
      %2592 = vmatpush1.bf16.msra.mxu0 0
      %2593 = vmatprep.subr.bf16.mxu0 0
      %2594 = vmatpush1.bf16.msra.mxu0 0
      %2595 = vmatprep.subr.bf16.mxu0 0
      %2596 = vmatpush1.bf16.msra.mxu0 0
      %2597 = vmatprep.subr.bf16.mxu0 0
      %2598 = vmatpush1.bf16.msra.mxu0 %v2581
      %2599 = vmatprep.subr.bf16.mxu0 0
      %2600 = vmatpush2.bf16.msra.mxu0 0
      %2601 = vmatprep.subr.bf16.mxu0 0
      %2602 = vmatpush2.bf16.msra.mxu0 0
      %2603 = vmatprep.subr.bf16.mxu0 0
      %2604 = vmatpush2.bf16.msra.mxu0 0
      %2605 = vmatprep.subr.bf16.mxu0 0
      %2606 = vmatpush2.bf16.msra.mxu0 0
      %2607 = vmatprep.subr.bf16.mxu0 0
      %2608 = vmatpush2.bf16.msra.mxu0 0
      %2609 = vmatprep.subr.bf16.mxu0 0
      %2610 = vmatpush2.bf16.msra.mxu0 0
      %2611 = vmatprep.subr.bf16.mxu0 0
      %2612 = vmatpush2.bf16.msra.mxu0 0
      %2613 = vmatprep.subr.bf16.mxu0 0
      %2614 = vmatpush2.bf16.msra.mxu0 0
      %2615 = vmatprep.mubr.bf16.mxu0 0
      %2616 = vmatmul.mubr.bf16.gmra.mxu0 %v2578
      %v2617 = vpop.f32.mrf.mxu0
      %v2618 = vadd.f32 0.0, %v2617
      %v2619 = vpop.f32.mrf.mxu0
      %v2620 = vpop.f32.mrf.mxu0
      %v2621 = vpop.f32.mrf.mxu0
      %2622 = vdwg.mxu0
      %v2623 = vadd.f32 %v2572, %v2618
      %s2624 = scalar_lea.vmem %s6, 20
      %v2625 = vld [vmem:[%s2624] sm:$0xf]
      %2626 = vrot.lane.b32.xlu0 %v2368, 116
      %v2627 = vpop.permute.xlu0 %2626
      %v2629 = vsel %vm2375, %v2625, 0
      %v2632 = vand.u32 %v2627, %v2381
      %2634 = vmatprep.subr.bf16.mxu0 0
      %2635 = vmatpush1.bf16.msra.mxu0 0
      %2636 = vmatprep.subr.bf16.mxu0 0
      %2637 = vmatpush1.bf16.msra.mxu0 0
      %2638 = vmatprep.subr.bf16.mxu0 0
      %2639 = vmatpush1.bf16.msra.mxu0 0
      %2640 = vmatprep.subr.bf16.mxu0 0
      %2641 = vmatpush1.bf16.msra.mxu0 0
      %2642 = vmatprep.subr.bf16.mxu0 0
      %2643 = vmatpush1.bf16.msra.mxu0 0
      %2644 = vmatprep.subr.bf16.mxu0 0
      %2645 = vmatpush1.bf16.msra.mxu0 0
      %2646 = vmatprep.subr.bf16.mxu0 0
      %2647 = vmatpush1.bf16.msra.mxu0 0
      %2648 = vmatprep.subr.bf16.mxu0 0
      %2649 = vmatpush1.bf16.msra.mxu0 %v2632
      %2650 = vmatprep.subr.bf16.mxu0 0
      %2651 = vmatpush2.bf16.msra.mxu0 0
      %2652 = vmatprep.subr.bf16.mxu0 0
      %2653 = vmatpush2.bf16.msra.mxu0 0
      %2654 = vmatprep.subr.bf16.mxu0 0
      %2655 = vmatpush2.bf16.msra.mxu0 0
      %2656 = vmatprep.subr.bf16.mxu0 0
      %2657 = vmatpush2.bf16.msra.mxu0 0
      %2658 = vmatprep.subr.bf16.mxu0 0
      %2659 = vmatpush2.bf16.msra.mxu0 0
      %2660 = vmatprep.subr.bf16.mxu0 0
      %2661 = vmatpush2.bf16.msra.mxu0 0
      %2662 = vmatprep.subr.bf16.mxu0 0
      %2663 = vmatpush2.bf16.msra.mxu0 0
      %2664 = vmatprep.subr.bf16.mxu0 0
      %2665 = vmatpush2.bf16.msra.mxu0 0
      %2666 = vmatprep.mubr.bf16.mxu0 0
      %2667 = vmatmul.mubr.bf16.gmra.mxu0 %v2629
      %v2668 = vpop.f32.mrf.mxu0
      %v2669 = vadd.f32 0.0, %v2668
      %v2670 = vpop.f32.mrf.mxu0
      %v2671 = vpop.f32.mrf.mxu0
      %v2672 = vpop.f32.mrf.mxu0
      %2673 = vdwg.mxu0
      %v2674 = vadd.f32 %v2623, %v2669
      %s2675 = scalar_lea.vmem %s6, 24
      %v2676 = vld [vmem:[%s2675] sm:$0xf]
      %2677 = vrot.lane.b32.xlu0 %v2368, 108
      %v2678 = vpop.permute.xlu0 %2677
      %v2680 = vsel %vm2375, %v2676, 0
      %v2683 = vand.u32 %v2678, %v2381
      %2685 = vmatprep.subr.bf16.mxu0 0
      %2686 = vmatpush1.bf16.msra.mxu0 0
      %2687 = vmatprep.subr.bf16.mxu0 0
      %2688 = vmatpush1.bf16.msra.mxu0 0
      %2689 = vmatprep.subr.bf16.mxu0 0
      %2690 = vmatpush1.bf16.msra.mxu0 0
      %2691 = vmatprep.subr.bf16.mxu0 0
      %2692 = vmatpush1.bf16.msra.mxu0 0
      %2693 = vmatprep.subr.bf16.mxu0 0
      %2694 = vmatpush1.bf16.msra.mxu0 0
      %2695 = vmatprep.subr.bf16.mxu0 0
      %2696 = vmatpush1.bf16.msra.mxu0 0
      %2697 = vmatprep.subr.bf16.mxu0 0
      %2698 = vmatpush1.bf16.msra.mxu0 0
      %2699 = vmatprep.subr.bf16.mxu0 0
      %2700 = vmatpush1.bf16.msra.mxu0 %v2683
      %2701 = vmatprep.subr.bf16.mxu0 0
      %2702 = vmatpush2.bf16.msra.mxu0 0
      %2703 = vmatprep.subr.bf16.mxu0 0
      %2704 = vmatpush2.bf16.msra.mxu0 0
      %2705 = vmatprep.subr.bf16.mxu0 0
      %2706 = vmatpush2.bf16.msra.mxu0 0
      %2707 = vmatprep.subr.bf16.mxu0 0
      %2708 = vmatpush2.bf16.msra.mxu0 0
      %2709 = vmatprep.subr.bf16.mxu0 0
      %2710 = vmatpush2.bf16.msra.mxu0 0
      %2711 = vmatprep.subr.bf16.mxu0 0
      %2712 = vmatpush2.bf16.msra.mxu0 0
      %2713 = vmatprep.subr.bf16.mxu0 0
      %2714 = vmatpush2.bf16.msra.mxu0 0
      %2715 = vmatprep.subr.bf16.mxu0 0
      %2716 = vmatpush2.bf16.msra.mxu0 0
      %2717 = vmatprep.mubr.bf16.mxu0 0
      %2718 = vmatmul.mubr.bf16.gmra.mxu0 %v2680
      %v2719 = vpop.f32.mrf.mxu0
      %v2720 = vadd.f32 0.0, %v2719
      %v2721 = vpop.f32.mrf.mxu0
      %v2722 = vpop.f32.mrf.mxu0
      %v2723 = vpop.f32.mrf.mxu0
      %2724 = vdwg.mxu0
      %v2725 = vadd.f32 %v2674, %v2720
      %s2726 = scalar_lea.vmem %s6, 28
      %v2727 = vld [vmem:[%s2726] sm:$0xf]
      %2728 = vrot.lane.b32.xlu0 %v2368, 107
      %v2729 = vpop.permute.xlu0 %2728
      %v2731 = vsel %vm2375, %v2727, 0
      %v2734 = vand.u32 %v2729, %v2381
      %2736 = vmatprep.subr.bf16.mxu0 0
      %2737 = vmatpush1.bf16.msra.mxu0 0
      %2738 = vmatprep.subr.bf16.mxu0 0
      %2739 = vmatpush1.bf16.msra.mxu0 0
      %2740 = vmatprep.subr.bf16.mxu0 0
      %2741 = vmatpush1.bf16.msra.mxu0 0
      %2742 = vmatprep.subr.bf16.mxu0 0
      %2743 = vmatpush1.bf16.msra.mxu0 0
      %2744 = vmatprep.subr.bf16.mxu0 0
      %2745 = vmatpush1.bf16.msra.mxu0 0
      %2746 = vmatprep.subr.bf16.mxu0 0
      %2747 = vmatpush1.bf16.msra.mxu0 0
      %2748 = vmatprep.subr.bf16.mxu0 0
      %2749 = vmatpush1.bf16.msra.mxu0 0
      %2750 = vmatprep.subr.bf16.mxu0 0
      %2751 = vmatpush1.bf16.msra.mxu0 %v2734
      %2752 = vmatprep.subr.bf16.mxu0 0
      %2753 = vmatpush2.bf16.msra.mxu0 0
      %2754 = vmatprep.subr.bf16.mxu0 0
      %2755 = vmatpush2.bf16.msra.mxu0 0
      %2756 = vmatprep.subr.bf16.mxu0 0
      %2757 = vmatpush2.bf16.msra.mxu0 0
      %2758 = vmatprep.subr.bf16.mxu0 0
      %2759 = vmatpush2.bf16.msra.mxu0 0
      %2760 = vmatprep.subr.bf16.mxu0 0
      %2761 = vmatpush2.bf16.msra.mxu0 0
      %2762 = vmatprep.subr.bf16.mxu0 0
      %2763 = vmatpush2.bf16.msra.mxu0 0
      %2764 = vmatprep.subr.bf16.mxu0 0
      %2765 = vmatpush2.bf16.msra.mxu0 0
      %2766 = vmatprep.subr.bf16.mxu0 0
      %2767 = vmatpush2.bf16.msra.mxu0 0
      %2768 = vmatprep.mubr.bf16.mxu0 0
      %2769 = vmatmul.mubr.bf16.gmra.mxu0 %v2731
      %v2770 = vpop.f32.mrf.mxu0
      %v2771 = vadd.f32 0.0, %v2770
      %v2772 = vpop.f32.mrf.mxu0
      %v2773 = vpop.f32.mrf.mxu0
      %v2774 = vpop.f32.mrf.mxu0
      %2775 = vdwg.mxu0
      %v2776 = vadd.f32 %v2725, %v2771
      %s2777 = scalar_lea.vmem %s6, 32
      %v2778 = vld [vmem:[%s2777] sm:$0xf]
      %2779 = vrot.lane.b32.xlu0 %v2368, 106
      %v2780 = vpop.permute.xlu0 %2779
      %v2782 = vsel %vm2375, %v2778, 0
      %v2785 = vand.u32 %v2780, %v2381
      %2787 = vmatprep.subr.bf16.mxu0 0
      %2788 = vmatpush1.bf16.msra.mxu0 0
      %2789 = vmatprep.subr.bf16.mxu0 0
      %2790 = vmatpush1.bf16.msra.mxu0 0
      %2791 = vmatprep.subr.bf16.mxu0 0
      %2792 = vmatpush1.bf16.msra.mxu0 0
      %2793 = vmatprep.subr.bf16.mxu0 0
      %2794 = vmatpush1.bf16.msra.mxu0 0
      %2795 = vmatprep.subr.bf16.mxu0 0
      %2796 = vmatpush1.bf16.msra.mxu0 0
      %2797 = vmatprep.subr.bf16.mxu0 0
      %2798 = vmatpush1.bf16.msra.mxu0 0
      %2799 = vmatprep.subr.bf16.mxu0 0
      %2800 = vmatpush1.bf16.msra.mxu0 0
      %2801 = vmatprep.subr.bf16.mxu0 0
      %2802 = vmatpush1.bf16.msra.mxu0 %v2785
      %2803 = vmatprep.subr.bf16.mxu0 0
      %2804 = vmatpush2.bf16.msra.mxu0 0
      %2805 = vmatprep.subr.bf16.mxu0 0
      %2806 = vmatpush2.bf16.msra.mxu0 0
      %2807 = vmatprep.subr.bf16.mxu0 0
      %2808 = vmatpush2.bf16.msra.mxu0 0
      %2809 = vmatprep.subr.bf16.mxu0 0
      %2810 = vmatpush2.bf16.msra.mxu0 0
      %2811 = vmatprep.subr.bf16.mxu0 0
      %2812 = vmatpush2.bf16.msra.mxu0 0
      %2813 = vmatprep.subr.bf16.mxu0 0
      %2814 = vmatpush2.bf16.msra.mxu0 0
      %2815 = vmatprep.subr.bf16.mxu0 0
      %2816 = vmatpush2.bf16.msra.mxu0 0
      %2817 = vmatprep.subr.bf16.mxu0 0
      %2818 = vmatpush2.bf16.msra.mxu0 0
      %2819 = vmatprep.mubr.bf16.mxu0 0
      %2820 = vmatmul.mubr.bf16.gmra.mxu0 %v2782
      %v2821 = vpop.f32.mrf.mxu0
      %v2822 = vadd.f32 0.0, %v2821
      %v2823 = vpop.f32.mrf.mxu0
      %v2824 = vpop.f32.mrf.mxu0
      %v2825 = vpop.f32.mrf.mxu0
      %2826 = vdwg.mxu0
      %v2827 = vadd.f32 %v2776, %v2822
      %v2828 = vld [vmem:[%s7] sm:$0xff]
      %2830 = vset.pattern.permute.xlu0 0
      %2831 = vperm.xlu0 %2830, %v2828
      %v2832 = vpop.permute.xlu0 %2831
      %v2834 = vadd.f32 %v2827, %v2832
      %v2835 = vmax.f32 %v2834, 0.0
      %v2836 = vpack.c.bf16 %v2835, %v2835
      %v2837 = vld [vmem:[%s8] sm:$0xf]
      %s2838 = scalar_lea.vmem %s8, 4
      %v2839 = vld [vmem:[%s2838] sm:$0xf]
      %2841 = vrot.lane.b32.xlu0 %v2836, 127
      %v2842 = vpop.permute.xlu0 %2841
      %v2844 = vsel %vm1023, %v2839, 0
      %v2847 = vsel %vm1027, %v2842, 0
      %2849 = vmatprep.subr.bf16.mxu0 0
      %2850 = vmatpush1.bf16.msra.mxu0 0
      %2851 = vmatprep.subr.bf16.mxu0 0
      %2852 = vmatpush1.bf16.msra.mxu0 0
      %2853 = vmatprep.subr.bf16.mxu0 0
      %2854 = vmatpush1.bf16.msra.mxu0 0
      %2855 = vmatprep.subr.bf16.mxu0 0
      %2856 = vmatpush1.bf16.msra.mxu0 0
      %2857 = vmatprep.subr.bf16.mxu0 0
      %2858 = vmatpush1.bf16.msra.mxu0 0
      %2859 = vmatprep.subr.bf16.mxu0 0
      %2860 = vmatpush1.bf16.msra.mxu0 0
      %2861 = vmatprep.subr.bf16.mxu0 0
      %2862 = vmatpush1.bf16.msra.mxu0 0
      %2863 = vmatprep.subr.bf16.mxu0 0
      %2864 = vmatpush1.bf16.msra.mxu0 %v2847
      %2865 = vmatprep.subr.bf16.mxu0 0
      %2866 = vmatpush2.bf16.msra.mxu0 0
      %2867 = vmatprep.subr.bf16.mxu0 0
      %2868 = vmatpush2.bf16.msra.mxu0 0
      %2869 = vmatprep.subr.bf16.mxu0 0
      %2870 = vmatpush2.bf16.msra.mxu0 0
      %2871 = vmatprep.subr.bf16.mxu0 0
      %2872 = vmatpush2.bf16.msra.mxu0 0
      %2873 = vmatprep.subr.bf16.mxu0 0
      %2874 = vmatpush2.bf16.msra.mxu0 0
      %2875 = vmatprep.subr.bf16.mxu0 0
      %2876 = vmatpush2.bf16.msra.mxu0 0
      %2877 = vmatprep.subr.bf16.mxu0 0
      %2878 = vmatpush2.bf16.msra.mxu0 0
      %2879 = vmatprep.subr.bf16.mxu0 0
      %2880 = vmatpush2.bf16.msra.mxu0 0
      %2881 = vmatprep.mubr.bf16.mxu0 0
      %2882 = vmatmul.mubr.bf16.gmra.mxu0 %v2844
      %v2883 = vpop.f32.mrf.mxu0
      %v2884 = vadd.f32 0.0, %v2883
      %v2885 = vpop.f32.mrf.mxu0
      %v2886 = vpop.f32.mrf.mxu0
      %v2887 = vpop.f32.mrf.mxu0
      %2888 = vdwg.mxu0
      %v2890 = vsel %vm1023, %v2837, 0
      %v2893 = vsel %vm1027, %v2836, 0
      %2895 = vmatprep.subr.bf16.mxu0 0
      %2896 = vmatpush1.bf16.msra.mxu0 0
      %2897 = vmatprep.subr.bf16.mxu0 0
      %2898 = vmatpush1.bf16.msra.mxu0 0
      %2899 = vmatprep.subr.bf16.mxu0 0
      %2900 = vmatpush1.bf16.msra.mxu0 0
      %2901 = vmatprep.subr.bf16.mxu0 0
      %2902 = vmatpush1.bf16.msra.mxu0 0
      %2903 = vmatprep.subr.bf16.mxu0 0
      %2904 = vmatpush1.bf16.msra.mxu0 0
      %2905 = vmatprep.subr.bf16.mxu0 0
      %2906 = vmatpush1.bf16.msra.mxu0 0
      %2907 = vmatprep.subr.bf16.mxu0 0
      %2908 = vmatpush1.bf16.msra.mxu0 0
      %2909 = vmatprep.subr.bf16.mxu0 0
      %2910 = vmatpush1.bf16.msra.mxu0 %v2893
      %2911 = vmatprep.subr.bf16.mxu0 0
      %2912 = vmatpush2.bf16.msra.mxu0 0
      %2913 = vmatprep.subr.bf16.mxu0 0
      %2914 = vmatpush2.bf16.msra.mxu0 0
      %2915 = vmatprep.subr.bf16.mxu0 0
      %2916 = vmatpush2.bf16.msra.mxu0 0
      %2917 = vmatprep.subr.bf16.mxu0 0
      %2918 = vmatpush2.bf16.msra.mxu0 0
      %2919 = vmatprep.subr.bf16.mxu0 0
      %2920 = vmatpush2.bf16.msra.mxu0 0
      %2921 = vmatprep.subr.bf16.mxu0 0
      %2922 = vmatpush2.bf16.msra.mxu0 0
      %2923 = vmatprep.subr.bf16.mxu0 0
      %2924 = vmatpush2.bf16.msra.mxu0 0
      %2925 = vmatprep.subr.bf16.mxu0 0
      %2926 = vmatpush2.bf16.msra.mxu0 0
      %2927 = vmatprep.mubr.bf16.mxu0 0
      %2928 = vmatmul.mubr.bf16.gmra.mxu0 %v2890
      %v2929 = vpop.f32.mrf.mxu0
      %v2930 = vadd.f32 %v2884, %v2929
      %v2931 = vpop.f32.mrf.mxu0
      %v2932 = vpop.f32.mrf.mxu0
      %v2933 = vpop.f32.mrf.mxu0
      %2934 = vdwg.mxu0
      %s2935 = scalar_lea.vmem %s8, 8
      %v2936 = vld [vmem:[%s2935] sm:$0xf]
      %2937 = vrot.lane.b32.xlu0 %v2836, 126
      %v2938 = vpop.permute.xlu0 %2937
      %v2940 = vsel %vm1023, %v2936, 0
      %v2943 = vsel %vm1027, %v2938, 0
      %2945 = vmatprep.subr.bf16.mxu0 0
      %2946 = vmatpush1.bf16.msra.mxu0 0
      %2947 = vmatprep.subr.bf16.mxu0 0
      %2948 = vmatpush1.bf16.msra.mxu0 0
      %2949 = vmatprep.subr.bf16.mxu0 0
      %2950 = vmatpush1.bf16.msra.mxu0 0
      %2951 = vmatprep.subr.bf16.mxu0 0
      %2952 = vmatpush1.bf16.msra.mxu0 0
      %2953 = vmatprep.subr.bf16.mxu0 0
      %2954 = vmatpush1.bf16.msra.mxu0 0
      %2955 = vmatprep.subr.bf16.mxu0 0
      %2956 = vmatpush1.bf16.msra.mxu0 0
      %2957 = vmatprep.subr.bf16.mxu0 0
      %2958 = vmatpush1.bf16.msra.mxu0 0
      %2959 = vmatprep.subr.bf16.mxu0 0
      %2960 = vmatpush1.bf16.msra.mxu0 %v2943
      %2961 = vmatprep.subr.bf16.mxu0 0
      %2962 = vmatpush2.bf16.msra.mxu0 0
      %2963 = vmatprep.subr.bf16.mxu0 0
      %2964 = vmatpush2.bf16.msra.mxu0 0
      %2965 = vmatprep.subr.bf16.mxu0 0
      %2966 = vmatpush2.bf16.msra.mxu0 0
      %2967 = vmatprep.subr.bf16.mxu0 0
      %2968 = vmatpush2.bf16.msra.mxu0 0
      %2969 = vmatprep.subr.bf16.mxu0 0
      %2970 = vmatpush2.bf16.msra.mxu0 0
      %2971 = vmatprep.subr.bf16.mxu0 0
      %2972 = vmatpush2.bf16.msra.mxu0 0
      %2973 = vmatprep.subr.bf16.mxu0 0
      %2974 = vmatpush2.bf16.msra.mxu0 0
      %2975 = vmatprep.subr.bf16.mxu0 0
      %2976 = vmatpush2.bf16.msra.mxu0 0
      %2977 = vmatprep.mubr.bf16.mxu0 0
      %2978 = vmatmul.mubr.bf16.gmra.mxu0 %v2940
      %v2979 = vpop.f32.mrf.mxu0
      %v2980 = vadd.f32 0.0, %v2979
      %v2981 = vpop.f32.mrf.mxu0
      %v2982 = vpop.f32.mrf.mxu0
      %v2983 = vpop.f32.mrf.mxu0
      %2984 = vdwg.mxu0
      %v2985 = vadd.f32 %v2930, %v2980
      %s2986 = scalar_lea.vmem %s8, 12
      %v2987 = vld [vmem:[%s2986] sm:$0xf]
      %2988 = vrot.lane.b32.xlu0 %v2836, 118
      %v2989 = vpop.permute.xlu0 %2988
      %v2991 = vsel %vm1023, %v2987, 0
      %v2994 = vsel %vm1027, %v2989, 0
      %2996 = vmatprep.subr.bf16.mxu0 0
      %2997 = vmatpush1.bf16.msra.mxu0 0
      %2998 = vmatprep.subr.bf16.mxu0 0
      %2999 = vmatpush1.bf16.msra.mxu0 0
      %3000 = vmatprep.subr.bf16.mxu0 0
      %3001 = vmatpush1.bf16.msra.mxu0 0
      %3002 = vmatprep.subr.bf16.mxu0 0
      %3003 = vmatpush1.bf16.msra.mxu0 0
      %3004 = vmatprep.subr.bf16.mxu0 0
      %3005 = vmatpush1.bf16.msra.mxu0 0
      %3006 = vmatprep.subr.bf16.mxu0 0
      %3007 = vmatpush1.bf16.msra.mxu0 0
      %3008 = vmatprep.subr.bf16.mxu0 0
      %3009 = vmatpush1.bf16.msra.mxu0 0
      %3010 = vmatprep.subr.bf16.mxu0 0
      %3011 = vmatpush1.bf16.msra.mxu0 %v2994
      %3012 = vmatprep.subr.bf16.mxu0 0
      %3013 = vmatpush2.bf16.msra.mxu0 0
      %3014 = vmatprep.subr.bf16.mxu0 0
      %3015 = vmatpush2.bf16.msra.mxu0 0
      %3016 = vmatprep.subr.bf16.mxu0 0
      %3017 = vmatpush2.bf16.msra.mxu0 0
      %3018 = vmatprep.subr.bf16.mxu0 0
      %3019 = vmatpush2.bf16.msra.mxu0 0
      %3020 = vmatprep.subr.bf16.mxu0 0
      %3021 = vmatpush2.bf16.msra.mxu0 0
      %3022 = vmatprep.subr.bf16.mxu0 0
      %3023 = vmatpush2.bf16.msra.mxu0 0
      %3024 = vmatprep.subr.bf16.mxu0 0
      %3025 = vmatpush2.bf16.msra.mxu0 0
      %3026 = vmatprep.subr.bf16.mxu0 0
      %3027 = vmatpush2.bf16.msra.mxu0 0
      %3028 = vmatprep.mubr.bf16.mxu0 0
      %3029 = vmatmul.mubr.bf16.gmra.mxu0 %v2991
      %v3030 = vpop.f32.mrf.mxu0
      %v3031 = vadd.f32 0.0, %v3030
      %v3032 = vpop.f32.mrf.mxu0
      %v3033 = vpop.f32.mrf.mxu0
      %v3034 = vpop.f32.mrf.mxu0
      %3035 = vdwg.mxu0
      %v3036 = vadd.f32 %v2985, %v3031
      %s3037 = scalar_lea.vmem %s8, 16
      %v3038 = vld [vmem:[%s3037] sm:$0xf]
      %3039 = vrot.lane.b32.xlu0 %v2836, 117
      %v3040 = vpop.permute.xlu0 %3039
      %v3042 = vsel %vm1023, %v3038, 0
      %v3045 = vsel %vm1027, %v3040, 0
      %3047 = vmatprep.subr.bf16.mxu0 0
      %3048 = vmatpush1.bf16.msra.mxu0 0
      %3049 = vmatprep.subr.bf16.mxu0 0
      %3050 = vmatpush1.bf16.msra.mxu0 0
      %3051 = vmatprep.subr.bf16.mxu0 0
      %3052 = vmatpush1.bf16.msra.mxu0 0
      %3053 = vmatprep.subr.bf16.mxu0 0
      %3054 = vmatpush1.bf16.msra.mxu0 0
      %3055 = vmatprep.subr.bf16.mxu0 0
      %3056 = vmatpush1.bf16.msra.mxu0 0
      %3057 = vmatprep.subr.bf16.mxu0 0
      %3058 = vmatpush1.bf16.msra.mxu0 0
      %3059 = vmatprep.subr.bf16.mxu0 0
      %3060 = vmatpush1.bf16.msra.mxu0 0
      %3061 = vmatprep.subr.bf16.mxu0 0
      %3062 = vmatpush1.bf16.msra.mxu0 %v3045
      %3063 = vmatprep.subr.bf16.mxu0 0
      %3064 = vmatpush2.bf16.msra.mxu0 0
      %3065 = vmatprep.subr.bf16.mxu0 0
      %3066 = vmatpush2.bf16.msra.mxu0 0
      %3067 = vmatprep.subr.bf16.mxu0 0
      %3068 = vmatpush2.bf16.msra.mxu0 0
      %3069 = vmatprep.subr.bf16.mxu0 0
      %3070 = vmatpush2.bf16.msra.mxu0 0
      %3071 = vmatprep.subr.bf16.mxu0 0
      %3072 = vmatpush2.bf16.msra.mxu0 0
      %3073 = vmatprep.subr.bf16.mxu0 0
      %3074 = vmatpush2.bf16.msra.mxu0 0
      %3075 = vmatprep.subr.bf16.mxu0 0
      %3076 = vmatpush2.bf16.msra.mxu0 0
      %3077 = vmatprep.subr.bf16.mxu0 0
      %3078 = vmatpush2.bf16.msra.mxu0 0
      %3079 = vmatprep.mubr.bf16.mxu0 0
      %3080 = vmatmul.mubr.bf16.gmra.mxu0 %v3042
      %v3081 = vpop.f32.mrf.mxu0
      %v3082 = vadd.f32 0.0, %v3081
      %v3083 = vpop.f32.mrf.mxu0
      %v3084 = vpop.f32.mrf.mxu0
      %v3085 = vpop.f32.mrf.mxu0
      %3086 = vdwg.mxu0
      %v3087 = vadd.f32 %v3036, %v3082
      %s3088 = scalar_lea.vmem %s8, 20
      %v3089 = vld [vmem:[%s3088] sm:$0xf]
      %3090 = vrot.lane.b32.xlu0 %v2836, 116
      %v3091 = vpop.permute.xlu0 %3090
      %v3093 = vsel %vm1023, %v3089, 0
      %v3096 = vsel %vm1027, %v3091, 0
      %3098 = vmatprep.subr.bf16.mxu0 0
      %3099 = vmatpush1.bf16.msra.mxu0 0
      %3100 = vmatprep.subr.bf16.mxu0 0
      %3101 = vmatpush1.bf16.msra.mxu0 0
      %3102 = vmatprep.subr.bf16.mxu0 0
      %3103 = vmatpush1.bf16.msra.mxu0 0
      %3104 = vmatprep.subr.bf16.mxu0 0
      %3105 = vmatpush1.bf16.msra.mxu0 0
      %3106 = vmatprep.subr.bf16.mxu0 0
      %3107 = vmatpush1.bf16.msra.mxu0 0
      %3108 = vmatprep.subr.bf16.mxu0 0
      %3109 = vmatpush1.bf16.msra.mxu0 0
      %3110 = vmatprep.subr.bf16.mxu0 0
      %3111 = vmatpush1.bf16.msra.mxu0 0
      %3112 = vmatprep.subr.bf16.mxu0 0
      %3113 = vmatpush1.bf16.msra.mxu0 %v3096
      %3114 = vmatprep.subr.bf16.mxu0 0
      %3115 = vmatpush2.bf16.msra.mxu0 0
      %3116 = vmatprep.subr.bf16.mxu0 0
      %3117 = vmatpush2.bf16.msra.mxu0 0
      %3118 = vmatprep.subr.bf16.mxu0 0
      %3119 = vmatpush2.bf16.msra.mxu0 0
      %3120 = vmatprep.subr.bf16.mxu0 0
      %3121 = vmatpush2.bf16.msra.mxu0 0
      %3122 = vmatprep.subr.bf16.mxu0 0
      %3123 = vmatpush2.bf16.msra.mxu0 0
      %3124 = vmatprep.subr.bf16.mxu0 0
      %3125 = vmatpush2.bf16.msra.mxu0 0
      %3126 = vmatprep.subr.bf16.mxu0 0
      %3127 = vmatpush2.bf16.msra.mxu0 0
      %3128 = vmatprep.subr.bf16.mxu0 0
      %3129 = vmatpush2.bf16.msra.mxu0 0
      %3130 = vmatprep.mubr.bf16.mxu0 0
      %3131 = vmatmul.mubr.bf16.gmra.mxu0 %v3093
      %v3132 = vpop.f32.mrf.mxu0
      %v3133 = vadd.f32 0.0, %v3132
      %v3134 = vpop.f32.mrf.mxu0
      %v3135 = vpop.f32.mrf.mxu0
      %v3136 = vpop.f32.mrf.mxu0
      %3137 = vdwg.mxu0
      %v3138 = vadd.f32 %v3087, %v3133
      %s3139 = scalar_lea.vmem %s8, 24
      %v3140 = vld [vmem:[%s3139] sm:$0xf]
      %3141 = vrot.lane.b32.xlu0 %v2836, 108
      %v3142 = vpop.permute.xlu0 %3141
      %v3144 = vsel %vm1023, %v3140, 0
      %v3147 = vsel %vm1027, %v3142, 0
      %3149 = vmatprep.subr.bf16.mxu0 0
      %3150 = vmatpush1.bf16.msra.mxu0 0
      %3151 = vmatprep.subr.bf16.mxu0 0
      %3152 = vmatpush1.bf16.msra.mxu0 0
      %3153 = vmatprep.subr.bf16.mxu0 0
      %3154 = vmatpush1.bf16.msra.mxu0 0
      %3155 = vmatprep.subr.bf16.mxu0 0
      %3156 = vmatpush1.bf16.msra.mxu0 0
      %3157 = vmatprep.subr.bf16.mxu0 0
      %3158 = vmatpush1.bf16.msra.mxu0 0
      %3159 = vmatprep.subr.bf16.mxu0 0
      %3160 = vmatpush1.bf16.msra.mxu0 0
      %3161 = vmatprep.subr.bf16.mxu0 0
      %3162 = vmatpush1.bf16.msra.mxu0 0
      %3163 = vmatprep.subr.bf16.mxu0 0
      %3164 = vmatpush1.bf16.msra.mxu0 %v3147
      %3165 = vmatprep.subr.bf16.mxu0 0
      %3166 = vmatpush2.bf16.msra.mxu0 0
      %3167 = vmatprep.subr.bf16.mxu0 0
      %3168 = vmatpush2.bf16.msra.mxu0 0
      %3169 = vmatprep.subr.bf16.mxu0 0
      %3170 = vmatpush2.bf16.msra.mxu0 0
      %3171 = vmatprep.subr.bf16.mxu0 0
      %3172 = vmatpush2.bf16.msra.mxu0 0
      %3173 = vmatprep.subr.bf16.mxu0 0
      %3174 = vmatpush2.bf16.msra.mxu0 0
      %3175 = vmatprep.subr.bf16.mxu0 0
      %3176 = vmatpush2.bf16.msra.mxu0 0
      %3177 = vmatprep.subr.bf16.mxu0 0
      %3178 = vmatpush2.bf16.msra.mxu0 0
      %3179 = vmatprep.subr.bf16.mxu0 0
      %3180 = vmatpush2.bf16.msra.mxu0 0
      %3181 = vmatprep.mubr.bf16.mxu0 0
      %3182 = vmatmul.mubr.bf16.gmra.mxu0 %v3144
      %v3183 = vpop.f32.mrf.mxu0
      %v3184 = vadd.f32 0.0, %v3183
      %v3185 = vpop.f32.mrf.mxu0
      %v3186 = vpop.f32.mrf.mxu0
      %v3187 = vpop.f32.mrf.mxu0
      %3188 = vdwg.mxu0
      %v3189 = vadd.f32 %v3138, %v3184
      %s3190 = scalar_lea.vmem %s8, 28
      %v3191 = vld [vmem:[%s3190] sm:$0xf]
      %3192 = vrot.lane.b32.xlu0 %v2836, 107
      %v3193 = vpop.permute.xlu0 %3192
      %v3195 = vsel %vm1023, %v3191, 0
      %v3198 = vsel %vm1027, %v3193, 0
      %3200 = vmatprep.subr.bf16.mxu0 0
      %3201 = vmatpush1.bf16.msra.mxu0 0
      %3202 = vmatprep.subr.bf16.mxu0 0
      %3203 = vmatpush1.bf16.msra.mxu0 0
      %3204 = vmatprep.subr.bf16.mxu0 0
      %3205 = vmatpush1.bf16.msra.mxu0 0
      %3206 = vmatprep.subr.bf16.mxu0 0
      %3207 = vmatpush1.bf16.msra.mxu0 0
      %3208 = vmatprep.subr.bf16.mxu0 0
      %3209 = vmatpush1.bf16.msra.mxu0 0
      %3210 = vmatprep.subr.bf16.mxu0 0
      %3211 = vmatpush1.bf16.msra.mxu0 0
      %3212 = vmatprep.subr.bf16.mxu0 0
      %3213 = vmatpush1.bf16.msra.mxu0 0
      %3214 = vmatprep.subr.bf16.mxu0 0
      %3215 = vmatpush1.bf16.msra.mxu0 %v3198
      %3216 = vmatprep.subr.bf16.mxu0 0
      %3217 = vmatpush2.bf16.msra.mxu0 0
      %3218 = vmatprep.subr.bf16.mxu0 0
      %3219 = vmatpush2.bf16.msra.mxu0 0
      %3220 = vmatprep.subr.bf16.mxu0 0
      %3221 = vmatpush2.bf16.msra.mxu0 0
      %3222 = vmatprep.subr.bf16.mxu0 0
      %3223 = vmatpush2.bf16.msra.mxu0 0
      %3224 = vmatprep.subr.bf16.mxu0 0
      %3225 = vmatpush2.bf16.msra.mxu0 0
      %3226 = vmatprep.subr.bf16.mxu0 0
      %3227 = vmatpush2.bf16.msra.mxu0 0
      %3228 = vmatprep.subr.bf16.mxu0 0
      %3229 = vmatpush2.bf16.msra.mxu0 0
      %3230 = vmatprep.subr.bf16.mxu0 0
      %3231 = vmatpush2.bf16.msra.mxu0 0
      %3232 = vmatprep.mubr.bf16.mxu0 0
      %3233 = vmatmul.mubr.bf16.gmra.mxu0 %v3195
      %v3234 = vpop.f32.mrf.mxu0
      %v3235 = vadd.f32 0.0, %v3234
      %v3236 = vpop.f32.mrf.mxu0
      %v3237 = vpop.f32.mrf.mxu0
      %v3238 = vpop.f32.mrf.mxu0
      %3239 = vdwg.mxu0
      %v3240 = vadd.f32 %v3189, %v3235
      %s3241 = scalar_lea.vmem %s8, 32
      %v3242 = vld [vmem:[%s3241] sm:$0xf]
      %3243 = vrot.lane.b32.xlu0 %v2836, 106
      %v3244 = vpop.permute.xlu0 %3243
      %v3246 = vsel %vm1023, %v3242, 0
      %v3249 = vsel %vm1027, %v3244, 0
      %3251 = vmatprep.subr.bf16.mxu0 0
      %3252 = vmatpush1.bf16.msra.mxu0 0
      %3253 = vmatprep.subr.bf16.mxu0 0
      %3254 = vmatpush1.bf16.msra.mxu0 0
      %3255 = vmatprep.subr.bf16.mxu0 0
      %3256 = vmatpush1.bf16.msra.mxu0 0
      %3257 = vmatprep.subr.bf16.mxu0 0
      %3258 = vmatpush1.bf16.msra.mxu0 0
      %3259 = vmatprep.subr.bf16.mxu0 0
      %3260 = vmatpush1.bf16.msra.mxu0 0
      %3261 = vmatprep.subr.bf16.mxu0 0
      %3262 = vmatpush1.bf16.msra.mxu0 0
      %3263 = vmatprep.subr.bf16.mxu0 0
      %3264 = vmatpush1.bf16.msra.mxu0 0
      %3265 = vmatprep.subr.bf16.mxu0 0
      %3266 = vmatpush1.bf16.msra.mxu0 %v3249
      %3267 = vmatprep.subr.bf16.mxu0 0
      %3268 = vmatpush2.bf16.msra.mxu0 0
      %3269 = vmatprep.subr.bf16.mxu0 0
      %3270 = vmatpush2.bf16.msra.mxu0 0
      %3271 = vmatprep.subr.bf16.mxu0 0
      %3272 = vmatpush2.bf16.msra.mxu0 0
      %3273 = vmatprep.subr.bf16.mxu0 0
      %3274 = vmatpush2.bf16.msra.mxu0 0
      %3275 = vmatprep.subr.bf16.mxu0 0
      %3276 = vmatpush2.bf16.msra.mxu0 0
      %3277 = vmatprep.subr.bf16.mxu0 0
      %3278 = vmatpush2.bf16.msra.mxu0 0
      %3279 = vmatprep.subr.bf16.mxu0 0
      %3280 = vmatpush2.bf16.msra.mxu0 0
      %3281 = vmatprep.subr.bf16.mxu0 0
      %3282 = vmatpush2.bf16.msra.mxu0 0
      %3283 = vmatprep.mubr.bf16.mxu0 0
      %3284 = vmatmul.mubr.bf16.gmra.mxu0 %v3246
      %v3285 = vpop.f32.mrf.mxu0
      %v3286 = vadd.f32 0.0, %v3285
      %v3287 = vpop.f32.mrf.mxu0
      %v3288 = vpop.f32.mrf.mxu0
      %v3289 = vpop.f32.mrf.mxu0
      %3290 = vdwg.mxu0
      %v3291 = vadd.f32 %v3240, %v3286
      %v3292 = vld [vmem:[%s9] sm:$0xff]
      %3294 = vset.pattern.permute.xlu0 0
      %3295 = vperm.xlu0 %3294, %v3292
      %v3296 = vpop.permute.xlu0 %3295
      %v3298 = vadd.f32 %v3291, %v3296
      %v3299 = vmax.f32 %v3298, 0.0
      %v3300 = vld [vmem:[%s12] sm:$0xff]
      %v3301 = vld [vmem:[%s12 + $0x8] sm:$0xff]
      %v3302 = vld [vmem:[%s12 + $0x10] sm:$0xff]
      %v3303 = vld [vmem:[%s12 + $0x18] sm:$0xff]
      %v3304 = vld [vmem:[%s12 + $0x20] sm:$0xff]
      %v3305 = vld [vmem:[%s12 + $0x28] sm:$0xff]
      %v3306 = vld [vmem:[%s12 + $0x30] sm:$0xff]
      %vm3307 = vcmask 457728
      %v3309 = vsel %vm3307, %v3299, 0
      %3311 = vmatprep.subr.mxu0 0.0
      %3312 = vmatpush1.msra.mxu0 0.0
      %3313 = vmatprep.subr.mxu0 0.0
      %3314 = vmatpush1.msra.mxu0 0.0
      %3315 = vmatprep.subr.mxu0 0.0
      %3316 = vmatpush1.msra.mxu0 0.0
      %3317 = vmatprep.subr.mxu0 0.0
      %3318 = vmatpush1.msra.mxu0 0.0
      %3319 = vmatprep.subr.mxu0 0.0
      %3320 = vmatpush1.msra.mxu0 0.0
      %3321 = vmatprep.subr.mxu0 0.0
      %3322 = vmatpush1.msra.mxu0 0.0
      %3323 = vmatprep.subr.mxu0 0.0
      %3324 = vmatpush1.msra.mxu0 0.0
      %3325 = vmatprep.subr.mxu0 0.0
      %3326 = vmatpush1.msra.mxu0 0.0
      %3327 = vmatprep.subr.mxu0 0.0
      %3328 = vmatpush1.msra.mxu0 0.0
      %3329 = vmatprep.subr.mxu0 0.0
      %3330 = vmatpush1.msra.mxu0 %v3306
      %3331 = vmatprep.subr.mxu0 0.0
      %3332 = vmatpush1.msra.mxu0 %v3305
      %3333 = vmatprep.subr.mxu0 0.0
      %3334 = vmatpush1.msra.mxu0 %v3304
      %3335 = vmatprep.subr.mxu0 0.0
      %3336 = vmatpush1.msra.mxu0 %v3303
      %3337 = vmatprep.subr.mxu0 0.0
      %3338 = vmatpush1.msra.mxu0 %v3302
      %3339 = vmatprep.subr.mxu0 0.0
      %3340 = vmatpush1.msra.mxu0 %v3301
      %3341 = vmatprep.subr.mxu0 0.0
      %3342 = vmatpush1.msra.mxu0 %v3300
      %3343 = vmatprep.subr.mxu0 0.0
      %3344 = vmatpush2.msra.mxu0 0.0
      %3345 = vmatprep.subr.mxu0 0.0
      %3346 = vmatpush2.msra.mxu0 0.0
      %3347 = vmatprep.subr.mxu0 0.0
      %3348 = vmatpush2.msra.mxu0 0.0
      %3349 = vmatprep.subr.mxu0 0.0
      %3350 = vmatpush2.msra.mxu0 0.0
      %3351 = vmatprep.subr.mxu0 0.0
      %3352 = vmatpush2.msra.mxu0 0.0
      %3353 = vmatprep.subr.mxu0 0.0
      %3354 = vmatpush2.msra.mxu0 0.0
      %3355 = vmatprep.subr.mxu0 0.0
      %3356 = vmatpush2.msra.mxu0 0.0
      %3357 = vmatprep.subr.mxu0 0.0
      %3358 = vmatpush2.msra.mxu0 0.0
      %3359 = vmatprep.subr.mxu0 0.0
      %3360 = vmatpush2.msra.mxu0 0.0
      %3361 = vmatprep.subr.mxu0 0.0
      %3362 = vmatpush2.msra.mxu0 0.0
      %3363 = vmatprep.subr.mxu0 0.0
      %3364 = vmatpush2.msra.mxu0 0.0
      %3365 = vmatprep.subr.mxu0 0.0
      %3366 = vmatpush2.msra.mxu0 0.0
      %3367 = vmatprep.subr.mxu0 0.0
      %3368 = vmatpush2.msra.mxu0 0.0
      %3369 = vmatprep.subr.mxu0 0.0
      %3370 = vmatpush2.msra.mxu0 0.0
      %3371 = vmatprep.subr.mxu0 0.0
      %3372 = vmatpush2.msra.mxu0 0.0
      %3373 = vmatprep.subr.mxu0 0.0
      %3374 = vmatpush2.msra.mxu0 0.0
      %3375 = vmatprep.mubr.f32.mxu0 0.0
      %3376 = vmatmul.mubr.f32.gmra.mxu0 %v3309
      %v3377 = vpop.f32.mrf.mxu0
      %v3378 = vadd.f32 0.0, %v3377
      %v3379 = vpop.f32.mrf.mxu0
      %3380 = vdwg.mxu0
      %vm3381 = vcmask 293888
      %3382 = vst.msk [vmem:[%s460] sm:$0xff] %vm3381, %v1669
      %3383 = vst.msk [vmem:[%s460 + $0x8] sm:$0xff] %vm3381, %v3378
      %p3384 = scmp.lt.s32.totalorder %s24, 1
      %s3385 = scalar_select %p3384, %s24, 1
      %s3386 = smul.addr %s3385, 2
      %s3387 = smul.addr %s3386, 8
      %s3388 = scalar_lea.vmem %s13, %s3387
      // Predicated region
      $region73: #{down_block_forward.1} parent=71 // pred_check
        %p3389 = pneg %p325
      $region74: #{down_block_forward.1} parent=71 // pred_check_branch
        %3391 = sbr.rel (%p3389) target = $region76
      $region75: #{down_block_forward.1} parent=71 // pred_region
        _
      $region76: #{down_block_forward.1} parent=71 // pred_fallthru
        _
    $region72: #{down_block_forward.1} parent=5 // pred_fallthru
      _
    %p3392 = scmp.le.s32.totalorder 2, %s19
    // Predicated region
    $region77: #{down_block_forward.1} parent=5 // pred_check
      %p3393 = pneg %p3392
    $region78: #{down_block_forward.1} parent=5 // pred_check_branch
      %3395 = sbr.rel (%p3393) target = $region80
    $region79: #{down_block_forward.1} parent=5 // pred_region
      %s3396 = ssub.s32 %s19, 2
      // Predicated region
      $region81: #{down_block_forward.1} parent=79 // pred_check
        %p3397 = pneg %p331
      $region82: #{down_block_forward.1} parent=79 // pred_check_branch
        %3399 = sbr.rel (%p3397) target = $region84
      $region83: #{down_block_forward.1} parent=79 // pred_region
        %p3400 = scmp.lt.s32.totalorder %s25, 1
        %s3401 = scalar_select %p3400, %s25, 1
        %s3402 = smul.addr %s3401, 2
        %s3403 = smul.addr %s3402, 8
        %s3404 = scalar_lea.vmem %s13, %s3403
      $region84: #{down_block_forward.1} parent=79 // pred_fallthru
        _
    $region80: #{down_block_forward.1} parent=5 // pred_fallthru
      _
  $region6: #{down_block_forward.1} parent=0 // loop_footer
    %s23 = sadd.s32 1, %s19
  $region7: #{down_block_forward.1} parent=0 // loop_footer_branch
    %18 = sbr.rel target = $region3
  $region8: #{down_block_forward.1} parent=0 // loop_exit
    _

</llo_original>
